<compile_context>
chip_gen: v7x
topology: tpu7x:2x2x1
jax: 0.10.0
libtpu: 0.0.40
codegen_flags: <defaults>
</compile_context>

<pallas_src>
import functools

import jax
import jax.numpy as jnp
from jax.experimental import pallas as pl
from jax.experimental.pallas import tpu as pltpu

KSIZE = 3  # conv kernel size (EDSR default_conv)


def _res_attention_kernel(x_ref, m1_ref, b1_ref, m2_ref, b2_ref,
                          wd_ref, bd_ref, wu_ref, bu_ref,
                          o_ref, pad_ref, *, res_scale, bt, h, wc):
    """One grid step: `bt` images in lane-dense (H, W*C) row layout.

    x_ref  : (bt, H, W*C)      f32
    m*_ref : (3, W*C, W*C)     bf16   banded conv matrices (dx + Cin folded into K)
    b*_ref : (1, W*C)          f32    lane-tiled conv biases
    wd_ref : (Cr, W*C)         f32    (Wd.T / (H*W)), lane-tiled
    bd_ref : (Cr, 1)           f32
    wu_ref : (Cr, W*C)         f32    Wu, lane-tiled
    bu_ref : (1, W*C)          f32    bu, lane-tiled
    o_ref  : (bt, H, W*C)      f32
    pad_ref: (H+2, W*C)        f32    scratch, H-direction halo only
    """
    # Zero only the 2 halo rows (the W-direction padding lives inside the
    # banded weight matrices, so there is no lane-direction halo).  Cheap, and
    # safe under megacore grid sharding; the interior is fully rewritten below.
    zero_row = jnp.zeros((1, wc), jnp.float32)
    pad_ref[0:1, :] = zero_row
    pad_ref[h + 1:h + 2, :] = zero_row

    def conv3x3(m_ref, b_row):
        # 3 fused, lane-dense bf16 MXU matmuls (K = N = W*C), f32 accumulation.
        def win(dy):
            return pad_ref[dy:dy + h, :].astype(jnp.bfloat16)
        acc = jnp.dot(win(0), m_ref[0], preferred_element_type=jnp.float32)
        acc += jnp.dot(win(1), m_ref[1], preferred_element_type=jnp.float32)
        acc += jnp.dot(win(2), m_ref[2], preferred_element_type=jnp.float32)
        return acc + b_row

    b1 = b1_ref[...]
    b2 = b2_ref[...]

    for bi in range(bt):                       # static unroll over the batch block
        x_rows = x_ref[bi]                     # (H, W*C) f32

        # ---- conv1 + ReLU ----
        pad_ref[1:h + 1, :] = x_rows
        h1 = jnp.maximum(conv3x3(m1_ref, b1), 0.0)

        # ---- conv2 ----
        pad_ref[1:h + 1, :] = h1
        h2 = conv3x3(m2_ref, b2)               # (H, W*C) f32

        # ---- channel attention on VPU / XLU (no M=1 MXU matmuls) ----
        col = jnp.sum(h2, axis=0, keepdims=True)                     # (1, W*C)
        # global-avg-pool + 1x1 "down" conv: 1/(H*W) is folded into wd_ref.
        z = jnp.maximum(
            jnp.sum(col * wd_ref[...], axis=1, keepdims=True) + bd_ref[...],
            0.0)                                                     # (Cr, 1)
        # 1x1 "up" conv + sigmoid, produced directly lane-tiled over W.
        s_rows = jax.nn.sigmoid(
            jnp.sum(z * wu_ref[...], axis=0, keepdims=True) + bu_ref[...])  # (1, W*C)

        # ---- attention scale + residual (f32) ----
        o_ref[bi] = (h2 * s_rows) * res_scale + x_rows


def _build_row_banded(w_hwio, w_spatial):
    """Fold the dx taps and the input channels of a KxK 'same' conv into K
    banded (W*Cin, W*Cout) matrices so that, in the (H, W*C) row layout,

        conv(x)[h, :] = sum_dy  xpad_rows[h + dy, :] @ M[dy]    (+ bias)

    where xpad_rows is x with one zero row above/below.  Entry
    M[dy][w_in*Cin+ci, w_out*Cout+co] = w[dy, w_in - w_out + K//2, ci, co]
    when that dx tap is in range, else 0 (encodes the W-direction padding)."""
    k, kx, cin, cout = w_hwio.shape
    r = jnp.arange(w_spatial)
    mats = []
    for dy in range(k):
        m = jnp.zeros((w_spatial * cin, w_spatial * cout), w_hwio.dtype)
        for dx in range(kx):
            # block (w_in, w_out) is nonzero iff w_in == w_out + dx - kx//2
            ind = (r[:, None] == (r[None, :] + dx - kx // 2)).astype(w_hwio.dtype)
            m = m + jnp.kron(ind, w_hwio[dy, dx])
        mats.append(m)
    return jnp.stack(mats)                      # (K, W*Cin, W*Cout)


def res_attention_block(x_nhwc, params, *, res_scale=1.0, batch_block=1):
    """x_nhwc: (B, H, W, C) float32.  Returns (B, H, W, C) float32."""
    b, h, w, c = x_nhwc.shape
    assert b % batch_block == 0, "batch_block must divide batch"
    wc = w * c
    cr = params["wd"].shape[1]

    # ---- wrapper-side, one-time parameter re-layouts (all lane-dense) ----
    m1 = _build_row_banded(params["w1"], w).astype(jnp.bfloat16)     # (3, W*C, W*C)
    m2 = _build_row_banded(params["w2"], w).astype(jnp.bfloat16)
    b1t = jnp.tile(params["b1"].astype(jnp.float32), (1, w))         # (1, W*C)
    b2t = jnp.tile(params["b2"].astype(jnp.float32), (1, w))
    wd_t = jnp.tile((params["wd"].T / (h * w)).astype(jnp.float32), (1, w))  # (Cr, W*C)
    bd_c = params["bd"].T.astype(jnp.float32)                        # (Cr, 1)
    wu_t = jnp.tile(params["wu"].astype(jnp.float32), (1, w))        # (Cr, W*C)
    bu_t = jnp.tile(params["bu"].astype(jnp.float32), (1, w))        # (1, W*C)

    # Lane-dense row view of the image: (B, H, W*C) -- free, contiguous reshape.
    x_rows = x_nhwc.reshape(b, h, wc)

    kernel = functools.partial(_res_attention_kernel, res_scale=res_scale,
                               bt=batch_block, h=h, wc=wc)

    const3 = lambda i: (0, 0, 0)
    const2 = lambda i: (0, 0)

    out_rows = pl.pallas_call(
        kernel,
        out_shape=jax.ShapeDtypeStruct((b, h, wc), jnp.float32),
        grid=(b // batch_block,),
        in_specs=[
            pl.BlockSpec((batch_block, h, wc), lambda i: (i, 0, 0)),  # x (lane-dense)
            pl.BlockSpec((KSIZE, wc, wc), const3),                    # banded W1 (bf16)
            pl.BlockSpec((1, wc), const2),                            # b1 (lane-tiled)
            pl.BlockSpec((KSIZE, wc, wc), const3),                    # banded W2 (bf16)
            pl.BlockSpec((1, wc), const2),                            # b2 (lane-tiled)
            pl.BlockSpec((cr, wc), const2),                           # Wd.T/(HW), tiled
            pl.BlockSpec((cr, 1), const2),                            # bd column
            pl.BlockSpec((cr, wc), const2),                           # Wu, tiled
            pl.BlockSpec((1, wc), const2),                            # bu, tiled
        ],
        out_specs=pl.BlockSpec((batch_block, h, wc), lambda i: (i, 0, 0)),
        scratch_shapes=[pltpu.VMEM((h + 2, wc), jnp.float32)],        # H-halo pad rows
        compiler_params=pltpu.CompilerParams(
            dimension_semantics=("parallel",)),                       # megacore sharding
    )(x_rows, m1, b1t, m2, b2t, wd_t, bd_c, wu_t, bu_t)

    return out_rows.reshape(b, h, w, c)


# --------------------------- pure-JAX reference ---------------------------

def _ref_forward(x_nhwc, params, res_scale=1.0):
    dn = ("NHWC", "HWIO", "NHWC")
    h1 = jax.lax.conv_general_dilated(x_nhwc, params["w1"], (1, 1), "SAME",
                                      dimension_numbers=dn) + params["b1"][0]
    h1 = jnp.maximum(h1, 0.0)
    h2 = jax.lax.conv_general_dilated(h1, params["w2"], (1, 1), "SAME",
                                      dimension_numbers=dn) + params["b2"][0]
    y = jnp.mean(h2, axis=(1, 2))                                   # (B, C)
    z = jnp.maximum(y @ params["wd"] + params["bd"][0], 0.0)
    s = jax.nn.sigmoid(z @ params["wu"] + params["bu"][0])          # (B, C)
    attended = h2 * s[:, None, None, :]
    return attended * res_scale + x_nhwc


# --------------------------------- main -----------------------------------

if __name__ == "__main__":
    B, C, Hsp, Wsp = 2, 32, 16, 16        # n_feats=32, reduction=16 -> Cr = 2
    Cr = C // 16
    res_scale = 1.0

    key = jax.random.PRNGKey(0)
    ks = jax.random.split(key, 10)

    # NCHW input (as the PyTorch module receives); go NHWC for the kernel.
    x_nchw = jax.random.normal(ks[0], (B, C, Hsp, Wsp), jnp.float32)
    x_nhwc = jnp.transpose(x_nchw, (0, 2, 3, 1))

    scale = 0.1
    params = {
        "w1": scale * jax.random.normal(ks[1], (KSIZE, KSIZE, C, C), jnp.float32),  # HWIO
        "b1": scale * jax.random.normal(ks[2], (1, C), jnp.float32),
        "w2": scale * jax.random.normal(ks[3], (KSIZE, KSIZE, C, C), jnp.float32),
        "b2": scale * jax.random.normal(ks[4], (1, C), jnp.float32),
        "wd": scale * jax.random.normal(ks[5], (C, Cr), jnp.float32),   # 1x1: C -> C//16
        "bd": scale * jax.random.normal(ks[6], (1, Cr), jnp.float32),
        "wu": scale * jax.random.normal(ks[7], (Cr, C), jnp.float32),   # 1x1: C//16 -> C
        "bu": scale * jax.random.normal(ks[8], (1, C), jnp.float32),
    }

    fwd = jax.jit(functools.partial(res_attention_block,
                                    res_scale=res_scale, batch_block=1))
    out = jax.block_until_ready(fwd(x_nhwc, params))

    ref = _ref_forward(x_nhwc, params, res_scale=res_scale)
    # bf16 MXU operands (f32 accumulation) loosen the tolerance vs. the pure-f32
    # reference; observed max abs error is ~1e-2 at these magnitudes.
    if not jnp.allclose(out, ref, atol=5e-2, rtol=5e-2):
        max_err = float(jnp.max(jnp.abs(out - ref)))
        raise AssertionError(f"Pallas kernel mismatch vs reference, max err {max_err}")

    print("KERNEL_OK")
</pallas_src>

<mosaic_0001>
module attributes {stable_mosaic.version = 11 : i64} {
  func.func @_res_attention_kernel(%arg0: i32, %arg1: memref<1x16x512xf32, #tpu.memory_space<vmem>>, %arg2: memref<3x512x512xbf16, #tpu.memory_space<vmem>>, %arg3: memref<1x512xf32, #tpu.memory_space<vmem>>, %arg4: memref<3x512x512xbf16, #tpu.memory_space<vmem>>, %arg5: memref<1x512xf32, #tpu.memory_space<vmem>>, %arg6: memref<2x512xf32, #tpu.memory_space<vmem>>, %arg7: memref<2x1xf32, #tpu.memory_space<vmem>>, %arg8: memref<2x512xf32, #tpu.memory_space<vmem>>, %arg9: memref<1x512xf32, #tpu.memory_space<vmem>>, %arg10: memref<1x16x512xf32, #tpu.memory_space<vmem>>, %arg11: memref<18x512xf32, #tpu.memory_space<vmem>>) attributes {dimension_semantics = [#tpu.dimension_semantics<parallel>], iteration_bounds = array<i64: 2>, scalar_prefetch = 0 : i64, scratch_operands = 1 : i64, tpu.core_type = #tpu.core_type<tc>, window_params = [{transform_indices = @transform_0, window_bounds = array<i64: 1, 16, 512>}, {pipeline_mode = #tpu.pipeline_mode<synchronous>, transform_indices = @transform_1, window_bounds = array<i64: 3, 512, 512>}, {pipeline_mode = #tpu.pipeline_mode<synchronous>, transform_indices = @transform_2, window_bounds = array<i64: 1, 512>}, {pipeline_mode = #tpu.pipeline_mode<synchronous>, transform_indices = @transform_3, window_bounds = array<i64: 3, 512, 512>}, {pipeline_mode = #tpu.pipeline_mode<synchronous>, transform_indices = @transform_4, window_bounds = array<i64: 1, 512>}, {pipeline_mode = #tpu.pipeline_mode<synchronous>, transform_indices = @transform_5, window_bounds = array<i64: 2, 512>}, {pipeline_mode = #tpu.pipeline_mode<synchronous>, transform_indices = @transform_6, window_bounds = array<i64: 2, 1>}, {pipeline_mode = #tpu.pipeline_mode<synchronous>, transform_indices = @transform_7, window_bounds = array<i64: 2, 512>}, {pipeline_mode = #tpu.pipeline_mode<synchronous>, transform_indices = @transform_8, window_bounds = array<i64: 1, 512>}, {transform_indices = @transform_9, window_bounds = array<i64: 1, 16, 512>}]} {
    %cst = arith.constant 0.000000e+00 : f32
    %0 = vector.broadcast %cst : f32 to vector<1x512xf32>
    %c0 = arith.constant 0 : index
    %c0_0 = arith.constant 0 : index
    %1 = vector.load %arg11[%c0, %c0_0] : memref<18x512xf32, #tpu.memory_space<vmem>>, vector<1x512xf32>
    tpu.vector_store %arg11[%c0, %c0_0], %0 {strides = array<i32>} : memref<18x512xf32, #tpu.memory_space<vmem>>, vector<1x512xf32>,
    %c17 = arith.constant 17 : index
    %c0_1 = arith.constant 0 : index
    %2 = vector.load %arg11[%c17, %c0_1] : memref<18x512xf32, #tpu.memory_space<vmem>>, vector<1x512xf32>
    tpu.vector_store %arg11[%c17, %c0_1], %0 {strides = array<i32>} : memref<18x512xf32, #tpu.memory_space<vmem>>, vector<1x512xf32>,
    %c0_2 = arith.constant 0 : index
    %c0_3 = arith.constant 0 : index
    %3 = vector.load %arg3[%c0_2, %c0_3] : memref<1x512xf32, #tpu.memory_space<vmem>>, vector<1x512xf32>
    %c0_4 = arith.constant 0 : index
    %c0_5 = arith.constant 0 : index
    %4 = vector.load %arg5[%c0_4, %c0_5] : memref<1x512xf32, #tpu.memory_space<vmem>>, vector<1x512xf32>
    %c0_6 = arith.constant 0 : index
    %c0_7 = arith.constant 0 : index
    %c0_8 = arith.constant 0 : index
    %5 = vector.load %arg1[%c0_6, %c0_7, %c0_8] : memref<1x16x512xf32, #tpu.memory_space<vmem>>, vector<1x16x512xf32>
    %6 = vector.shape_cast %5 : vector<1x16x512xf32> to vector<16x512xf32>
    %c1 = arith.constant 1 : index
    %c0_9 = arith.constant 0 : index
    %7 = vector.load %arg11[%c1, %c0_9] : memref<18x512xf32, #tpu.memory_space<vmem>>, vector<16x512xf32>
    tpu.vector_store %arg11[%c1, %c0_9], %6 {strides = array<i32>} : memref<18x512xf32, #tpu.memory_space<vmem>>, vector<16x512xf32>,
    %c0_10 = arith.constant 0 : index
    %c0_11 = arith.constant 0 : index
    %8 = vector.load %arg11[%c0_10, %c0_11] : memref<18x512xf32, #tpu.memory_space<vmem>>, vector<16x512xf32>
    %9 = arith.truncf %8 : vector<16x512xf32> to vector<16x512xbf16>
    %c0_12 = arith.constant 0 : index
    %c0_13 = arith.constant 0 : index
    %c0_14 = arith.constant 0 : index
    %10 = vector.load %arg2[%c0_12, %c0_13, %c0_14] : memref<3x512x512xbf16, #tpu.memory_space<vmem>>, vector<1x512x512xbf16>
    %11 = vector.shape_cast %10 : vector<1x512x512xbf16> to vector<512x512xbf16>
    %cst_15 = arith.constant dense<0.000000e+00> : vector<16x512xf32>
    %12 = tpu.matmul %9, %11, %cst_15 {dimension_numbers = #tpu.dot_dimension_numbers<[1], [0], [0], [1], [0, 0, 1, 1], [], []>} : vector<16x512xbf16>, vector<512x512xbf16>, vector<16x512xf32> -> vector<16x512xf32>
    %c1_16 = arith.constant 1 : index
    %c0_17 = arith.constant 0 : index
    %13 = vector.load %arg11[%c1_16, %c0_17] : memref<18x512xf32, #tpu.memory_space<vmem>>, vector<16x512xf32>
    %14 = arith.truncf %13 : vector<16x512xf32> to vector<16x512xbf16>
    %c1_18 = arith.constant 1 : index
    %c0_19 = arith.constant 0 : index
    %c0_20 = arith.constant 0 : index
    %15 = vector.load %arg2[%c1_18, %c0_19, %c0_20] : memref<3x512x512xbf16, #tpu.memory_space<vmem>>, vector<1x512x512xbf16>
    %16 = vector.shape_cast %15 : vector<1x512x512xbf16> to vector<512x512xbf16>
    %cst_21 = arith.constant dense<0.000000e+00> : vector<16x512xf32>
    %17 = tpu.matmul %14, %16, %cst_21 {dimension_numbers = #tpu.dot_dimension_numbers<[1], [0], [0], [1], [0, 0, 1, 1], [], []>} : vector<16x512xbf16>, vector<512x512xbf16>, vector<16x512xf32> -> vector<16x512xf32>
    %18 = arith.addf %12, %17 : vector<16x512xf32>
    %c2 = arith.constant 2 : index
    %c0_22 = arith.constant 0 : index
    %19 = vector.load %arg11[%c2, %c0_22] : memref<18x512xf32, #tpu.memory_space<vmem>>, vector<16x512xf32>
    %20 = arith.truncf %19 : vector<16x512xf32> to vector<16x512xbf16>
    %c2_23 = arith.constant 2 : index
    %c0_24 = arith.constant 0 : index
    %c0_25 = arith.constant 0 : index
    %21 = vector.load %arg2[%c2_23, %c0_24, %c0_25] : memref<3x512x512xbf16, #tpu.memory_space<vmem>>, vector<1x512x512xbf16>
    %22 = vector.shape_cast %21 : vector<1x512x512xbf16> to vector<512x512xbf16>
    %cst_26 = arith.constant dense<0.000000e+00> : vector<16x512xf32>
    %23 = tpu.matmul %20, %22, %cst_26 {dimension_numbers = #tpu.dot_dimension_numbers<[1], [0], [0], [1], [0, 0, 1, 1], [], []>} : vector<16x512xbf16>, vector<512x512xbf16>, vector<16x512xf32> -> vector<16x512xf32>
    %24 = arith.addf %18, %23 : vector<16x512xf32>
    %25 = vector.broadcast %3 : vector<1x512xf32> to vector<16x512xf32>
    %26 = arith.addf %24, %25 : vector<16x512xf32>
    %cst_27 = arith.constant 0.000000e+00 : f32
    %27 = vector.broadcast %cst_27 : f32 to vector<16x512xf32>
    %28 = arith.maximumf %26, %27 : vector<16x512xf32>
    %c1_28 = arith.constant 1 : index
    %c0_29 = arith.constant 0 : index
    %29 = vector.load %arg11[%c1_28, %c0_29] : memref<18x512xf32, #tpu.memory_space<vmem>>, vector<16x512xf32>
    tpu.vector_store %arg11[%c1_28, %c0_29], %28 {strides = array<i32>} : memref<18x512xf32, #tpu.memory_space<vmem>>, vector<16x512xf32>,
    %c0_30 = arith.constant 0 : index
    %c0_31 = arith.constant 0 : index
    %30 = vector.load %arg11[%c0_30, %c0_31] : memref<18x512xf32, #tpu.memory_space<vmem>>, vector<16x512xf32>
    %31 = arith.truncf %30 : vector<16x512xf32> to vector<16x512xbf16>
    %c0_32 = arith.constant 0 : index
    %c0_33 = arith.constant 0 : index
    %c0_34 = arith.constant 0 : index
    %32 = vector.load %arg4[%c0_32, %c0_33, %c0_34] : memref<3x512x512xbf16, #tpu.memory_space<vmem>>, vector<1x512x512xbf16>
    %33 = vector.shape_cast %32 : vector<1x512x512xbf16> to vector<512x512xbf16>
    %cst_35 = arith.constant dense<0.000000e+00> : vector<16x512xf32>
    %34 = tpu.matmul %31, %33, %cst_35 {dimension_numbers = #tpu.dot_dimension_numbers<[1], [0], [0], [1], [0, 0, 1, 1], [], []>} : vector<16x512xbf16>, vector<512x512xbf16>, vector<16x512xf32> -> vector<16x512xf32>
    %c1_36 = arith.constant 1 : index
    %c0_37 = arith.constant 0 : index
    %35 = vector.load %arg11[%c1_36, %c0_37] : memref<18x512xf32, #tpu.memory_space<vmem>>, vector<16x512xf32>
    %36 = arith.truncf %35 : vector<16x512xf32> to vector<16x512xbf16>
    %c1_38 = arith.constant 1 : index
    %c0_39 = arith.constant 0 : index
    %c0_40 = arith.constant 0 : index
    %37 = vector.load %arg4[%c1_38, %c0_39, %c0_40] : memref<3x512x512xbf16, #tpu.memory_space<vmem>>, vector<1x512x512xbf16>
    %38 = vector.shape_cast %37 : vector<1x512x512xbf16> to vector<512x512xbf16>
    %cst_41 = arith.constant dense<0.000000e+00> : vector<16x512xf32>
    %39 = tpu.matmul %36, %38, %cst_41 {dimension_numbers = #tpu.dot_dimension_numbers<[1], [0], [0], [1], [0, 0, 1, 1], [], []>} : vector<16x512xbf16>, vector<512x512xbf16>, vector<16x512xf32> -> vector<16x512xf32>
    %40 = arith.addf %34, %39 : vector<16x512xf32>
    %c2_42 = arith.constant 2 : index
    %c0_43 = arith.constant 0 : index
    %41 = vector.load %arg11[%c2_42, %c0_43] : memref<18x512xf32, #tpu.memory_space<vmem>>, vector<16x512xf32>
    %42 = arith.truncf %41 : vector<16x512xf32> to vector<16x512xbf16>
    %c2_44 = arith.constant 2 : index
    %c0_45 = arith.constant 0 : index
    %c0_46 = arith.constant 0 : index
    %43 = vector.load %arg4[%c2_44, %c0_45, %c0_46] : memref<3x512x512xbf16, #tpu.memory_space<vmem>>, vector<1x512x512xbf16>
    %44 = vector.shape_cast %43 : vector<1x512x512xbf16> to vector<512x512xbf16>
    %cst_47 = arith.constant dense<0.000000e+00> : vector<16x512xf32>
    %45 = tpu.matmul %42, %44, %cst_47 {dimension_numbers = #tpu.dot_dimension_numbers<[1], [0], [0], [1], [0, 0, 1, 1], [], []>} : vector<16x512xbf16>, vector<512x512xbf16>, vector<16x512xf32> -> vector<16x512xf32>
    %46 = arith.addf %40, %45 : vector<16x512xf32>
    %47 = vector.broadcast %4 : vector<1x512xf32> to vector<16x512xf32>
    %48 = arith.addf %46, %47 : vector<16x512xf32>
    %cst_48 = arith.constant dense<0.000000e+00> : vector<512xf32>
    %49 = vector.multi_reduction <add>, %48, %cst_48 [0] : vector<16x512xf32> to vector<512xf32>
    %50 = vector.shape_cast %49 : vector<512xf32> to vector<1x512xf32>
    %c0_49 = arith.constant 0 : index
    %c0_50 = arith.constant 0 : index
    %51 = vector.load %arg6[%c0_49, %c0_50] : memref<2x512xf32, #tpu.memory_space<vmem>>, vector<2x512xf32>
    %52 = vector.broadcast %50 : vector<1x512xf32> to vector<2x512xf32>
    %53 = arith.mulf %52, %51 : vector<2x512xf32>
    %cst_51 = arith.constant dense<0.000000e+00> : vector<2xf32>
    %54 = vector.multi_reduction <add>, %53, %cst_51 [1] : vector<2x512xf32> to vector<2xf32>
    %55 = vector.shape_cast %54 : vector<2xf32> to vector<2x1xf32>
    %c0_52 = arith.constant 0 : index
    %c0_53 = arith.constant 0 : index
    %56 = vector.load %arg7[%c0_52, %c0_53] : memref<2x1xf32, #tpu.memory_space<vmem>>, vector<2x1xf32>
    %57 = arith.addf %55, %56 : vector<2x1xf32>
    %cst_54 = arith.constant 0.000000e+00 : f32
    %58 = vector.broadcast %cst_54 : f32 to vector<2x1xf32>
    %59 = arith.maximumf %57, %58 : vector<2x1xf32>
    %c0_55 = arith.constant 0 : index
    %c0_56 = arith.constant 0 : index
    %60 = vector.load %arg8[%c0_55, %c0_56] : memref<2x512xf32, #tpu.memory_space<vmem>>, vector<2x512xf32>
    %61 = vector.broadcast %59 : vector<2x1xf32> to vector<2x512xf32>
    %62 = arith.mulf %61, %60 : vector<2x512xf32>
    %cst_57 = arith.constant dense<0.000000e+00> : vector<512xf32>
    %63 = vector.multi_reduction <add>, %62, %cst_57 [0] : vector<2x512xf32> to vector<512xf32>
    %64 = vector.shape_cast %63 : vector<512xf32> to vector<1x512xf32>
    %c0_58 = arith.constant 0 : index
    %c0_59 = arith.constant 0 : index
    %65 = vector.load %arg9[%c0_58, %c0_59] : memref<1x512xf32, #tpu.memory_space<vmem>>, vector<1x512xf32>
    %66 = arith.addf %64, %65 : vector<1x512xf32>
    %67 = arith.negf %66 : vector<1x512xf32>
    %68 = math.exp %67 : vector<1x512xf32>
    %cst_60 = arith.constant 1.000000e+00 : f32
    %69 = vector.broadcast %cst_60 : f32 to vector<1x512xf32>
    %70 = arith.addf %69, %68 : vector<1x512xf32>
    %71 = arith.divf %69, %70 : vector<1x512xf32>
    %72 = vector.broadcast %71 : vector<1x512xf32> to vector<16x512xf32>
    %73 = arith.mulf %48, %72 : vector<16x512xf32>
    %cst_61 = arith.constant 1.000000e+00 : f32
    %74 = vector.broadcast %cst_61 : f32 to vector<16x512xf32>
    %75 = arith.mulf %73, %74 : vector<16x512xf32>
    %76 = arith.addf %75, %6 : vector<16x512xf32>
    %c0_62 = arith.constant 0 : index
    %c0_63 = arith.constant 0 : index
    %c0_64 = arith.constant 0 : index
    %77 = vector.load %arg10[%c0_62, %c0_63, %c0_64] : memref<1x16x512xf32, #tpu.memory_space<vmem>>, vector<1x16x512xf32>
    %78 = vector.shape_cast %77 : vector<1x16x512xf32> to vector<16x512xf32>
    %79 = vector.shape_cast %76 : vector<16x512xf32> to vector<1x16x512xf32>
    tpu.vector_store %arg10[%c0_62, %c0_63, %c0_64], %79 {strides = array<i32>} : memref<1x16x512xf32, #tpu.memory_space<vmem>>, vector<1x16x512xf32>,
    return
  }
  func.func @transform_0(%arg0: i32) -> (i32, i32, i32) {
    %c0_i32 = arith.constant 0 : i32
    %c0_i32_0 = arith.constant 0 : i32
    %c0_i32_1 = arith.constant 0 : i32
    return %arg0, %c0_i32, %c0_i32_0 : i32, i32, i32
  }
  func.func @transform_1(%arg0: i32) -> (i32, i32, i32) {
    %c0_i32 = arith.constant 0 : i32
    %c0_i32_0 = arith.constant 0 : i32
    %c0_i32_1 = arith.constant 0 : i32
    %c0_i32_2 = arith.constant 0 : i32
    return %c0_i32, %c0_i32_0, %c0_i32_1 : i32, i32, i32
  }
  func.func @transform_2(%arg0: i32) -> (i32, i32) {
    %c0_i32 = arith.constant 0 : i32
    %c0_i32_0 = arith.constant 0 : i32
    %c0_i32_1 = arith.constant 0 : i32
    return %c0_i32, %c0_i32_0 : i32, i32
  }
  func.func @transform_3(%arg0: i32) -> (i32, i32, i32) {
    %c0_i32 = arith.constant 0 : i32
    %c0_i32_0 = arith.constant 0 : i32
    %c0_i32_1 = arith.constant 0 : i32
    %c0_i32_2 = arith.constant 0 : i32
    return %c0_i32, %c0_i32_0, %c0_i32_1 : i32, i32, i32
  }
  func.func @transform_4(%arg0: i32) -> (i32, i32) {
    %c0_i32 = arith.constant 0 : i32
    %c0_i32_0 = arith.constant 0 : i32
    %c0_i32_1 = arith.constant 0 : i32
    return %c0_i32, %c0_i32_0 : i32, i32
  }
  func.func @transform_5(%arg0: i32) -> (i32, i32) {
    %c0_i32 = arith.constant 0 : i32
    %c0_i32_0 = arith.constant 0 : i32
    %c0_i32_1 = arith.constant 0 : i32
    return %c0_i32, %c0_i32_0 : i32, i32
  }
  func.func @transform_6(%arg0: i32) -> (i32, i32) {
    %c0_i32 = arith.constant 0 : i32
    %c0_i32_0 = arith.constant 0 : i32
    %c0_i32_1 = arith.constant 0 : i32
    return %c0_i32, %c0_i32_0 : i32, i32
  }
  func.func @transform_7(%arg0: i32) -> (i32, i32) {
    %c0_i32 = arith.constant 0 : i32
    %c0_i32_0 = arith.constant 0 : i32
    %c0_i32_1 = arith.constant 0 : i32
    return %c0_i32, %c0_i32_0 : i32, i32
  }
  func.func @transform_8(%arg0: i32) -> (i32, i32) {
    %c0_i32 = arith.constant 0 : i32
    %c0_i32_0 = arith.constant 0 : i32
    %c0_i32_1 = arith.constant 0 : i32
    return %c0_i32, %c0_i32_0 : i32, i32
  }
  func.func @transform_9(%arg0: i32) -> (i32, i32, i32) {
    %c0_i32 = arith.constant 0 : i32
    %c0_i32_0 = arith.constant 0 : i32
    %c0_i32_1 = arith.constant 0 : i32
    return %arg0, %c0_i32, %c0_i32_0 : i32, i32, i32
  }
}

</mosaic_0001>

<llo_original>
// kernel: tile.39
$region0: #{tile.39}
  %s0 = inlined_call_operand.vmem [shape: f32[2,16,32], index: 0, kind: input, shape index: {}]
  %s1 = inlined_call_operand.vmem [shape: f32[2,512], index: 1, kind: output, shape index: {}]
  $region1: #{tile.39} parent=0
    #allocation0 [shape = 'u8[16384]{0}', space=vmem, size = 0x4000, scoped, tag = 'scoped mem for output reshape']
    %v2 = vld [vmem:[%s0] ss:$4 sm:$0xff]
    %vm3 = vcmask 261120
    %4 = vst.msk [vmem:[#allocation0] ss:$8 sm:$0xf] %vm3, %v2
    %s5 = scalar_lea.vmem [#allocation0], 4294967265
    %6 = vst.msk [vmem:[%s5] ss:$8 sm:$0xf0] %vm3, %v2
    %s7 = scalar_lea.vmem %s0, 3
    %s8 = smov 3
    %v9 = vld [vmem:[%s7] ss:$16 sm:%s8]
    %s10 = scalar_lea.vmem %s0, 4294967271
    %s11 = smov 12
    %v12 = vld [vmem:[%s10] ss:$16 sm:%s11]
    %vm13 = vcmask 1043458
    %v14 = vsel %vm13, %v12, %v9
    %s15 = scalar_lea.vmem %s0, 4294967243
    %s16 = smov 48
    %v17 = vld [vmem:[%s15] ss:$16 sm:%s16]
    %vm18 = vcmask 1045508
    %v19 = vsel %vm18, %v17, %v14
    %s20 = scalar_lea.vmem %s0, 4294967215
    %s21 = smov 192
    %v22 = vld [vmem:[%s20] ss:$16 sm:%s21]
    %vm23 = vcmask 1047558
    %v24 = vsel %vm23, %v22, %v19
    %25 = vrot.lane.b32.xlu0 %v24, 96
    %v26 = vpop.permute.xlu0 %25
    %vm27 = vcmask 1048320
    %28 = vst.msk [vmem:[#allocation0] sm:$0x3] %vm27, %v26
    %s29 = scalar_lea.vmem [#allocation0], 6
    %30 = vst.msk [vmem:[%s29] sm:$0xc] %vm27, %v26
    %s31 = scalar_lea.vmem [#allocation0], 12
    %32 = vst.msk [vmem:[%s31] sm:$0x30] %vm27, %v26
    %s33 = scalar_lea.vmem [#allocation0], 18
    %34 = vst.msk [vmem:[%s33] sm:$0xc0] %vm27, %v26
    %s35 = scalar_lea.vmem %s0, 2
    %s36 = smov 3
    %v37 = vld [vmem:[%s35] ss:$16 sm:%s36]
    %s38 = scalar_lea.vmem %s0, 4294967270
    %s39 = smov 12
    %v40 = vld [vmem:[%s38] ss:$16 sm:%s39]
    %vm41 = vcmask 1043458
    %v42 = vsel %vm41, %v40, %v37
    %s43 = scalar_lea.vmem %s0, 4294967242
    %s44 = smov 48
    %v45 = vld [vmem:[%s43] ss:$16 sm:%s44]
    %vm46 = vcmask 1045508
    %v47 = vsel %vm46, %v45, %v42
    %s48 = scalar_lea.vmem %s0, 4294967214
    %s49 = smov 192
    %v50 = vld [vmem:[%s48] ss:$16 sm:%s49]
    %vm51 = vcmask 1047558
    %v52 = vsel %vm51, %v50, %v47
    %53 = vrot.lane.b32.xlu0 %v52, 64
    %v54 = vpop.permute.xlu0 %53
    %vm55 = vcmask 785920
    %56 = vst.msk [vmem:[#allocation0] sm:$0x3] %vm55, %v54
    %s57 = scalar_lea.vmem [#allocation0], 6
    %58 = vst.msk [vmem:[%s57] sm:$0xc] %vm55, %v54
    %s59 = scalar_lea.vmem [#allocation0], 12
    %60 = vst.msk [vmem:[%s59] sm:$0x30] %vm55, %v54
    %s61 = scalar_lea.vmem [#allocation0], 18
    %62 = vst.msk [vmem:[%s61] sm:$0xc0] %vm55, %v54
    %s63 = scalar_lea.vmem %s0, 1
    %s64 = smov 3
    %v65 = vld [vmem:[%s63] ss:$16 sm:%s64]
    %s66 = scalar_lea.vmem %s0, 4294967269
    %s67 = smov 12
    %v68 = vld [vmem:[%s66] ss:$16 sm:%s67]
    %vm69 = vcmask 1043458
    %v70 = vsel %vm69, %v68, %v65
    %s71 = scalar_lea.vmem %s0, 4294967241
    %s72 = smov 48
    %v73 = vld [vmem:[%s71] ss:$16 sm:%s72]
    %vm74 = vcmask 1045508
    %v75 = vsel %vm74, %v73, %v70
    %s76 = scalar_lea.vmem %s0, 4294967213
    %s77 = smov 192
    %v78 = vld [vmem:[%s76] ss:$16 sm:%s77]
    %vm79 = vcmask 1047558
    %v80 = vsel %vm79, %v78, %v75
    %81 = vrot.lane.b32.xlu0 %v80, 32
    %v82 = vpop.permute.xlu0 %81
    %vm83 = vcmask 523520
    %84 = vst.msk [vmem:[#allocation0] sm:$0x3] %vm83, %v82
    %s85 = scalar_lea.vmem [#allocation0], 6
    %86 = vst.msk [vmem:[%s85] sm:$0xc] %vm83, %v82
    %s87 = scalar_lea.vmem [#allocation0], 12
    %88 = vst.msk [vmem:[%s87] sm:$0x30] %vm83, %v82
    %s89 = scalar_lea.vmem [#allocation0], 18
    %90 = vst.msk [vmem:[%s89] sm:$0xc0] %vm83, %v82
    %s92 = sshllo.u32 0, 2
    %v94 = vld [vmem:[#allocation0] sm:%s92]
    %s95 = sshllo.u32 0, 2
    %96 = vst [vmem:[%s1] sm:%s95] %v94
    %s97 = scalar_lea.vmem [#allocation0], 8
    %v98 = vld [vmem:[%s97] sm:%s92]
    %s99 = sshllo.u32 0, 2
    %s100 = scalar_lea.vmem %s1, 2
    %101 = vst [vmem:[%s100] sm:%s99] %v98
    %s102 = scalar_lea.vmem [#allocation0], 16
    %v103 = vld [vmem:[%s102] sm:%s92]
    %s104 = sshllo.u32 0, 2
    %s105 = smul.addr 2, 2
    %s106 = scalar_lea.vmem %s1, %s105
    %107 = vst [vmem:[%s106] sm:%s104] %v103
    %s108 = scalar_lea.vmem [#allocation0], 24
    %v109 = vld [vmem:[%s108] sm:%s92]
    %s110 = sshllo.u32 0, 2
    %s111 = smul.addr 2, 3
    %s112 = scalar_lea.vmem %s1, %s111
    %113 = vst [vmem:[%s112] sm:%s110] %v109

// kernel: res_attention_block.1
$region0: #{res_attention_block.1}
  #allocation0 [shape = 'u32[]', space=smem, size = 0x4, offset = 0x4, fixed_abs, tag = 'smem constant byte address 0x4 - core index']
  #allocation1 [shape = 'u32[144,128]{1,0:T(1,128)}', space=vmem, size = 0x12000, scoped, tag = 'internal scratch']
  #allocation2 [shape = 'f32[18,512]{1,0:T(8,128)}', space=vmem, size = 0xc000, scoped, tag = 'scratch operand']
  %s0 = inlined_call_operand.vmem [shape: f32[2,16,512], index: 0, kind: input, shape index: {}]
  %s1 = inlined_call_operand.vmem [shape: bf16[3,512,512], index: 1, kind: input, shape index: {}]
  %s2 = inlined_call_operand.vmem [shape: f32[1,512], index: 2, kind: input, shape index: {}]
  %s3 = inlined_call_operand.vmem [shape: bf16[3,512,512], index: 3, kind: input, shape index: {}]
  %s4 = inlined_call_operand.vmem [shape: f32[1,512], index: 4, kind: input, shape index: {}]
  %s5 = inlined_call_operand.vmem [shape: f32[2,512], index: 5, kind: input, shape index: {}]
  %s6 = inlined_call_operand.vmem [shape: f32[2,1], index: 6, kind: input, shape index: {}]
  %s7 = inlined_call_operand.vmem [shape: f32[2,512], index: 7, kind: input, shape index: {}]
  %s8 = inlined_call_operand.vmem [shape: f32[1,512], index: 8, kind: input, shape index: {}]
  %s9 = inlined_call_operand.vmem [shape: f32[2,16,512], index: 9, kind: output, shape index: {}]
  %s10 = sld [smem:[#allocation0]]
  $region69: #{res_attention_block.1} parent=0
    _
  %s12 = ssub.s32 1, %s10
  %s13 = scalar_select 0, %s12, %s10
  loop: start=0, step=1, limit=4
  $region2: #{res_attention_block.1} parent=0 // loop_pre_header
    _
  $region3: #{res_attention_block.1} parent=0 // loop_header
    %s15 = sphi 0, %s19
    %p16 = scmp.ge.s32.totalorder %s15, 4
    %s25 = sphi 0, %s27
    %s28 = sphi 0, %s25
    %s29 = sphi 0, %s28
    %s45 = sphi 0, %s29
    %s49 = sphi 0, %s49
    %s51 = sphi 0, %s49
    %s52 = sphi 0, %s51
    %s66 = sphi 0, %s52
    %s70 = sphi 0, %s70
    %s72 = sphi 0, %s70
    %s73 = sphi 0, %s72
    %s87 = sphi 0, %s73
    %s91 = sphi 0, %s91
    %s93 = sphi 0, %s91
    %s94 = sphi 0, %s93
    %s108 = sphi 0, %s94
    %s112 = sphi 0, %s112
    %s114 = sphi 0, %s112
    %s115 = sphi 0, %s114
    %s129 = sphi 0, %s115
    %s133 = sphi 0, %s133
    %s135 = sphi 0, %s133
    %s136 = sphi 0, %s135
    %s150 = sphi 0, %s136
    %s154 = sphi 0, %s154
    %s156 = sphi 0, %s154
    %s157 = sphi 0, %s156
    %s171 = sphi 0, %s157
    %s175 = sphi 0, %s175
    %s177 = sphi 0, %s175
    %s178 = sphi 0, %s177
    %s192 = sphi 0, %s178
    %s196 = sphi 0, %s196
    %s198 = sphi 0, %s196
    %s199 = sphi 0, %s198
    %s213 = sphi 0, %s199
    %s219 = sphi 0, %s221
    %s222 = sphi 0, %s219
    %s223 = sphi 0, %s222
    %s239 = sphi 0, %s223
  $region4: #{res_attention_block.1} parent=0 // loop_header_branch
    %18 = sbr.rel (%p16) target = $region8
  $region5: #{res_attention_block.1} parent=0 // loop_body
    %s20 = ssub.s32 %s15, 1
    %s21 = ssub.s32 %s15, 2
    %s22 = sadd.s32 %s15, 1
    %s23 = ssub.s32 %s15, %s22
    %p24 = scmp.eq.s32.totalorder %s23, 0
    %s26 = sadd.s32 %s25, 1
    %s27 = scalar_select %p24, %s25, %s26
    %p30 = pneg %p24
    %p31 = scmp.eq.s32.totalorder %s15, 1
    %p32 = por %p30, %p31
    %p33 = scmp.ne.s32.totalorder %s25, %s28
    %p34 = scmp.eq.s32.totalorder %s15, 0
    %p35 = por %p33, %p34
    %p36 = scmp.ne.s32.totalorder %s25, %s28
    %p37 = scmp.eq.s32.totalorder %s20, 1
    %p38 = por %p36, %p37
    %p39 = scmp.ne.s32.totalorder %s28, %s29
    %p40 = scmp.eq.s32.totalorder %s20, 0
    %p41 = por %p39, %p40
    %p42 = scmp.ne.s32.totalorder %s28, %s29
    %p43 = scmp.eq.s32.totalorder %s21, 1
    %p44 = por %p42, %p43
    %p46 = scmp.ne.s32.totalorder %s29, %s45
    %p47 = scmp.eq.s32.totalorder %s21, 0
    %p48 = por %p46, %p47
    %s50 = sadd.s32 %s49, 1
    %p53 = scmp.eq.s32.totalorder %s15, 1
    %p54 = scmp.ne.s32.totalorder %s49, %s51
    %p55 = scmp.eq.s32.totalorder %s15, 0
    %p56 = por %p54, %p55
    %p57 = scmp.ne.s32.totalorder %s49, %s51
    %p58 = scmp.eq.s32.totalorder %s20, 1
    %p59 = por %p57, %p58
    %p60 = scmp.ne.s32.totalorder %s51, %s52
    %p61 = scmp.eq.s32.totalorder %s20, 0
    %p62 = por %p60, %p61
    %p63 = scmp.ne.s32.totalorder %s51, %s52
    %p64 = scmp.eq.s32.totalorder %s21, 1
    %p65 = por %p63, %p64
    %p67 = scmp.ne.s32.totalorder %s52, %s66
    %p68 = scmp.eq.s32.totalorder %s21, 0
    %p69 = por %p67, %p68
    %s71 = sadd.s32 %s70, 1
    %p74 = scmp.eq.s32.totalorder %s15, 1
    %p75 = scmp.ne.s32.totalorder %s70, %s72
    %p76 = scmp.eq.s32.totalorder %s15, 0
    %p77 = por %p75, %p76
    %p78 = scmp.ne.s32.totalorder %s70, %s72
    %p79 = scmp.eq.s32.totalorder %s20, 1
    %p80 = por %p78, %p79
    %p81 = scmp.ne.s32.totalorder %s72, %s73
    %p82 = scmp.eq.s32.totalorder %s20, 0
    %p83 = por %p81, %p82
    %p84 = scmp.ne.s32.totalorder %s72, %s73
    %p85 = scmp.eq.s32.totalorder %s21, 1
    %p86 = por %p84, %p85
    %p88 = scmp.ne.s32.totalorder %s73, %s87
    %p89 = scmp.eq.s32.totalorder %s21, 0
    %p90 = por %p88, %p89
    %s92 = sadd.s32 %s91, 1
    %p95 = scmp.eq.s32.totalorder %s15, 1
    %p96 = scmp.ne.s32.totalorder %s91, %s93
    %p97 = scmp.eq.s32.totalorder %s15, 0
    %p98 = por %p96, %p97
    %p99 = scmp.ne.s32.totalorder %s91, %s93
    %p100 = scmp.eq.s32.totalorder %s20, 1
    %p101 = por %p99, %p100
    %p102 = scmp.ne.s32.totalorder %s93, %s94
    %p103 = scmp.eq.s32.totalorder %s20, 0
    %p104 = por %p102, %p103
    %p105 = scmp.ne.s32.totalorder %s93, %s94
    %p106 = scmp.eq.s32.totalorder %s21, 1
    %p107 = por %p105, %p106
    %p109 = scmp.ne.s32.totalorder %s94, %s108
    %p110 = scmp.eq.s32.totalorder %s21, 0
    %p111 = por %p109, %p110
    %s113 = sadd.s32 %s112, 1
    %p116 = scmp.eq.s32.totalorder %s15, 1
    %p117 = scmp.ne.s32.totalorder %s112, %s114
    %p118 = scmp.eq.s32.totalorder %s15, 0
    %p119 = por %p117, %p118
    %p120 = scmp.ne.s32.totalorder %s112, %s114
    %p121 = scmp.eq.s32.totalorder %s20, 1
    %p122 = por %p120, %p121
    %p123 = scmp.ne.s32.totalorder %s114, %s115
    %p124 = scmp.eq.s32.totalorder %s20, 0
    %p125 = por %p123, %p124
    %p126 = scmp.ne.s32.totalorder %s114, %s115
    %p127 = scmp.eq.s32.totalorder %s21, 1
    %p128 = por %p126, %p127
    %p130 = scmp.ne.s32.totalorder %s115, %s129
    %p131 = scmp.eq.s32.totalorder %s21, 0
    %p132 = por %p130, %p131
    %s134 = sadd.s32 %s133, 1
    %p137 = scmp.eq.s32.totalorder %s15, 1
    %p138 = scmp.ne.s32.totalorder %s133, %s135
    %p139 = scmp.eq.s32.totalorder %s15, 0
    %p140 = por %p138, %p139
    %p141 = scmp.ne.s32.totalorder %s133, %s135
    %p142 = scmp.eq.s32.totalorder %s20, 1
    %p143 = por %p141, %p142
    %p144 = scmp.ne.s32.totalorder %s135, %s136
    %p145 = scmp.eq.s32.totalorder %s20, 0
    %p146 = por %p144, %p145
    %p147 = scmp.ne.s32.totalorder %s135, %s136
    %p148 = scmp.eq.s32.totalorder %s21, 1
    %p149 = por %p147, %p148
    %p151 = scmp.ne.s32.totalorder %s136, %s150
    %p152 = scmp.eq.s32.totalorder %s21, 0
    %p153 = por %p151, %p152
    %s155 = sadd.s32 %s154, 1
    %p158 = scmp.eq.s32.totalorder %s15, 1
    %p159 = scmp.ne.s32.totalorder %s154, %s156
    %p160 = scmp.eq.s32.totalorder %s15, 0
    %p161 = por %p159, %p160
    %p162 = scmp.ne.s32.totalorder %s154, %s156
    %p163 = scmp.eq.s32.totalorder %s20, 1
    %p164 = por %p162, %p163
    %p165 = scmp.ne.s32.totalorder %s156, %s157
    %p166 = scmp.eq.s32.totalorder %s20, 0
    %p167 = por %p165, %p166
    %p168 = scmp.ne.s32.totalorder %s156, %s157
    %p169 = scmp.eq.s32.totalorder %s21, 1
    %p170 = por %p168, %p169
    %p172 = scmp.ne.s32.totalorder %s157, %s171
    %p173 = scmp.eq.s32.totalorder %s21, 0
    %p174 = por %p172, %p173
    %s176 = sadd.s32 %s175, 1
    %p179 = scmp.eq.s32.totalorder %s15, 1
    %p180 = scmp.ne.s32.totalorder %s175, %s177
    %p181 = scmp.eq.s32.totalorder %s15, 0
    %p182 = por %p180, %p181
    %p183 = scmp.ne.s32.totalorder %s175, %s177
    %p184 = scmp.eq.s32.totalorder %s20, 1
    %p185 = por %p183, %p184
    %p186 = scmp.ne.s32.totalorder %s177, %s178
    %p187 = scmp.eq.s32.totalorder %s20, 0
    %p188 = por %p186, %p187
    %p189 = scmp.ne.s32.totalorder %s177, %s178
    %p190 = scmp.eq.s32.totalorder %s21, 1
    %p191 = por %p189, %p190
    %p193 = scmp.ne.s32.totalorder %s178, %s192
    %p194 = scmp.eq.s32.totalorder %s21, 0
    %p195 = por %p193, %p194
    %s197 = sadd.s32 %s196, 1
    %p200 = scmp.eq.s32.totalorder %s15, 1
    %p201 = scmp.ne.s32.totalorder %s196, %s198
    %p202 = scmp.eq.s32.totalorder %s15, 0
    %p203 = por %p201, %p202
    %p204 = scmp.ne.s32.totalorder %s196, %s198
    %p205 = scmp.eq.s32.totalorder %s20, 1
    %p206 = por %p204, %p205
    %p207 = scmp.ne.s32.totalorder %s198, %s199
    %p208 = scmp.eq.s32.totalorder %s20, 0
    %p209 = por %p207, %p208
    %p210 = scmp.ne.s32.totalorder %s198, %s199
    %p211 = scmp.eq.s32.totalorder %s21, 1
    %p212 = por %p210, %p211
    %p214 = scmp.ne.s32.totalorder %s199, %s213
    %p215 = scmp.eq.s32.totalorder %s21, 0
    %p216 = por %p214, %p215
    %s217 = ssub.s32 %s15, %s22
    %p218 = scmp.eq.s32.totalorder %s217, 0
    %s220 = sadd.s32 %s219, 1
    %s221 = scalar_select %p218, %s219, %s220
    %p224 = pneg %p218
    %p225 = scmp.eq.s32.totalorder %s15, 1
    %p226 = por %p224, %p225
    %p227 = scmp.ne.s32.totalorder %s219, %s222
    %p228 = scmp.eq.s32.totalorder %s15, 0
    %p229 = por %p227, %p228
    %p230 = scmp.ne.s32.totalorder %s219, %s222
    %p231 = scmp.eq.s32.totalorder %s20, 1
    %p232 = por %p230, %p231
    %p233 = scmp.ne.s32.totalorder %s222, %s223
    %p234 = scmp.eq.s32.totalorder %s20, 0
    %p235 = por %p233, %p234
    %p236 = scmp.ne.s32.totalorder %s222, %s223
    %p237 = scmp.eq.s32.totalorder %s21, 1
    %p238 = por %p236, %p237
    %p240 = scmp.ne.s32.totalorder %s223, %s239
    %p241 = scmp.eq.s32.totalorder %s21, 0
    %p242 = por %p240, %p241
    %p243 = scmp.le.s32.totalorder 1, %s15
    %p244 = scmp.lt.s32.totalorder %s15, 3
    %p245 = pnand %p243, %p244
    %p246 = pneg %p245
    // Predicated region
    $region9: #{res_attention_block.1} parent=5 // pred_check
      _
    $region10: #{res_attention_block.1} parent=5 // pred_check_branch
      %248 = sbr.rel (%p245) target = $region12
    $region11: #{res_attention_block.1} parent=5 // pred_region
      %s249 = ssub.s32 %s15, 1
      // Predicated region
      $region13: #{res_attention_block.1} parent=11 // pred_check
        %p250 = pneg %p62
      $region14: #{res_attention_block.1} parent=11 // pred_check_branch
        %252 = sbr.rel (%p250) target = $region16
      $region15: #{res_attention_block.1} parent=11 // pred_region
        _
      $region16: #{res_attention_block.1} parent=11 // pred_fallthru
        _
      // Predicated region
      $region17: #{res_attention_block.1} parent=11 // pred_check
        %p253 = pneg %p83
      $region18: #{res_attention_block.1} parent=11 // pred_check_branch
        %255 = sbr.rel (%p253) target = $region20
      $region19: #{res_attention_block.1} parent=11 // pred_region
        _
      $region20: #{res_attention_block.1} parent=11 // pred_fallthru
        _
      // Predicated region
      $region21: #{res_attention_block.1} parent=11 // pred_check
        %p256 = pneg %p104
      $region22: #{res_attention_block.1} parent=11 // pred_check_branch
        %258 = sbr.rel (%p256) target = $region24
      $region23: #{res_attention_block.1} parent=11 // pred_region
        _
      $region24: #{res_attention_block.1} parent=11 // pred_fallthru
        _
      // Predicated region
      $region25: #{res_attention_block.1} parent=11 // pred_check
        %p259 = pneg %p125
      $region26: #{res_attention_block.1} parent=11 // pred_check_branch
        %261 = sbr.rel (%p259) target = $region28
      $region27: #{res_attention_block.1} parent=11 // pred_region
        _
      $region28: #{res_attention_block.1} parent=11 // pred_fallthru
        _
      // Predicated region
      $region29: #{res_attention_block.1} parent=11 // pred_check
        %p262 = pneg %p146
      $region30: #{res_attention_block.1} parent=11 // pred_check_branch
        %264 = sbr.rel (%p262) target = $region32
      $region31: #{res_attention_block.1} parent=11 // pred_region
        _
      $region32: #{res_attention_block.1} parent=11 // pred_fallthru
        _
      // Predicated region
      $region33: #{res_attention_block.1} parent=11 // pred_check
        %p265 = pneg %p167
      $region34: #{res_attention_block.1} parent=11 // pred_check_branch
        %267 = sbr.rel (%p265) target = $region36
      $region35: #{res_attention_block.1} parent=11 // pred_region
        _
      $region36: #{res_attention_block.1} parent=11 // pred_fallthru
        _
      // Predicated region
      $region37: #{res_attention_block.1} parent=11 // pred_check
        %p268 = pneg %p188
      $region38: #{res_attention_block.1} parent=11 // pred_check_branch
        %270 = sbr.rel (%p268) target = $region40
      $region39: #{res_attention_block.1} parent=11 // pred_region
        _
      $region40: #{res_attention_block.1} parent=11 // pred_fallthru
        _
      // Predicated region
      $region41: #{res_attention_block.1} parent=11 // pred_check
        %p271 = pneg %p209
      $region42: #{res_attention_block.1} parent=11 // pred_check_branch
        %273 = sbr.rel (%p271) target = $region44
      $region43: #{res_attention_block.1} parent=11 // pred_region
        _
      $region44: #{res_attention_block.1} parent=11 // pred_fallthru
        _
    $region12: #{res_attention_block.1} parent=5 // pred_fallthru
      _
    %p274 = scmp.lt.s32.totalorder %s15, 2
    // Predicated region
    $region45: #{res_attention_block.1} parent=5 // pred_check
      %p275 = pneg %p274
    $region46: #{res_attention_block.1} parent=5 // pred_check_branch
      %277 = sbr.rel (%p275) target = $region48
    $region47: #{res_attention_block.1} parent=5 // pred_region
      // Predicated region
      $region49: #{res_attention_block.1} parent=47 // pred_check
        %p278 = pneg %p35
      $region50: #{res_attention_block.1} parent=47 // pred_check_branch
        %280 = sbr.rel (%p278) target = $region52
      $region51: #{res_attention_block.1} parent=47 // pred_region
        %p281 = scmp.lt.s32.totalorder %s15, 1
        %s282 = scalar_select %p281, %s15, 1
        %s283 = smul.addr %s282, 8
        %s284 = smul.addr %s283, 8
        %s285 = scalar_lea.vmem %s0, %s284
      $region52: #{res_attention_block.1} parent=47 // pred_fallthru
        _
    $region48: #{res_attention_block.1} parent=5 // pred_fallthru
      _
    %p286 = scmp.le.s32.totalorder 1, %s15
    %p287 = scmp.lt.s32.totalorder %s15, 3
    %p288 = pnand %p286, %p287
    %p289 = pneg %p288
    // Predicated region
    $region53: #{res_attention_block.1} parent=5 // pred_check
      _
    $region54: #{res_attention_block.1} parent=5 // pred_check_branch
      %291 = sbr.rel (%p288) target = $region56
    $region55: #{res_attention_block.1} parent=5 // pred_region
      %s292 = ssub.s32 %s15, 1
      %p293 = scmp.lt.s32.totalorder %s20, 1
      %s294 = scalar_select %p293, %s20, 1
      %s295 = smul.addr %s294, 8
      %s296 = smul.addr %s295, 8
      %s297 = scalar_lea.vmem %s0, %s296
      %p298 = pneg %p41
      %p299 = pneg %p38
      %p300 = pneg %p62
      %p301 = pneg %p59
      %p302 = pneg %p83
      %p303 = pneg %p80
      %p304 = pneg %p104
      %p305 = pneg %p101
      %p306 = pneg %p125
      %p307 = pneg %p122
      %p308 = pneg %p146
      %p309 = pneg %p143
      %p310 = pneg %p167
      %p311 = pneg %p164
      %p312 = pneg %p188
      %p313 = pneg %p185
      %p314 = pneg %p209
      %p315 = pneg %p206
      %p316 = pneg %p235
      %p317 = pneg %p232
      %p318 = scmp.lt.s32.totalorder %s20, 1
      %s319 = scalar_select %p318, %s20, 1
      %s320 = smul.addr %s319, 8
      %s321 = smul.addr %s320, 8
      %s322 = scalar_lea.vmem %s9, %s321
      %p323 = scmp.lt.s32.totalorder %s20, 1
      %s324 = scalar_select %p323, %s20, 1
      %s325 = smul.addr %s324, 8
      %s326 = smul.addr %s325, 8
      %s327 = scalar_lea.vmem %s0, %s326
      %p328 = scmp.lt.s32.totalorder %s20, 1
      %s329 = scalar_select %p328, %s20, 1
      %s330 = smul.addr %s329, 8
      %s331 = smul.addr %s330, 8
      %s332 = scalar_lea.vmem %s9, %s331
      %v333 = vlaneseq
      %vm334 = vcmp.ge.s32.totalorder %v333, 0
      %vm335 = vcmp.lt.s32.totalorder %v333, 512
      %vm336 = vmand %vm334, %vm335
      %337 = vst.msk [vmem:[#allocation2] ss:$8 sm:$0xf] %vm336, 0.0
      %338 = vst.msk [vmem:[#allocation2] ss:$8 sm:$0x0] %vm336, 0.0
      %s339 = scalar_lea.vmem [#allocation2], 65
      %340 = vst.msk [vmem:[%s339] ss:$8 sm:$0xf] %vm336, 0.0
      %341 = vst.msk [vmem:[%s339] ss:$8 sm:$0x0] %vm336, 0.0
      %v342 = vld [vmem:[%s2] sm:$0xf]
      %v343 = vld [vmem:[%s4] sm:$0xf]
      %v344 = vld [vmem:[%s327] sm:$0xff]
      %v345 = vld [vmem:[%s327 + $0x8] sm:$0xff]
      %v346 = vld [vmem:[%s327 + $0x10] sm:$0xff]
      %v347 = vld [vmem:[%s327 + $0x18] sm:$0xff]
      %v348 = vld [vmem:[%s327 + $0x20] sm:$0xff]
      %v349 = vld [vmem:[%s327 + $0x28] sm:$0xff]
      %v350 = vld [vmem:[%s327 + $0x30] sm:$0xff]
      %v351 = vld [vmem:[%s327 + $0x38] sm:$0xff]
      %vm360 = vcmask 1040384
      %v361 = vrot.slane %v344, 7
      %v362 = vrot.slane %v345, 7
      %v363 = vrot.slane %v346, 7
      %v364 = vrot.slane %v347, 7
      %v365 = vrot.slane %v348, 7
      %v366 = vsel %vm360, %v361, %v365
      %v367 = vrot.slane %v349, 7
      %v368 = vsel %vm360, %v362, %v367
      %v369 = vrot.slane %v350, 7
      %v370 = vsel %vm360, %v363, %v369
      %v371 = vrot.slane %v351, 7
      %v372 = vsel %vm360, %v364, %v371
      %385 = vst [vmem:[#allocation2] sm:$0xfe] %v361
      %386 = vst [vmem:[#allocation2 + $0x8] sm:$0xfe] %v362
      %387 = vst [vmem:[#allocation2 + $0x10] sm:$0xfe] %v363
      %388 = vst [vmem:[#allocation2 + $0x18] sm:$0xfe] %v364
      %389 = vst [vmem:[#allocation2 + $0x20] sm:$0xff] %v366
      %390 = vst [vmem:[#allocation2 + $0x28] sm:$0xff] %v368
      %391 = vst [vmem:[#allocation2 + $0x30] sm:$0xff] %v370
      %392 = vst [vmem:[#allocation2 + $0x38] sm:$0xff] %v372
      %393 = vst [vmem:[#allocation2 + $0x40] sm:$0x1] %v365
      %394 = vst [vmem:[#allocation2 + $0x48] sm:$0x1] %v367
      %395 = vst [vmem:[#allocation2 + $0x50] sm:$0x1] %v369
      %396 = vst [vmem:[#allocation2 + $0x58] sm:$0x1] %v371
      %v397 = vld [vmem:[#allocation2] sm:$0xff]
      %v398 = vld [vmem:[#allocation2 + $0x8] sm:$0xff]
      %v399 = vld [vmem:[#allocation2 + $0x10] sm:$0xff]
      %v400 = vld [vmem:[#allocation2 + $0x18] sm:$0xff]
      %v401 = vld [vmem:[#allocation2 + $0x20] sm:$0xff]
      %v402 = vld [vmem:[#allocation2 + $0x28] sm:$0xff]
      %v403 = vld [vmem:[#allocation2 + $0x30] sm:$0xff]
      %v404 = vld [vmem:[#allocation2 + $0x38] sm:$0xff]
      %v405 = vpack.c.bf16 %v401, %v397
      %v406 = vpack.c.bf16 %v402, %v398
      %v407 = vpack.c.bf16 %v403, %v399
      %v408 = vpack.c.bf16 %v404, %v400
      %v409 = vld [vmem:[%s1] sm:$0xff]
      %v410 = vld [vmem:[%s1 + $0x8] sm:$0xff]
      %v411 = vld [vmem:[%s1 + $0x10] sm:$0xff]
      %v412 = vld [vmem:[%s1 + $0x18] sm:$0xff]
      %v413 = vld [vmem:[%s1 + $0x20] sm:$0xff]
      %v414 = vld [vmem:[%s1 + $0x28] sm:$0xff]
      %v415 = vld [vmem:[%s1 + $0x30] sm:$0xff]
      %v416 = vld [vmem:[%s1 + $0x38] sm:$0xff]
      %v417 = vld [vmem:[%s1 + $0x40] sm:$0xff]
      %v418 = vld [vmem:[%s1 + $0x48] sm:$0xff]
      %v419 = vld [vmem:[%s1 + $0x50] sm:$0xff]
      %v420 = vld [vmem:[%s1 + $0x58] sm:$0xff]
      %v421 = vld [vmem:[%s1 + $0x60] sm:$0xff]
      %v422 = vld [vmem:[%s1 + $0x68] sm:$0xff]
      %v423 = vld [vmem:[%s1 + $0x70] sm:$0xff]
      %v424 = vld [vmem:[%s1 + $0x78] sm:$0xff]
      %v425 = vld [vmem:[%s1 + $0x80] sm:$0xff]
      %v426 = vld [vmem:[%s1 + $0x88] sm:$0xff]
      %v427 = vld [vmem:[%s1 + $0x90] sm:$0xff]
      %v428 = vld [vmem:[%s1 + $0x98] sm:$0xff]
      %v429 = vld [vmem:[%s1 + $0xa0] sm:$0xff]
      %v430 = vld [vmem:[%s1 + $0xa8] sm:$0xff]
      %v431 = vld [vmem:[%s1 + $0xb0] sm:$0xff]
      %v432 = vld [vmem:[%s1 + $0xb8] sm:$0xff]
      %v433 = vld [vmem:[%s1 + $0xc0] sm:$0xff]
      %v434 = vld [vmem:[%s1 + $0xc8] sm:$0xff]
      %v435 = vld [vmem:[%s1 + $0xd0] sm:$0xff]
      %v436 = vld [vmem:[%s1 + $0xd8] sm:$0xff]
      %v437 = vld [vmem:[%s1 + $0xe0] sm:$0xff]
      %v438 = vld [vmem:[%s1 + $0xe8] sm:$0xff]
      %v439 = vld [vmem:[%s1 + $0xf0] sm:$0xff]
      %v440 = vld [vmem:[%s1 + $0xf8] sm:$0xff]
      %v441 = vld [vmem:[%s1 + $0x100] sm:$0xff]
      %v442 = vld [vmem:[%s1 + $0x108] sm:$0xff]
      %v443 = vld [vmem:[%s1 + $0x110] sm:$0xff]
      %v444 = vld [vmem:[%s1 + $0x118] sm:$0xff]
      %v445 = vld [vmem:[%s1 + $0x120] sm:$0xff]
      %v446 = vld [vmem:[%s1 + $0x128] sm:$0xff]
      %v447 = vld [vmem:[%s1 + $0x130] sm:$0xff]
      %v448 = vld [vmem:[%s1 + $0x138] sm:$0xff]
      %v449 = vld [vmem:[%s1 + $0x140] sm:$0xff]
      %v450 = vld [vmem:[%s1 + $0x148] sm:$0xff]
      %v451 = vld [vmem:[%s1 + $0x150] sm:$0xff]
      %v452 = vld [vmem:[%s1 + $0x158] sm:$0xff]
      %v453 = vld [vmem:[%s1 + $0x160] sm:$0xff]
      %v454 = vld [vmem:[%s1 + $0x168] sm:$0xff]
      %v455 = vld [vmem:[%s1 + $0x170] sm:$0xff]
      %v456 = vld [vmem:[%s1 + $0x178] sm:$0xff]
      %v457 = vld [vmem:[%s1 + $0x180] sm:$0xff]
      %v458 = vld [vmem:[%s1 + $0x188] sm:$0xff]
      %v459 = vld [vmem:[%s1 + $0x190] sm:$0xff]
      %v460 = vld [vmem:[%s1 + $0x198] sm:$0xff]
      %v461 = vld [vmem:[%s1 + $0x1a0] sm:$0xff]
      %v462 = vld [vmem:[%s1 + $0x1a8] sm:$0xff]
      %v463 = vld [vmem:[%s1 + $0x1b0] sm:$0xff]
      %v464 = vld [vmem:[%s1 + $0x1b8] sm:$0xff]
      %v465 = vld [vmem:[%s1 + $0x1c0] sm:$0xff]
      %v466 = vld [vmem:[%s1 + $0x1c8] sm:$0xff]
      %v467 = vld [vmem:[%s1 + $0x1d0] sm:$0xff]
      %v468 = vld [vmem:[%s1 + $0x1d8] sm:$0xff]
      %v469 = vld [vmem:[%s1 + $0x1e0] sm:$0xff]
      %v470 = vld [vmem:[%s1 + $0x1e8] sm:$0xff]
      %v471 = vld [vmem:[%s1 + $0x1f0] sm:$0xff]
      %v472 = vld [vmem:[%s1 + $0x1f8] sm:$0xff]
      %v473 = vld [vmem:[%s1 + $0x200] sm:$0xff]
      %v474 = vld [vmem:[%s1 + $0x208] sm:$0xff]
      %v475 = vld [vmem:[%s1 + $0x210] sm:$0xff]
      %v476 = vld [vmem:[%s1 + $0x218] sm:$0xff]
      %v477 = vld [vmem:[%s1 + $0x220] sm:$0xff]
      %v478 = vld [vmem:[%s1 + $0x228] sm:$0xff]
      %v479 = vld [vmem:[%s1 + $0x230] sm:$0xff]
      %v480 = vld [vmem:[%s1 + $0x238] sm:$0xff]
      %v481 = vld [vmem:[%s1 + $0x240] sm:$0xff]
      %v482 = vld [vmem:[%s1 + $0x248] sm:$0xff]
      %v483 = vld [vmem:[%s1 + $0x250] sm:$0xff]
      %v484 = vld [vmem:[%s1 + $0x258] sm:$0xff]
      %v485 = vld [vmem:[%s1 + $0x260] sm:$0xff]
      %v486 = vld [vmem:[%s1 + $0x268] sm:$0xff]
      %v487 = vld [vmem:[%s1 + $0x270] sm:$0xff]
      %v488 = vld [vmem:[%s1 + $0x278] sm:$0xff]
      %v489 = vld [vmem:[%s1 + $0x280] sm:$0xff]
      %v490 = vld [vmem:[%s1 + $0x288] sm:$0xff]
      %v491 = vld [vmem:[%s1 + $0x290] sm:$0xff]
      %v492 = vld [vmem:[%s1 + $0x298] sm:$0xff]
      %v493 = vld [vmem:[%s1 + $0x2a0] sm:$0xff]
      %v494 = vld [vmem:[%s1 + $0x2a8] sm:$0xff]
      %v495 = vld [vmem:[%s1 + $0x2b0] sm:$0xff]
      %v496 = vld [vmem:[%s1 + $0x2b8] sm:$0xff]
      %v497 = vld [vmem:[%s1 + $0x2c0] sm:$0xff]
      %v498 = vld [vmem:[%s1 + $0x2c8] sm:$0xff]
      %v499 = vld [vmem:[%s1 + $0x2d0] sm:$0xff]
      %v500 = vld [vmem:[%s1 + $0x2d8] sm:$0xff]
      %v501 = vld [vmem:[%s1 + $0x2e0] sm:$0xff]
      %v502 = vld [vmem:[%s1 + $0x2e8] sm:$0xff]
      %v503 = vld [vmem:[%s1 + $0x2f0] sm:$0xff]
      %v504 = vld [vmem:[%s1 + $0x2f8] sm:$0xff]
      %v505 = vld [vmem:[%s1 + $0x300] sm:$0xff]
      %v506 = vld [vmem:[%s1 + $0x308] sm:$0xff]
      %v507 = vld [vmem:[%s1 + $0x310] sm:$0xff]
      %v508 = vld [vmem:[%s1 + $0x318] sm:$0xff]
      %v509 = vld [vmem:[%s1 + $0x320] sm:$0xff]
      %v510 = vld [vmem:[%s1 + $0x328] sm:$0xff]
      %v511 = vld [vmem:[%s1 + $0x330] sm:$0xff]
      %v512 = vld [vmem:[%s1 + $0x338] sm:$0xff]
      %v513 = vld [vmem:[%s1 + $0x340] sm:$0xff]
      %v514 = vld [vmem:[%s1 + $0x348] sm:$0xff]
      %v515 = vld [vmem:[%s1 + $0x350] sm:$0xff]
      %v516 = vld [vmem:[%s1 + $0x358] sm:$0xff]
      %v517 = vld [vmem:[%s1 + $0x360] sm:$0xff]
      %v518 = vld [vmem:[%s1 + $0x368] sm:$0xff]
      %v519 = vld [vmem:[%s1 + $0x370] sm:$0xff]
      %v520 = vld [vmem:[%s1 + $0x378] sm:$0xff]
      %v521 = vld [vmem:[%s1 + $0x380] sm:$0xff]
      %v522 = vld [vmem:[%s1 + $0x388] sm:$0xff]
      %v523 = vld [vmem:[%s1 + $0x390] sm:$0xff]
      %v524 = vld [vmem:[%s1 + $0x398] sm:$0xff]
      %v525 = vld [vmem:[%s1 + $0x3a0] sm:$0xff]
      %v526 = vld [vmem:[%s1 + $0x3a8] sm:$0xff]
      %v527 = vld [vmem:[%s1 + $0x3b0] sm:$0xff]
      %v528 = vld [vmem:[%s1 + $0x3b8] sm:$0xff]
      %v529 = vld [vmem:[%s1 + $0x3c0] sm:$0xff]
      %v530 = vld [vmem:[%s1 + $0x3c8] sm:$0xff]
      %v531 = vld [vmem:[%s1 + $0x3d0] sm:$0xff]
      %v532 = vld [vmem:[%s1 + $0x3d8] sm:$0xff]
      %v533 = vld [vmem:[%s1 + $0x3e0] sm:$0xff]
      %v534 = vld [vmem:[%s1 + $0x3e8] sm:$0xff]
      %v535 = vld [vmem:[%s1 + $0x3f0] sm:$0xff]
      %v536 = vld [vmem:[%s1 + $0x3f8] sm:$0xff]
      %v537 = vld [vmem:[#allocation2] sm:$0xfe]
      %v538 = vld [vmem:[#allocation2 + $0x8] sm:$0xfe]
      %v539 = vld [vmem:[#allocation2 + $0x10] sm:$0xfe]
      %v540 = vld [vmem:[#allocation2 + $0x18] sm:$0xfe]
      %v541 = vld [vmem:[#allocation2 + $0x40] sm:$0x1]
      %v542 = vld [vmem:[#allocation2 + $0x48] sm:$0x1]
      %v543 = vld [vmem:[#allocation2 + $0x50] sm:$0x1]
      %v544 = vld [vmem:[#allocation2 + $0x58] sm:$0x1]
      %v545 = vpack.c.bf16 %v401, %v537
      %v546 = vpack.c.bf16 %v402, %v538
      %v547 = vpack.c.bf16 %v403, %v539
      %v548 = vpack.c.bf16 %v404, %v540
      %v549 = vpack.c.bf16 %v541, %v541
      %v550 = vpack.c.bf16 %v542, %v542
      %v551 = vpack.c.bf16 %v543, %v543
      %v552 = vpack.c.bf16 %v544, %v544
      %s553 = scalar_lea.vmem %s1, 1024
      %v554 = vld [vmem:[%s553] sm:$0xff]
      %v555 = vld [vmem:[%s553 + $0x8] sm:$0xff]
      %v556 = vld [vmem:[%s553 + $0x10] sm:$0xff]
      %v557 = vld [vmem:[%s553 + $0x18] sm:$0xff]
      %v558 = vld [vmem:[%s553 + $0x20] sm:$0xff]
      %v559 = vld [vmem:[%s553 + $0x28] sm:$0xff]
      %v560 = vld [vmem:[%s553 + $0x30] sm:$0xff]
      %v561 = vld [vmem:[%s553 + $0x38] sm:$0xff]
      %v562 = vld [vmem:[%s553 + $0x40] sm:$0xff]
      %v563 = vld [vmem:[%s553 + $0x48] sm:$0xff]
      %v564 = vld [vmem:[%s553 + $0x50] sm:$0xff]
      %v565 = vld [vmem:[%s553 + $0x58] sm:$0xff]
      %v566 = vld [vmem:[%s553 + $0x60] sm:$0xff]
      %v567 = vld [vmem:[%s553 + $0x68] sm:$0xff]
      %v568 = vld [vmem:[%s553 + $0x70] sm:$0xff]
      %v569 = vld [vmem:[%s553 + $0x78] sm:$0xff]
      %v570 = vld [vmem:[%s553 + $0x80] sm:$0xff]
      %v571 = vld [vmem:[%s553 + $0x88] sm:$0xff]
      %v572 = vld [vmem:[%s553 + $0x90] sm:$0xff]
      %v573 = vld [vmem:[%s553 + $0x98] sm:$0xff]
      %v574 = vld [vmem:[%s553 + $0xa0] sm:$0xff]
      %v575 = vld [vmem:[%s553 + $0xa8] sm:$0xff]
      %v576 = vld [vmem:[%s553 + $0xb0] sm:$0xff]
      %v577 = vld [vmem:[%s553 + $0xb8] sm:$0xff]
      %v578 = vld [vmem:[%s553 + $0xc0] sm:$0xff]
      %v579 = vld [vmem:[%s553 + $0xc8] sm:$0xff]
      %v580 = vld [vmem:[%s553 + $0xd0] sm:$0xff]
      %v581 = vld [vmem:[%s553 + $0xd8] sm:$0xff]
      %v582 = vld [vmem:[%s553 + $0xe0] sm:$0xff]
      %v583 = vld [vmem:[%s553 + $0xe8] sm:$0xff]
      %v584 = vld [vmem:[%s553 + $0xf0] sm:$0xff]
      %v585 = vld [vmem:[%s553 + $0xf8] sm:$0xff]
      %v586 = vld [vmem:[%s553 + $0x100] sm:$0xff]
      %v587 = vld [vmem:[%s553 + $0x108] sm:$0xff]
      %v588 = vld [vmem:[%s553 + $0x110] sm:$0xff]
      %v589 = vld [vmem:[%s553 + $0x118] sm:$0xff]
      %v590 = vld [vmem:[%s553 + $0x120] sm:$0xff]
      %v591 = vld [vmem:[%s553 + $0x128] sm:$0xff]
      %v592 = vld [vmem:[%s553 + $0x130] sm:$0xff]
      %v593 = vld [vmem:[%s553 + $0x138] sm:$0xff]
      %v594 = vld [vmem:[%s553 + $0x140] sm:$0xff]
      %v595 = vld [vmem:[%s553 + $0x148] sm:$0xff]
      %v596 = vld [vmem:[%s553 + $0x150] sm:$0xff]
      %v597 = vld [vmem:[%s553 + $0x158] sm:$0xff]
      %v598 = vld [vmem:[%s553 + $0x160] sm:$0xff]
      %v599 = vld [vmem:[%s553 + $0x168] sm:$0xff]
      %v600 = vld [vmem:[%s553 + $0x170] sm:$0xff]
      %v601 = vld [vmem:[%s553 + $0x178] sm:$0xff]
      %v602 = vld [vmem:[%s553 + $0x180] sm:$0xff]
      %v603 = vld [vmem:[%s553 + $0x188] sm:$0xff]
      %v604 = vld [vmem:[%s553 + $0x190] sm:$0xff]
      %v605 = vld [vmem:[%s553 + $0x198] sm:$0xff]
      %v606 = vld [vmem:[%s553 + $0x1a0] sm:$0xff]
      %v607 = vld [vmem:[%s553 + $0x1a8] sm:$0xff]
      %v608 = vld [vmem:[%s553 + $0x1b0] sm:$0xff]
      %v609 = vld [vmem:[%s553 + $0x1b8] sm:$0xff]
      %v610 = vld [vmem:[%s553 + $0x1c0] sm:$0xff]
      %v611 = vld [vmem:[%s553 + $0x1c8] sm:$0xff]
      %v612 = vld [vmem:[%s553 + $0x1d0] sm:$0xff]
      %v613 = vld [vmem:[%s553 + $0x1d8] sm:$0xff]
      %v614 = vld [vmem:[%s553 + $0x1e0] sm:$0xff]
      %v615 = vld [vmem:[%s553 + $0x1e8] sm:$0xff]
      %v616 = vld [vmem:[%s553 + $0x1f0] sm:$0xff]
      %v617 = vld [vmem:[%s553 + $0x1f8] sm:$0xff]
      %v618 = vld [vmem:[%s553 + $0x200] sm:$0xff]
      %v619 = vld [vmem:[%s553 + $0x208] sm:$0xff]
      %v620 = vld [vmem:[%s553 + $0x210] sm:$0xff]
      %v621 = vld [vmem:[%s553 + $0x218] sm:$0xff]
      %v622 = vld [vmem:[%s553 + $0x220] sm:$0xff]
      %v623 = vld [vmem:[%s553 + $0x228] sm:$0xff]
      %v624 = vld [vmem:[%s553 + $0x230] sm:$0xff]
      %v625 = vld [vmem:[%s553 + $0x238] sm:$0xff]
      %v626 = vld [vmem:[%s553 + $0x240] sm:$0xff]
      %v627 = vld [vmem:[%s553 + $0x248] sm:$0xff]
      %v628 = vld [vmem:[%s553 + $0x250] sm:$0xff]
      %v629 = vld [vmem:[%s553 + $0x258] sm:$0xff]
      %v630 = vld [vmem:[%s553 + $0x260] sm:$0xff]
      %v631 = vld [vmem:[%s553 + $0x268] sm:$0xff]
      %v632 = vld [vmem:[%s553 + $0x270] sm:$0xff]
      %v633 = vld [vmem:[%s553 + $0x278] sm:$0xff]
      %v634 = vld [vmem:[%s553 + $0x280] sm:$0xff]
      %v635 = vld [vmem:[%s553 + $0x288] sm:$0xff]
      %v636 = vld [vmem:[%s553 + $0x290] sm:$0xff]
      %v637 = vld [vmem:[%s553 + $0x298] sm:$0xff]
      %v638 = vld [vmem:[%s553 + $0x2a0] sm:$0xff]
      %v639 = vld [vmem:[%s553 + $0x2a8] sm:$0xff]
      %v640 = vld [vmem:[%s553 + $0x2b0] sm:$0xff]
      %v641 = vld [vmem:[%s553 + $0x2b8] sm:$0xff]
      %v642 = vld [vmem:[%s553 + $0x2c0] sm:$0xff]
      %v643 = vld [vmem:[%s553 + $0x2c8] sm:$0xff]
      %v644 = vld [vmem:[%s553 + $0x2d0] sm:$0xff]
      %v645 = vld [vmem:[%s553 + $0x2d8] sm:$0xff]
      %v646 = vld [vmem:[%s553 + $0x2e0] sm:$0xff]
      %v647 = vld [vmem:[%s553 + $0x2e8] sm:$0xff]
      %v648 = vld [vmem:[%s553 + $0x2f0] sm:$0xff]
      %v649 = vld [vmem:[%s553 + $0x2f8] sm:$0xff]
      %v650 = vld [vmem:[%s553 + $0x300] sm:$0xff]
      %v651 = vld [vmem:[%s553 + $0x308] sm:$0xff]
      %v652 = vld [vmem:[%s553 + $0x310] sm:$0xff]
      %v653 = vld [vmem:[%s553 + $0x318] sm:$0xff]
      %v654 = vld [vmem:[%s553 + $0x320] sm:$0xff]
      %v655 = vld [vmem:[%s553 + $0x328] sm:$0xff]
      %v656 = vld [vmem:[%s553 + $0x330] sm:$0xff]
      %v657 = vld [vmem:[%s553 + $0x338] sm:$0xff]
      %v658 = vld [vmem:[%s553 + $0x340] sm:$0xff]
      %v659 = vld [vmem:[%s553 + $0x348] sm:$0xff]
      %v660 = vld [vmem:[%s553 + $0x350] sm:$0xff]
      %v661 = vld [vmem:[%s553 + $0x358] sm:$0xff]
      %v662 = vld [vmem:[%s553 + $0x360] sm:$0xff]
      %v663 = vld [vmem:[%s553 + $0x368] sm:$0xff]
      %v664 = vld [vmem:[%s553 + $0x370] sm:$0xff]
      %v665 = vld [vmem:[%s553 + $0x378] sm:$0xff]
      %v666 = vld [vmem:[%s553 + $0x380] sm:$0xff]
      %v667 = vld [vmem:[%s553 + $0x388] sm:$0xff]
      %v668 = vld [vmem:[%s553 + $0x390] sm:$0xff]
      %v669 = vld [vmem:[%s553 + $0x398] sm:$0xff]
      %v670 = vld [vmem:[%s553 + $0x3a0] sm:$0xff]
      %v671 = vld [vmem:[%s553 + $0x3a8] sm:$0xff]
      %v672 = vld [vmem:[%s553 + $0x3b0] sm:$0xff]
      %v673 = vld [vmem:[%s553 + $0x3b8] sm:$0xff]
      %v674 = vld [vmem:[%s553 + $0x3c0] sm:$0xff]
      %v675 = vld [vmem:[%s553 + $0x3c8] sm:$0xff]
      %v676 = vld [vmem:[%s553 + $0x3d0] sm:$0xff]
      %v677 = vld [vmem:[%s553 + $0x3d8] sm:$0xff]
      %v678 = vld [vmem:[%s553 + $0x3e0] sm:$0xff]
      %v679 = vld [vmem:[%s553 + $0x3e8] sm:$0xff]
      %v680 = vld [vmem:[%s553 + $0x3f0] sm:$0xff]
      %v681 = vld [vmem:[%s553 + $0x3f8] sm:$0xff]
      %vm682 = vsmask.f32 7424
      %v684 = vshrl.u32 %v545, 16
      %v686 = vshll.u32 %v545, 16
      %v688 = vrot.slane %v686, 1
      %v689 = vor.u32 %v684, %v688
      %v691 = vshll.u32 %v549, 16
      %v693 = vrot.slane %v691, 1
      %v694 = vsel %vm682, %v689, %v693
      %v696 = vshrl.u32 %v546, 16
      %v698 = vshll.u32 %v546, 16
      %v700 = vrot.slane %v698, 1
      %v701 = vor.u32 %v696, %v700
      %v703 = vshll.u32 %v550, 16
      %v705 = vrot.slane %v703, 1
      %v706 = vsel %vm682, %v701, %v705
      %v708 = vshrl.u32 %v547, 16
      %v710 = vshll.u32 %v547, 16
      %v712 = vrot.slane %v710, 1
      %v713 = vor.u32 %v708, %v712
      %v715 = vshll.u32 %v551, 16
      %v717 = vrot.slane %v715, 1
      %v718 = vsel %vm682, %v713, %v717
      %v720 = vshrl.u32 %v548, 16
      %v722 = vshll.u32 %v548, 16
      %v724 = vrot.slane %v722, 1
      %v725 = vor.u32 %v720, %v724
      %v727 = vshll.u32 %v552, 16
      %v729 = vrot.slane %v727, 1
      %v730 = vsel %vm682, %v725, %v729
      %v863 = vunpack.c.l.b16 %v554
      %v864 = vunpack.c.h.b16 %v554
      %v865 = vunpack.c.l.b16 %v555
      %v866 = vunpack.c.h.b16 %v555
      %v867 = vunpack.c.l.b16 %v556
      %v868 = vunpack.c.h.b16 %v556
      %v869 = vunpack.c.l.b16 %v557
      %v870 = vunpack.c.h.b16 %v557
      %v871 = vunpack.c.l.b16 %v558
      %v872 = vunpack.c.h.b16 %v558
      %v873 = vunpack.c.l.b16 %v559
      %v874 = vunpack.c.h.b16 %v559
      %v875 = vunpack.c.l.b16 %v560
      %v876 = vunpack.c.h.b16 %v560
      %v877 = vunpack.c.l.b16 %v561
      %v878 = vunpack.c.h.b16 %v561
      %v879 = vunpack.c.l.b16 %v562
      %v880 = vunpack.c.h.b16 %v562
      %v881 = vunpack.c.l.b16 %v563
      %v882 = vunpack.c.h.b16 %v563
      %v883 = vunpack.c.l.b16 %v564
      %v884 = vunpack.c.h.b16 %v564
      %v885 = vunpack.c.l.b16 %v565
      %v886 = vunpack.c.h.b16 %v565
      %v887 = vunpack.c.l.b16 %v566
      %v888 = vunpack.c.h.b16 %v566
      %v889 = vunpack.c.l.b16 %v567
      %v890 = vunpack.c.h.b16 %v567
      %v891 = vunpack.c.l.b16 %v568
      %v892 = vunpack.c.h.b16 %v568
      %v893 = vunpack.c.l.b16 %v569
      %v894 = vunpack.c.h.b16 %v569
      %v895 = vunpack.c.l.b16 %v570
      %v896 = vunpack.c.h.b16 %v570
      %v897 = vunpack.c.l.b16 %v571
      %v898 = vunpack.c.h.b16 %v571
      %v899 = vunpack.c.l.b16 %v572
      %v900 = vunpack.c.h.b16 %v572
      %v901 = vunpack.c.l.b16 %v573
      %v902 = vunpack.c.h.b16 %v573
      %v903 = vunpack.c.l.b16 %v574
      %v904 = vunpack.c.h.b16 %v574
      %v905 = vunpack.c.l.b16 %v575
      %v906 = vunpack.c.h.b16 %v575
      %v907 = vunpack.c.l.b16 %v576
      %v908 = vunpack.c.h.b16 %v576
      %v909 = vunpack.c.l.b16 %v577
      %v910 = vunpack.c.h.b16 %v577
      %v911 = vunpack.c.l.b16 %v578
      %v912 = vunpack.c.h.b16 %v578
      %v913 = vunpack.c.l.b16 %v579
      %v914 = vunpack.c.h.b16 %v579
      %v915 = vunpack.c.l.b16 %v580
      %v916 = vunpack.c.h.b16 %v580
      %v917 = vunpack.c.l.b16 %v581
      %v918 = vunpack.c.h.b16 %v581
      %v919 = vunpack.c.l.b16 %v582
      %v920 = vunpack.c.h.b16 %v582
      %v921 = vunpack.c.l.b16 %v583
      %v922 = vunpack.c.h.b16 %v583
      %v923 = vunpack.c.l.b16 %v584
      %v924 = vunpack.c.h.b16 %v584
      %v925 = vunpack.c.l.b16 %v585
      %v926 = vunpack.c.h.b16 %v585
      %v927 = vunpack.c.l.b16 %v586
      %v928 = vunpack.c.h.b16 %v586
      %v929 = vunpack.c.l.b16 %v587
      %v930 = vunpack.c.h.b16 %v587
      %v931 = vunpack.c.l.b16 %v588
      %v932 = vunpack.c.h.b16 %v588
      %v933 = vunpack.c.l.b16 %v589
      %v934 = vunpack.c.h.b16 %v589
      %v935 = vunpack.c.l.b16 %v590
      %v936 = vunpack.c.h.b16 %v590
      %v937 = vunpack.c.l.b16 %v591
      %v938 = vunpack.c.h.b16 %v591
      %v939 = vunpack.c.l.b16 %v592
      %v940 = vunpack.c.h.b16 %v592
      %v941 = vunpack.c.l.b16 %v593
      %v942 = vunpack.c.h.b16 %v593
      %v943 = vunpack.c.l.b16 %v594
      %v944 = vunpack.c.h.b16 %v594
      %v945 = vunpack.c.l.b16 %v595
      %v946 = vunpack.c.h.b16 %v595
      %v947 = vunpack.c.l.b16 %v596
      %v948 = vunpack.c.h.b16 %v596
      %v949 = vunpack.c.l.b16 %v597
      %v950 = vunpack.c.h.b16 %v597
      %v951 = vunpack.c.l.b16 %v598
      %v952 = vunpack.c.h.b16 %v598
      %v953 = vunpack.c.l.b16 %v599
      %v954 = vunpack.c.h.b16 %v599
      %v955 = vunpack.c.l.b16 %v600
      %v956 = vunpack.c.h.b16 %v600
      %v957 = vunpack.c.l.b16 %v601
      %v958 = vunpack.c.h.b16 %v601
      %v959 = vunpack.c.l.b16 %v602
      %v960 = vunpack.c.h.b16 %v602
      %v961 = vunpack.c.l.b16 %v603
      %v962 = vunpack.c.h.b16 %v603
      %v963 = vunpack.c.l.b16 %v604
      %v964 = vunpack.c.h.b16 %v604
      %v965 = vunpack.c.l.b16 %v605
      %v966 = vunpack.c.h.b16 %v605
      %v967 = vunpack.c.l.b16 %v606
      %v968 = vunpack.c.h.b16 %v606
      %v969 = vunpack.c.l.b16 %v607
      %v970 = vunpack.c.h.b16 %v607
      %v971 = vunpack.c.l.b16 %v608
      %v972 = vunpack.c.h.b16 %v608
      %v973 = vunpack.c.l.b16 %v609
      %v974 = vunpack.c.h.b16 %v609
      %v975 = vunpack.c.l.b16 %v610
      %v976 = vunpack.c.h.b16 %v610
      %v977 = vunpack.c.l.b16 %v611
      %v978 = vunpack.c.h.b16 %v611
      %v979 = vunpack.c.l.b16 %v612
      %v980 = vunpack.c.h.b16 %v612
      %v981 = vunpack.c.l.b16 %v613
      %v982 = vunpack.c.h.b16 %v613
      %v983 = vunpack.c.l.b16 %v614
      %v984 = vunpack.c.h.b16 %v614
      %v985 = vunpack.c.l.b16 %v615
      %v986 = vunpack.c.h.b16 %v615
      %v987 = vunpack.c.l.b16 %v616
      %v988 = vunpack.c.h.b16 %v616
      %v989 = vunpack.c.l.b16 %v617
      %v990 = vunpack.c.h.b16 %v617
      %v991 = vunpack.c.l.b16 %v618
      %v992 = vunpack.c.h.b16 %v618
      %v993 = vunpack.c.l.b16 %v619
      %v994 = vunpack.c.h.b16 %v619
      %v995 = vunpack.c.l.b16 %v620
      %v996 = vunpack.c.h.b16 %v620
      %v997 = vunpack.c.l.b16 %v621
      %v998 = vunpack.c.h.b16 %v621
      %v999 = vunpack.c.l.b16 %v622
      %v1000 = vunpack.c.h.b16 %v622
      %v1001 = vunpack.c.l.b16 %v623
      %v1002 = vunpack.c.h.b16 %v623
      %v1003 = vunpack.c.l.b16 %v624
      %v1004 = vunpack.c.h.b16 %v624
      %v1005 = vunpack.c.l.b16 %v625
      %v1006 = vunpack.c.h.b16 %v625
      %v1007 = vunpack.c.l.b16 %v626
      %v1008 = vunpack.c.h.b16 %v626
      %v1009 = vunpack.c.l.b16 %v627
      %v1010 = vunpack.c.h.b16 %v627
      %v1011 = vunpack.c.l.b16 %v628
      %v1012 = vunpack.c.h.b16 %v628
      %v1013 = vunpack.c.l.b16 %v629
      %v1014 = vunpack.c.h.b16 %v629
      %v1015 = vunpack.c.l.b16 %v630
      %v1016 = vunpack.c.h.b16 %v630
      %v1017 = vunpack.c.l.b16 %v631
      %v1018 = vunpack.c.h.b16 %v631
      %v1019 = vunpack.c.l.b16 %v632
      %v1020 = vunpack.c.h.b16 %v632
      %v1021 = vunpack.c.l.b16 %v633
      %v1022 = vunpack.c.h.b16 %v633
      %v1023 = vunpack.c.l.b16 %v634
      %v1024 = vunpack.c.h.b16 %v634
      %v1025 = vunpack.c.l.b16 %v635
      %v1026 = vunpack.c.h.b16 %v635
      %v1027 = vunpack.c.l.b16 %v636
      %v1028 = vunpack.c.h.b16 %v636
      %v1029 = vunpack.c.l.b16 %v637
      %v1030 = vunpack.c.h.b16 %v637
      %v1031 = vunpack.c.l.b16 %v638
      %v1032 = vunpack.c.h.b16 %v638
      %v1033 = vunpack.c.l.b16 %v639
      %v1034 = vunpack.c.h.b16 %v639
      %v1035 = vunpack.c.l.b16 %v640
      %v1036 = vunpack.c.h.b16 %v640
      %v1037 = vunpack.c.l.b16 %v641
      %v1038 = vunpack.c.h.b16 %v641
      %v1039 = vunpack.c.l.b16 %v642
      %v1040 = vunpack.c.h.b16 %v642
      %v1041 = vunpack.c.l.b16 %v643
      %v1042 = vunpack.c.h.b16 %v643
      %v1043 = vunpack.c.l.b16 %v644
      %v1044 = vunpack.c.h.b16 %v644
      %v1045 = vunpack.c.l.b16 %v645
      %v1046 = vunpack.c.h.b16 %v645
      %v1047 = vunpack.c.l.b16 %v646
      %v1048 = vunpack.c.h.b16 %v646
      %v1049 = vunpack.c.l.b16 %v647
      %v1050 = vunpack.c.h.b16 %v647
      %v1051 = vunpack.c.l.b16 %v648
      %v1052 = vunpack.c.h.b16 %v648
      %v1053 = vunpack.c.l.b16 %v649
      %v1054 = vunpack.c.h.b16 %v649
      %v1055 = vunpack.c.l.b16 %v650
      %v1056 = vunpack.c.h.b16 %v650
      %v1057 = vunpack.c.l.b16 %v651
      %v1058 = vunpack.c.h.b16 %v651
      %v1059 = vunpack.c.l.b16 %v652
      %v1060 = vunpack.c.h.b16 %v652
      %v1061 = vunpack.c.l.b16 %v653
      %v1062 = vunpack.c.h.b16 %v653
      %v1063 = vunpack.c.l.b16 %v654
      %v1064 = vunpack.c.h.b16 %v654
      %v1065 = vunpack.c.l.b16 %v655
      %v1066 = vunpack.c.h.b16 %v655
      %v1067 = vunpack.c.l.b16 %v656
      %v1068 = vunpack.c.h.b16 %v656
      %v1069 = vunpack.c.l.b16 %v657
      %v1070 = vunpack.c.h.b16 %v657
      %v1071 = vunpack.c.l.b16 %v658
      %v1072 = vunpack.c.h.b16 %v658
      %v1073 = vunpack.c.l.b16 %v659
      %v1074 = vunpack.c.h.b16 %v659
      %v1075 = vunpack.c.l.b16 %v660
      %v1076 = vunpack.c.h.b16 %v660
      %v1077 = vunpack.c.l.b16 %v661
      %v1078 = vunpack.c.h.b16 %v661
      %v1079 = vunpack.c.l.b16 %v662
      %v1080 = vunpack.c.h.b16 %v662
      %v1081 = vunpack.c.l.b16 %v663
      %v1082 = vunpack.c.h.b16 %v663
      %v1083 = vunpack.c.l.b16 %v664
      %v1084 = vunpack.c.h.b16 %v664
      %v1085 = vunpack.c.l.b16 %v665
      %v1086 = vunpack.c.h.b16 %v665
      %v1087 = vunpack.c.l.b16 %v666
      %v1088 = vunpack.c.h.b16 %v666
      %v1089 = vunpack.c.l.b16 %v667
      %v1090 = vunpack.c.h.b16 %v667
      %v1091 = vunpack.c.l.b16 %v668
      %v1092 = vunpack.c.h.b16 %v668
      %v1093 = vunpack.c.l.b16 %v669
      %v1094 = vunpack.c.h.b16 %v669
      %v1095 = vunpack.c.l.b16 %v670
      %v1096 = vunpack.c.h.b16 %v670
      %v1097 = vunpack.c.l.b16 %v671
      %v1098 = vunpack.c.h.b16 %v671
      %v1099 = vunpack.c.l.b16 %v672
      %v1100 = vunpack.c.h.b16 %v672
      %v1101 = vunpack.c.l.b16 %v673
      %v1102 = vunpack.c.h.b16 %v673
      %v1103 = vunpack.c.l.b16 %v674
      %v1104 = vunpack.c.h.b16 %v674
      %v1105 = vunpack.c.l.b16 %v675
      %v1106 = vunpack.c.h.b16 %v675
      %v1107 = vunpack.c.l.b16 %v676
      %v1108 = vunpack.c.h.b16 %v676
      %v1109 = vunpack.c.l.b16 %v677
      %v1110 = vunpack.c.h.b16 %v677
      %v1111 = vunpack.c.l.b16 %v678
      %v1112 = vunpack.c.h.b16 %v678
      %v1113 = vunpack.c.l.b16 %v679
      %v1114 = vunpack.c.h.b16 %v679
      %v1115 = vunpack.c.l.b16 %v680
      %v1116 = vunpack.c.h.b16 %v680
      %v1117 = vunpack.c.l.b16 %v681
      %v1118 = vunpack.c.h.b16 %v681
      %v1119 = vpack.c.b16 %v867, %v863
      %v1120 = vpack.c.b16 %v868, %v864
      %v1121 = vpack.c.b16 %v869, %v865
      %v1122 = vpack.c.b16 %v870, %v866
      %v1123 = vpack.c.b16 %v875, %v871
      %v1124 = vpack.c.b16 %v876, %v872
      %v1125 = vpack.c.b16 %v877, %v873
      %v1126 = vpack.c.b16 %v878, %v874
      %v1127 = vpack.c.b16 %v883, %v879
      %v1128 = vpack.c.b16 %v884, %v880
      %v1129 = vpack.c.b16 %v885, %v881
      %v1130 = vpack.c.b16 %v886, %v882
      %v1131 = vpack.c.b16 %v891, %v887
      %v1132 = vpack.c.b16 %v892, %v888
      %v1133 = vpack.c.b16 %v893, %v889
      %v1134 = vpack.c.b16 %v894, %v890
      %v1135 = vpack.c.b16 %v899, %v895
      %v1136 = vpack.c.b16 %v900, %v896
      %v1137 = vpack.c.b16 %v901, %v897
      %v1138 = vpack.c.b16 %v902, %v898
      %v1139 = vpack.c.b16 %v907, %v903
      %v1140 = vpack.c.b16 %v908, %v904
      %v1141 = vpack.c.b16 %v909, %v905
      %v1142 = vpack.c.b16 %v910, %v906
      %v1143 = vpack.c.b16 %v915, %v911
      %v1144 = vpack.c.b16 %v916, %v912
      %v1145 = vpack.c.b16 %v917, %v913
      %v1146 = vpack.c.b16 %v918, %v914
      %v1147 = vpack.c.b16 %v923, %v919
      %v1148 = vpack.c.b16 %v924, %v920
      %v1149 = vpack.c.b16 %v925, %v921
      %v1150 = vpack.c.b16 %v926, %v922
      %v1151 = vpack.c.b16 %v931, %v927
      %v1152 = vpack.c.b16 %v932, %v928
      %v1153 = vpack.c.b16 %v933, %v929
      %v1154 = vpack.c.b16 %v934, %v930
      %v1155 = vpack.c.b16 %v939, %v935
      %v1156 = vpack.c.b16 %v940, %v936
      %v1157 = vpack.c.b16 %v941, %v937
      %v1158 = vpack.c.b16 %v942, %v938
      %v1159 = vpack.c.b16 %v947, %v943
      %v1160 = vpack.c.b16 %v948, %v944
      %v1161 = vpack.c.b16 %v949, %v945
      %v1162 = vpack.c.b16 %v950, %v946
      %v1163 = vpack.c.b16 %v955, %v951
      %v1164 = vpack.c.b16 %v956, %v952
      %v1165 = vpack.c.b16 %v957, %v953
      %v1166 = vpack.c.b16 %v958, %v954
      %v1167 = vpack.c.b16 %v963, %v959
      %v1168 = vpack.c.b16 %v964, %v960
      %v1169 = vpack.c.b16 %v965, %v961
      %v1170 = vpack.c.b16 %v966, %v962
      %v1171 = vpack.c.b16 %v971, %v967
      %v1172 = vpack.c.b16 %v972, %v968
      %v1173 = vpack.c.b16 %v973, %v969
      %v1174 = vpack.c.b16 %v974, %v970
      %v1175 = vpack.c.b16 %v979, %v975
      %v1176 = vpack.c.b16 %v980, %v976
      %v1177 = vpack.c.b16 %v981, %v977
      %v1178 = vpack.c.b16 %v982, %v978
      %v1179 = vpack.c.b16 %v987, %v983
      %v1180 = vpack.c.b16 %v988, %v984
      %v1181 = vpack.c.b16 %v989, %v985
      %v1182 = vpack.c.b16 %v990, %v986
      %v1183 = vpack.c.b16 %v995, %v991
      %v1184 = vpack.c.b16 %v996, %v992
      %v1185 = vpack.c.b16 %v997, %v993
      %v1186 = vpack.c.b16 %v998, %v994
      %v1187 = vpack.c.b16 %v1003, %v999
      %v1188 = vpack.c.b16 %v1004, %v1000
      %v1189 = vpack.c.b16 %v1005, %v1001
      %v1190 = vpack.c.b16 %v1006, %v1002
      %v1191 = vpack.c.b16 %v1011, %v1007
      %v1192 = vpack.c.b16 %v1012, %v1008
      %v1193 = vpack.c.b16 %v1013, %v1009
      %v1194 = vpack.c.b16 %v1014, %v1010
      %v1195 = vpack.c.b16 %v1019, %v1015
      %v1196 = vpack.c.b16 %v1020, %v1016
      %v1197 = vpack.c.b16 %v1021, %v1017
      %v1198 = vpack.c.b16 %v1022, %v1018
      %v1199 = vpack.c.b16 %v1027, %v1023
      %v1200 = vpack.c.b16 %v1028, %v1024
      %v1201 = vpack.c.b16 %v1029, %v1025
      %v1202 = vpack.c.b16 %v1030, %v1026
      %v1203 = vpack.c.b16 %v1035, %v1031
      %v1204 = vpack.c.b16 %v1036, %v1032
      %v1205 = vpack.c.b16 %v1037, %v1033
      %v1206 = vpack.c.b16 %v1038, %v1034
      %v1207 = vpack.c.b16 %v1043, %v1039
      %v1208 = vpack.c.b16 %v1044, %v1040
      %v1209 = vpack.c.b16 %v1045, %v1041
      %v1210 = vpack.c.b16 %v1046, %v1042
      %v1211 = vpack.c.b16 %v1051, %v1047
      %v1212 = vpack.c.b16 %v1052, %v1048
      %v1213 = vpack.c.b16 %v1053, %v1049
      %v1214 = vpack.c.b16 %v1054, %v1050
      %v1215 = vpack.c.b16 %v1059, %v1055
      %v1216 = vpack.c.b16 %v1060, %v1056
      %v1217 = vpack.c.b16 %v1061, %v1057
      %v1218 = vpack.c.b16 %v1062, %v1058
      %v1219 = vpack.c.b16 %v1067, %v1063
      %v1220 = vpack.c.b16 %v1068, %v1064
      %v1221 = vpack.c.b16 %v1069, %v1065
      %v1222 = vpack.c.b16 %v1070, %v1066
      %v1223 = vpack.c.b16 %v1075, %v1071
      %v1224 = vpack.c.b16 %v1076, %v1072
      %v1225 = vpack.c.b16 %v1077, %v1073
      %v1226 = vpack.c.b16 %v1078, %v1074
      %v1227 = vpack.c.b16 %v1083, %v1079
      %v1228 = vpack.c.b16 %v1084, %v1080
      %v1229 = vpack.c.b16 %v1085, %v1081
      %v1230 = vpack.c.b16 %v1086, %v1082
      %v1231 = vpack.c.b16 %v1091, %v1087
      %v1232 = vpack.c.b16 %v1092, %v1088
      %v1233 = vpack.c.b16 %v1093, %v1089
      %v1234 = vpack.c.b16 %v1094, %v1090
      %v1235 = vpack.c.b16 %v1099, %v1095
      %v1236 = vpack.c.b16 %v1100, %v1096
      %v1237 = vpack.c.b16 %v1101, %v1097
      %v1238 = vpack.c.b16 %v1102, %v1098
      %v1239 = vpack.c.b16 %v1107, %v1103
      %v1240 = vpack.c.b16 %v1108, %v1104
      %v1241 = vpack.c.b16 %v1109, %v1105
      %v1242 = vpack.c.b16 %v1110, %v1106
      %v1243 = vpack.c.b16 %v1115, %v1111
      %v1244 = vpack.c.b16 %v1116, %v1112
      %v1245 = vpack.c.b16 %v1117, %v1113
      %v1246 = vpack.c.b16 %v1118, %v1114
      %1375 = vmatprep.subr.bf16.mxu0 %v1120
      %1376 = vmatpush1.bf16.msra.mxu0 %v1119
      %1377 = vmatprep.subr.bf16.mxu0 %v1124
      %1378 = vmatpush1.bf16.msra.mxu0 %v1123
      %1379 = vmatprep.subr.bf16.mxu0 %v1128
      %1380 = vmatpush1.bf16.msra.mxu0 %v1127
      %1381 = vmatprep.subr.bf16.mxu0 %v1132
      %1382 = vmatpush1.bf16.msra.mxu0 %v1131
      %1383 = vmatprep.subr.bf16.mxu0 %v1136
      %1384 = vmatpush1.bf16.msra.mxu0 %v1135
      %1385 = vmatprep.subr.bf16.mxu0 %v1140
      %1386 = vmatpush1.bf16.msra.mxu0 %v1139
      %1387 = vmatprep.subr.bf16.mxu0 %v1144
      %1388 = vmatpush1.bf16.msra.mxu0 %v1143
      %1389 = vmatprep.subr.bf16.mxu0 %v1148
      %1390 = vmatpush1.bf16.msra.mxu0 %v1147
      %1391 = vmatprep.subr.bf16.mxu0 %v1152
      %1392 = vmatpush1.bf16.msra.mxu0 %v1151
      %1393 = vmatprep.subr.bf16.mxu0 %v1156
      %1394 = vmatpush1.bf16.msra.mxu0 %v1155
      %1395 = vmatprep.subr.bf16.mxu0 %v1160
      %1396 = vmatpush1.bf16.msra.mxu0 %v1159
      %1397 = vmatprep.subr.bf16.mxu0 %v1164
      %1398 = vmatpush1.bf16.msra.mxu0 %v1163
      %1399 = vmatprep.subr.bf16.mxu0 %v1168
      %1400 = vmatpush1.bf16.msra.mxu0 %v1167
      %1401 = vmatprep.subr.bf16.mxu0 %v1172
      %1402 = vmatpush1.bf16.msra.mxu0 %v1171
      %1403 = vmatprep.subr.bf16.mxu0 %v1176
      %1404 = vmatpush1.bf16.msra.mxu0 %v1175
      %1405 = vmatprep.subr.bf16.mxu0 %v1180
      %1406 = vmatpush1.bf16.msra.mxu0 %v1179
      %1407 = vmatprep.mubr.bf16.mxu0 %v706
      %1408 = vmatmul.mubr.bf16.gmra.mrb[0].mxu0 %v694
      %v1409 = vpop.f32.mrb[0].mxu0
      %v1410 = vadd.f32 0.0, %v1409
      %v1411 = vpop.f32.mrb[0].mxu0
      %v1412 = vadd.f32 0.0, %v1411
      %v1413 = vpop.f32.mrb[0].mxu0
      %v1414 = vadd.f32 0.0, %v1413
      %v1415 = vpop.f32.mrb[0].mxu0
      %v1416 = vadd.f32 0.0, %v1415
      %1417 = vdwg.mxu0
      %1418 = vmatprep.subr.bf16.mxu0 %v1184
      %1419 = vmatpush1.bf16.msra.mxu0 %v1183
      %1420 = vmatprep.subr.bf16.mxu0 %v1188
      %1421 = vmatpush1.bf16.msra.mxu0 %v1187
      %1422 = vmatprep.subr.bf16.mxu0 %v1192
      %1423 = vmatpush1.bf16.msra.mxu0 %v1191
      %1424 = vmatprep.subr.bf16.mxu0 %v1196
      %1425 = vmatpush1.bf16.msra.mxu0 %v1195
      %1426 = vmatprep.subr.bf16.mxu0 %v1200
      %1427 = vmatpush1.bf16.msra.mxu0 %v1199
      %1428 = vmatprep.subr.bf16.mxu0 %v1204
      %1429 = vmatpush1.bf16.msra.mxu0 %v1203
      %1430 = vmatprep.subr.bf16.mxu0 %v1208
      %1431 = vmatpush1.bf16.msra.mxu0 %v1207
      %1432 = vmatprep.subr.bf16.mxu0 %v1212
      %1433 = vmatpush1.bf16.msra.mxu0 %v1211
      %1434 = vmatprep.subr.bf16.mxu0 %v1216
      %1435 = vmatpush1.bf16.msra.mxu0 %v1215
      %1436 = vmatprep.subr.bf16.mxu0 %v1220
      %1437 = vmatpush1.bf16.msra.mxu0 %v1219
      %1438 = vmatprep.subr.bf16.mxu0 %v1224
      %1439 = vmatpush1.bf16.msra.mxu0 %v1223
      %1440 = vmatprep.subr.bf16.mxu0 %v1228
      %1441 = vmatpush1.bf16.msra.mxu0 %v1227
      %1442 = vmatprep.subr.bf16.mxu0 %v1232
      %1443 = vmatpush1.bf16.msra.mxu0 %v1231
      %1444 = vmatprep.subr.bf16.mxu0 %v1236
      %1445 = vmatpush1.bf16.msra.mxu0 %v1235
      %1446 = vmatprep.subr.bf16.mxu0 %v1240
      %1447 = vmatpush1.bf16.msra.mxu0 %v1239
      %1448 = vmatprep.subr.bf16.mxu0 %v1244
      %1449 = vmatpush1.bf16.msra.mxu0 %v1243
      %1450 = vmatprep.mubr.bf16.mxu0 %v730
      %1451 = vmatmul.mubr.bf16.gmra.mrb[0].mxu0 %v718
      %v1452 = vpop.f32.mrb[0].mxu0
      %v1453 = vadd.f32 %v1410, %v1452
      %v1454 = vpop.f32.mrb[0].mxu0
      %v1455 = vadd.f32 %v1412, %v1454
      %v1456 = vpop.f32.mrb[0].mxu0
      %v1457 = vadd.f32 %v1414, %v1456
      %v1458 = vpop.f32.mrb[0].mxu0
      %v1459 = vadd.f32 %v1416, %v1458
      %1460 = vdwg.mxu0
      %1461 = vmatprep.subr.bf16.mxu0 %v1122
      %1462 = vmatpush1.bf16.msra.mxu0 %v1121
      %1463 = vmatprep.subr.bf16.mxu0 %v1126
      %1464 = vmatpush1.bf16.msra.mxu0 %v1125
      %1465 = vmatprep.subr.bf16.mxu0 %v1130
      %1466 = vmatpush1.bf16.msra.mxu0 %v1129
      %1467 = vmatprep.subr.bf16.mxu0 %v1134
      %1468 = vmatpush1.bf16.msra.mxu0 %v1133
      %1469 = vmatprep.subr.bf16.mxu0 %v1138
      %1470 = vmatpush1.bf16.msra.mxu0 %v1137
      %1471 = vmatprep.subr.bf16.mxu0 %v1142
      %1472 = vmatpush1.bf16.msra.mxu0 %v1141
      %1473 = vmatprep.subr.bf16.mxu0 %v1146
      %1474 = vmatpush1.bf16.msra.mxu0 %v1145
      %1475 = vmatprep.subr.bf16.mxu0 %v1150
      %1476 = vmatpush1.bf16.msra.mxu0 %v1149
      %1477 = vmatprep.subr.bf16.mxu0 %v1154
      %1478 = vmatpush1.bf16.msra.mxu0 %v1153
      %1479 = vmatprep.subr.bf16.mxu0 %v1158
      %1480 = vmatpush1.bf16.msra.mxu0 %v1157
      %1481 = vmatprep.subr.bf16.mxu0 %v1162
      %1482 = vmatpush1.bf16.msra.mxu0 %v1161
      %1483 = vmatprep.subr.bf16.mxu0 %v1166
      %1484 = vmatpush1.bf16.msra.mxu0 %v1165
      %1485 = vmatprep.subr.bf16.mxu0 %v1170
      %1486 = vmatpush1.bf16.msra.mxu0 %v1169
      %1487 = vmatprep.subr.bf16.mxu0 %v1174
      %1488 = vmatpush1.bf16.msra.mxu0 %v1173
      %1489 = vmatprep.subr.bf16.mxu0 %v1178
      %1490 = vmatpush1.bf16.msra.mxu0 %v1177
      %1491 = vmatprep.subr.bf16.mxu0 %v1182
      %1492 = vmatpush1.bf16.msra.mxu0 %v1181
      %1493 = vmatprep.mubr.bf16.mxu0 %v706
      %1494 = vmatmul.mubr.bf16.gmra.mrb[0].mxu0 %v694
      %v1495 = vpop.f32.mrb[0].mxu0
      %v1496 = vadd.f32 0.0, %v1495
      %v1497 = vpop.f32.mrb[0].mxu0
      %v1498 = vadd.f32 0.0, %v1497
      %v1499 = vpop.f32.mrb[0].mxu0
      %v1500 = vadd.f32 0.0, %v1499
      %v1501 = vpop.f32.mrb[0].mxu0
      %v1502 = vadd.f32 0.0, %v1501
      %1503 = vdwg.mxu0
      %1504 = vmatprep.subr.bf16.mxu0 %v1186
      %1505 = vmatpush1.bf16.msra.mxu0 %v1185
      %1506 = vmatprep.subr.bf16.mxu0 %v1190
      %1507 = vmatpush1.bf16.msra.mxu0 %v1189
      %1508 = vmatprep.subr.bf16.mxu0 %v1194
      %1509 = vmatpush1.bf16.msra.mxu0 %v1193
      %1510 = vmatprep.subr.bf16.mxu0 %v1198
      %1511 = vmatpush1.bf16.msra.mxu0 %v1197
      %1512 = vmatprep.subr.bf16.mxu0 %v1202
      %1513 = vmatpush1.bf16.msra.mxu0 %v1201
      %1514 = vmatprep.subr.bf16.mxu0 %v1206
      %1515 = vmatpush1.bf16.msra.mxu0 %v1205
      %1516 = vmatprep.subr.bf16.mxu0 %v1210
      %1517 = vmatpush1.bf16.msra.mxu0 %v1209
      %1518 = vmatprep.subr.bf16.mxu0 %v1214
      %1519 = vmatpush1.bf16.msra.mxu0 %v1213
      %1520 = vmatprep.subr.bf16.mxu0 %v1218
      %1521 = vmatpush1.bf16.msra.mxu0 %v1217
      %1522 = vmatprep.subr.bf16.mxu0 %v1222
      %1523 = vmatpush1.bf16.msra.mxu0 %v1221
      %1524 = vmatprep.subr.bf16.mxu0 %v1226
      %1525 = vmatpush1.bf16.msra.mxu0 %v1225
      %1526 = vmatprep.subr.bf16.mxu0 %v1230
      %1527 = vmatpush1.bf16.msra.mxu0 %v1229
      %1528 = vmatprep.subr.bf16.mxu0 %v1234
      %1529 = vmatpush1.bf16.msra.mxu0 %v1233
      %1530 = vmatprep.subr.bf16.mxu0 %v1238
      %1531 = vmatpush1.bf16.msra.mxu0 %v1237
      %1532 = vmatprep.subr.bf16.mxu0 %v1242
      %1533 = vmatpush1.bf16.msra.mxu0 %v1241
      %1534 = vmatprep.subr.bf16.mxu0 %v1246
      %1535 = vmatpush1.bf16.msra.mxu0 %v1245
      %1536 = vmatprep.mubr.bf16.mxu0 %v730
      %1537 = vmatmul.mubr.bf16.gmra.mrb[0].mxu0 %v718
      %v1538 = vpop.f32.mrb[0].mxu0
      %v1539 = vadd.f32 %v1496, %v1538
      %v1540 = vpop.f32.mrb[0].mxu0
      %v1541 = vadd.f32 %v1498, %v1540
      %v1542 = vpop.f32.mrb[0].mxu0
      %v1543 = vadd.f32 %v1500, %v1542
      %v1544 = vpop.f32.mrb[0].mxu0
      %v1545 = vadd.f32 %v1502, %v1544
      %1546 = vdwg.mxu0
      %v1675 = vunpack.c.l.b16 %v409
      %v1676 = vunpack.c.h.b16 %v409
      %v1677 = vunpack.c.l.b16 %v410
      %v1678 = vunpack.c.h.b16 %v410
      %v1679 = vunpack.c.l.b16 %v411
      %v1680 = vunpack.c.h.b16 %v411
      %v1681 = vunpack.c.l.b16 %v412
      %v1682 = vunpack.c.h.b16 %v412
      %v1683 = vunpack.c.l.b16 %v413
      %v1684 = vunpack.c.h.b16 %v413
      %v1685 = vunpack.c.l.b16 %v414
      %v1686 = vunpack.c.h.b16 %v414
      %v1687 = vunpack.c.l.b16 %v415
      %v1688 = vunpack.c.h.b16 %v415
      %v1689 = vunpack.c.l.b16 %v416
      %v1690 = vunpack.c.h.b16 %v416
      %v1691 = vunpack.c.l.b16 %v417
      %v1692 = vunpack.c.h.b16 %v417
      %v1693 = vunpack.c.l.b16 %v418
      %v1694 = vunpack.c.h.b16 %v418
      %v1695 = vunpack.c.l.b16 %v419
      %v1696 = vunpack.c.h.b16 %v419
      %v1697 = vunpack.c.l.b16 %v420
      %v1698 = vunpack.c.h.b16 %v420
      %v1699 = vunpack.c.l.b16 %v421
      %v1700 = vunpack.c.h.b16 %v421
      %v1701 = vunpack.c.l.b16 %v422
      %v1702 = vunpack.c.h.b16 %v422
      %v1703 = vunpack.c.l.b16 %v423
      %v1704 = vunpack.c.h.b16 %v423
      %v1705 = vunpack.c.l.b16 %v424
      %v1706 = vunpack.c.h.b16 %v424
      %v1707 = vunpack.c.l.b16 %v425
      %v1708 = vunpack.c.h.b16 %v425
      %v1709 = vunpack.c.l.b16 %v426
      %v1710 = vunpack.c.h.b16 %v426
      %v1711 = vunpack.c.l.b16 %v427
      %v1712 = vunpack.c.h.b16 %v427
      %v1713 = vunpack.c.l.b16 %v428
      %v1714 = vunpack.c.h.b16 %v428
      %v1715 = vunpack.c.l.b16 %v429
      %v1716 = vunpack.c.h.b16 %v429
      %v1717 = vunpack.c.l.b16 %v430
      %v1718 = vunpack.c.h.b16 %v430
      %v1719 = vunpack.c.l.b16 %v431
      %v1720 = vunpack.c.h.b16 %v431
      %v1721 = vunpack.c.l.b16 %v432
      %v1722 = vunpack.c.h.b16 %v432
      %v1723 = vunpack.c.l.b16 %v433
      %v1724 = vunpack.c.h.b16 %v433
      %v1725 = vunpack.c.l.b16 %v434
      %v1726 = vunpack.c.h.b16 %v434
      %v1727 = vunpack.c.l.b16 %v435
      %v1728 = vunpack.c.h.b16 %v435
      %v1729 = vunpack.c.l.b16 %v436
      %v1730 = vunpack.c.h.b16 %v436
      %v1731 = vunpack.c.l.b16 %v437
      %v1732 = vunpack.c.h.b16 %v437
      %v1733 = vunpack.c.l.b16 %v438
      %v1734 = vunpack.c.h.b16 %v438
      %v1735 = vunpack.c.l.b16 %v439
      %v1736 = vunpack.c.h.b16 %v439
      %v1737 = vunpack.c.l.b16 %v440
      %v1738 = vunpack.c.h.b16 %v440
      %v1739 = vunpack.c.l.b16 %v441
      %v1740 = vunpack.c.h.b16 %v441
      %v1741 = vunpack.c.l.b16 %v442
      %v1742 = vunpack.c.h.b16 %v442
      %v1743 = vunpack.c.l.b16 %v443
      %v1744 = vunpack.c.h.b16 %v443
      %v1745 = vunpack.c.l.b16 %v444
      %v1746 = vunpack.c.h.b16 %v444
      %v1747 = vunpack.c.l.b16 %v445
      %v1748 = vunpack.c.h.b16 %v445
      %v1749 = vunpack.c.l.b16 %v446
      %v1750 = vunpack.c.h.b16 %v446
      %v1751 = vunpack.c.l.b16 %v447
      %v1752 = vunpack.c.h.b16 %v447
      %v1753 = vunpack.c.l.b16 %v448
      %v1754 = vunpack.c.h.b16 %v448
      %v1755 = vunpack.c.l.b16 %v449
      %v1756 = vunpack.c.h.b16 %v449
      %v1757 = vunpack.c.l.b16 %v450
      %v1758 = vunpack.c.h.b16 %v450
      %v1759 = vunpack.c.l.b16 %v451
      %v1760 = vunpack.c.h.b16 %v451
      %v1761 = vunpack.c.l.b16 %v452
      %v1762 = vunpack.c.h.b16 %v452
      %v1763 = vunpack.c.l.b16 %v453
      %v1764 = vunpack.c.h.b16 %v453
      %v1765 = vunpack.c.l.b16 %v454
      %v1766 = vunpack.c.h.b16 %v454
      %v1767 = vunpack.c.l.b16 %v455
      %v1768 = vunpack.c.h.b16 %v455
      %v1769 = vunpack.c.l.b16 %v456
      %v1770 = vunpack.c.h.b16 %v456
      %v1771 = vunpack.c.l.b16 %v457
      %v1772 = vunpack.c.h.b16 %v457
      %v1773 = vunpack.c.l.b16 %v458
      %v1774 = vunpack.c.h.b16 %v458
      %v1775 = vunpack.c.l.b16 %v459
      %v1776 = vunpack.c.h.b16 %v459
      %v1777 = vunpack.c.l.b16 %v460
      %v1778 = vunpack.c.h.b16 %v460
      %v1779 = vunpack.c.l.b16 %v461
      %v1780 = vunpack.c.h.b16 %v461
      %v1781 = vunpack.c.l.b16 %v462
      %v1782 = vunpack.c.h.b16 %v462
      %v1783 = vunpack.c.l.b16 %v463
      %v1784 = vunpack.c.h.b16 %v463
      %v1785 = vunpack.c.l.b16 %v464
      %v1786 = vunpack.c.h.b16 %v464
      %v1787 = vunpack.c.l.b16 %v465
      %v1788 = vunpack.c.h.b16 %v465
      %v1789 = vunpack.c.l.b16 %v466
      %v1790 = vunpack.c.h.b16 %v466
      %v1791 = vunpack.c.l.b16 %v467
      %v1792 = vunpack.c.h.b16 %v467
      %v1793 = vunpack.c.l.b16 %v468
      %v1794 = vunpack.c.h.b16 %v468
      %v1795 = vunpack.c.l.b16 %v469
      %v1796 = vunpack.c.h.b16 %v469
      %v1797 = vunpack.c.l.b16 %v470
      %v1798 = vunpack.c.h.b16 %v470
      %v1799 = vunpack.c.l.b16 %v471
      %v1800 = vunpack.c.h.b16 %v471
      %v1801 = vunpack.c.l.b16 %v472
      %v1802 = vunpack.c.h.b16 %v472
      %v1803 = vunpack.c.l.b16 %v473
      %v1804 = vunpack.c.h.b16 %v473
      %v1805 = vunpack.c.l.b16 %v474
      %v1806 = vunpack.c.h.b16 %v474
      %v1807 = vunpack.c.l.b16 %v475
      %v1808 = vunpack.c.h.b16 %v475
      %v1809 = vunpack.c.l.b16 %v476
      %v1810 = vunpack.c.h.b16 %v476
      %v1811 = vunpack.c.l.b16 %v477
      %v1812 = vunpack.c.h.b16 %v477
      %v1813 = vunpack.c.l.b16 %v478
      %v1814 = vunpack.c.h.b16 %v478
      %v1815 = vunpack.c.l.b16 %v479
      %v1816 = vunpack.c.h.b16 %v479
      %v1817 = vunpack.c.l.b16 %v480
      %v1818 = vunpack.c.h.b16 %v480
      %v1819 = vunpack.c.l.b16 %v481
      %v1820 = vunpack.c.h.b16 %v481
      %v1821 = vunpack.c.l.b16 %v482
      %v1822 = vunpack.c.h.b16 %v482
      %v1823 = vunpack.c.l.b16 %v483
      %v1824 = vunpack.c.h.b16 %v483
      %v1825 = vunpack.c.l.b16 %v484
      %v1826 = vunpack.c.h.b16 %v484
      %v1827 = vunpack.c.l.b16 %v485
      %v1828 = vunpack.c.h.b16 %v485
      %v1829 = vunpack.c.l.b16 %v486
      %v1830 = vunpack.c.h.b16 %v486
      %v1831 = vunpack.c.l.b16 %v487
      %v1832 = vunpack.c.h.b16 %v487
      %v1833 = vunpack.c.l.b16 %v488
      %v1834 = vunpack.c.h.b16 %v488
      %v1835 = vunpack.c.l.b16 %v489
      %v1836 = vunpack.c.h.b16 %v489
      %v1837 = vunpack.c.l.b16 %v490
      %v1838 = vunpack.c.h.b16 %v490
      %v1839 = vunpack.c.l.b16 %v491
      %v1840 = vunpack.c.h.b16 %v491
      %v1841 = vunpack.c.l.b16 %v492
      %v1842 = vunpack.c.h.b16 %v492
      %v1843 = vunpack.c.l.b16 %v493
      %v1844 = vunpack.c.h.b16 %v493
      %v1845 = vunpack.c.l.b16 %v494
      %v1846 = vunpack.c.h.b16 %v494
      %v1847 = vunpack.c.l.b16 %v495
      %v1848 = vunpack.c.h.b16 %v495
      %v1849 = vunpack.c.l.b16 %v496
      %v1850 = vunpack.c.h.b16 %v496
      %v1851 = vunpack.c.l.b16 %v497
      %v1852 = vunpack.c.h.b16 %v497
      %v1853 = vunpack.c.l.b16 %v498
      %v1854 = vunpack.c.h.b16 %v498
      %v1855 = vunpack.c.l.b16 %v499
      %v1856 = vunpack.c.h.b16 %v499
      %v1857 = vunpack.c.l.b16 %v500
      %v1858 = vunpack.c.h.b16 %v500
      %v1859 = vunpack.c.l.b16 %v501
      %v1860 = vunpack.c.h.b16 %v501
      %v1861 = vunpack.c.l.b16 %v502
      %v1862 = vunpack.c.h.b16 %v502
      %v1863 = vunpack.c.l.b16 %v503
      %v1864 = vunpack.c.h.b16 %v503
      %v1865 = vunpack.c.l.b16 %v504
      %v1866 = vunpack.c.h.b16 %v504
      %v1867 = vunpack.c.l.b16 %v505
      %v1868 = vunpack.c.h.b16 %v505
      %v1869 = vunpack.c.l.b16 %v506
      %v1870 = vunpack.c.h.b16 %v506
      %v1871 = vunpack.c.l.b16 %v507
      %v1872 = vunpack.c.h.b16 %v507
      %v1873 = vunpack.c.l.b16 %v508
      %v1874 = vunpack.c.h.b16 %v508
      %v1875 = vunpack.c.l.b16 %v509
      %v1876 = vunpack.c.h.b16 %v509
      %v1877 = vunpack.c.l.b16 %v510
      %v1878 = vunpack.c.h.b16 %v510
      %v1879 = vunpack.c.l.b16 %v511
      %v1880 = vunpack.c.h.b16 %v511
      %v1881 = vunpack.c.l.b16 %v512
      %v1882 = vunpack.c.h.b16 %v512
      %v1883 = vunpack.c.l.b16 %v513
      %v1884 = vunpack.c.h.b16 %v513
      %v1885 = vunpack.c.l.b16 %v514
      %v1886 = vunpack.c.h.b16 %v514
      %v1887 = vunpack.c.l.b16 %v515
      %v1888 = vunpack.c.h.b16 %v515
      %v1889 = vunpack.c.l.b16 %v516
      %v1890 = vunpack.c.h.b16 %v516
      %v1891 = vunpack.c.l.b16 %v517
      %v1892 = vunpack.c.h.b16 %v517
      %v1893 = vunpack.c.l.b16 %v518
      %v1894 = vunpack.c.h.b16 %v518
      %v1895 = vunpack.c.l.b16 %v519
      %v1896 = vunpack.c.h.b16 %v519
      %v1897 = vunpack.c.l.b16 %v520
      %v1898 = vunpack.c.h.b16 %v520
      %v1899 = vunpack.c.l.b16 %v521
      %v1900 = vunpack.c.h.b16 %v521
      %v1901 = vunpack.c.l.b16 %v522
      %v1902 = vunpack.c.h.b16 %v522
      %v1903 = vunpack.c.l.b16 %v523
      %v1904 = vunpack.c.h.b16 %v523
      %v1905 = vunpack.c.l.b16 %v524
      %v1906 = vunpack.c.h.b16 %v524
      %v1907 = vunpack.c.l.b16 %v525
      %v1908 = vunpack.c.h.b16 %v525
      %v1909 = vunpack.c.l.b16 %v526
      %v1910 = vunpack.c.h.b16 %v526
      %v1911 = vunpack.c.l.b16 %v527
      %v1912 = vunpack.c.h.b16 %v527
      %v1913 = vunpack.c.l.b16 %v528
      %v1914 = vunpack.c.h.b16 %v528
      %v1915 = vunpack.c.l.b16 %v529
      %v1916 = vunpack.c.h.b16 %v529
      %v1917 = vunpack.c.l.b16 %v530
      %v1918 = vunpack.c.h.b16 %v530
      %v1919 = vunpack.c.l.b16 %v531
      %v1920 = vunpack.c.h.b16 %v531
      %v1921 = vunpack.c.l.b16 %v532
      %v1922 = vunpack.c.h.b16 %v532
      %v1923 = vunpack.c.l.b16 %v533
      %v1924 = vunpack.c.h.b16 %v533
      %v1925 = vunpack.c.l.b16 %v534
      %v1926 = vunpack.c.h.b16 %v534
      %v1927 = vunpack.c.l.b16 %v535
      %v1928 = vunpack.c.h.b16 %v535
      %v1929 = vunpack.c.l.b16 %v536
      %v1930 = vunpack.c.h.b16 %v536
      %v1931 = vpack.c.b16 %v1679, %v1675
      %v1932 = vpack.c.b16 %v1680, %v1676
      %v1933 = vpack.c.b16 %v1681, %v1677
      %v1934 = vpack.c.b16 %v1682, %v1678
      %v1935 = vpack.c.b16 %v1687, %v1683
      %v1936 = vpack.c.b16 %v1688, %v1684
      %v1937 = vpack.c.b16 %v1689, %v1685
      %v1938 = vpack.c.b16 %v1690, %v1686
      %v1939 = vpack.c.b16 %v1695, %v1691
      %v1940 = vpack.c.b16 %v1696, %v1692
      %v1941 = vpack.c.b16 %v1697, %v1693
      %v1942 = vpack.c.b16 %v1698, %v1694
      %v1943 = vpack.c.b16 %v1703, %v1699
      %v1944 = vpack.c.b16 %v1704, %v1700
      %v1945 = vpack.c.b16 %v1705, %v1701
      %v1946 = vpack.c.b16 %v1706, %v1702
      %v1947 = vpack.c.b16 %v1711, %v1707
      %v1948 = vpack.c.b16 %v1712, %v1708
      %v1949 = vpack.c.b16 %v1713, %v1709
      %v1950 = vpack.c.b16 %v1714, %v1710
      %v1951 = vpack.c.b16 %v1719, %v1715
      %v1952 = vpack.c.b16 %v1720, %v1716
      %v1953 = vpack.c.b16 %v1721, %v1717
      %v1954 = vpack.c.b16 %v1722, %v1718
      %v1955 = vpack.c.b16 %v1727, %v1723
      %v1956 = vpack.c.b16 %v1728, %v1724
      %v1957 = vpack.c.b16 %v1729, %v1725
      %v1958 = vpack.c.b16 %v1730, %v1726
      %v1959 = vpack.c.b16 %v1735, %v1731
      %v1960 = vpack.c.b16 %v1736, %v1732
      %v1961 = vpack.c.b16 %v1737, %v1733
      %v1962 = vpack.c.b16 %v1738, %v1734
      %v1963 = vpack.c.b16 %v1743, %v1739
      %v1964 = vpack.c.b16 %v1744, %v1740
      %v1965 = vpack.c.b16 %v1745, %v1741
      %v1966 = vpack.c.b16 %v1746, %v1742
      %v1967 = vpack.c.b16 %v1751, %v1747
      %v1968 = vpack.c.b16 %v1752, %v1748
      %v1969 = vpack.c.b16 %v1753, %v1749
      %v1970 = vpack.c.b16 %v1754, %v1750
      %v1971 = vpack.c.b16 %v1759, %v1755
      %v1972 = vpack.c.b16 %v1760, %v1756
      %v1973 = vpack.c.b16 %v1761, %v1757
      %v1974 = vpack.c.b16 %v1762, %v1758
      %v1975 = vpack.c.b16 %v1767, %v1763
      %v1976 = vpack.c.b16 %v1768, %v1764
      %v1977 = vpack.c.b16 %v1769, %v1765
      %v1978 = vpack.c.b16 %v1770, %v1766
      %v1979 = vpack.c.b16 %v1775, %v1771
      %v1980 = vpack.c.b16 %v1776, %v1772
      %v1981 = vpack.c.b16 %v1777, %v1773
      %v1982 = vpack.c.b16 %v1778, %v1774
      %v1983 = vpack.c.b16 %v1783, %v1779
      %v1984 = vpack.c.b16 %v1784, %v1780
      %v1985 = vpack.c.b16 %v1785, %v1781
      %v1986 = vpack.c.b16 %v1786, %v1782
      %v1987 = vpack.c.b16 %v1791, %v1787
      %v1988 = vpack.c.b16 %v1792, %v1788
      %v1989 = vpack.c.b16 %v1793, %v1789
      %v1990 = vpack.c.b16 %v1794, %v1790
      %v1991 = vpack.c.b16 %v1799, %v1795
      %v1992 = vpack.c.b16 %v1800, %v1796
      %v1993 = vpack.c.b16 %v1801, %v1797
      %v1994 = vpack.c.b16 %v1802, %v1798
      %v1995 = vpack.c.b16 %v1807, %v1803
      %v1996 = vpack.c.b16 %v1808, %v1804
      %v1997 = vpack.c.b16 %v1809, %v1805
      %v1998 = vpack.c.b16 %v1810, %v1806
      %v1999 = vpack.c.b16 %v1815, %v1811
      %v2000 = vpack.c.b16 %v1816, %v1812
      %v2001 = vpack.c.b16 %v1817, %v1813
      %v2002 = vpack.c.b16 %v1818, %v1814
      %v2003 = vpack.c.b16 %v1823, %v1819
      %v2004 = vpack.c.b16 %v1824, %v1820
      %v2005 = vpack.c.b16 %v1825, %v1821
      %v2006 = vpack.c.b16 %v1826, %v1822
      %v2007 = vpack.c.b16 %v1831, %v1827
      %v2008 = vpack.c.b16 %v1832, %v1828
      %v2009 = vpack.c.b16 %v1833, %v1829
      %v2010 = vpack.c.b16 %v1834, %v1830
      %v2011 = vpack.c.b16 %v1839, %v1835
      %v2012 = vpack.c.b16 %v1840, %v1836
      %v2013 = vpack.c.b16 %v1841, %v1837
      %v2014 = vpack.c.b16 %v1842, %v1838
      %v2015 = vpack.c.b16 %v1847, %v1843
      %v2016 = vpack.c.b16 %v1848, %v1844
      %v2017 = vpack.c.b16 %v1849, %v1845
      %v2018 = vpack.c.b16 %v1850, %v1846
      %v2019 = vpack.c.b16 %v1855, %v1851
      %v2020 = vpack.c.b16 %v1856, %v1852
      %v2021 = vpack.c.b16 %v1857, %v1853
      %v2022 = vpack.c.b16 %v1858, %v1854
      %v2023 = vpack.c.b16 %v1863, %v1859
      %v2024 = vpack.c.b16 %v1864, %v1860
      %v2025 = vpack.c.b16 %v1865, %v1861
      %v2026 = vpack.c.b16 %v1866, %v1862
      %v2027 = vpack.c.b16 %v1871, %v1867
      %v2028 = vpack.c.b16 %v1872, %v1868
      %v2029 = vpack.c.b16 %v1873, %v1869
      %v2030 = vpack.c.b16 %v1874, %v1870
      %v2031 = vpack.c.b16 %v1879, %v1875
      %v2032 = vpack.c.b16 %v1880, %v1876
      %v2033 = vpack.c.b16 %v1881, %v1877
      %v2034 = vpack.c.b16 %v1882, %v1878
      %v2035 = vpack.c.b16 %v1887, %v1883
      %v2036 = vpack.c.b16 %v1888, %v1884
      %v2037 = vpack.c.b16 %v1889, %v1885
      %v2038 = vpack.c.b16 %v1890, %v1886
      %v2039 = vpack.c.b16 %v1895, %v1891
      %v2040 = vpack.c.b16 %v1896, %v1892
      %v2041 = vpack.c.b16 %v1897, %v1893
      %v2042 = vpack.c.b16 %v1898, %v1894
      %v2043 = vpack.c.b16 %v1903, %v1899
      %v2044 = vpack.c.b16 %v1904, %v1900
      %v2045 = vpack.c.b16 %v1905, %v1901
      %v2046 = vpack.c.b16 %v1906, %v1902
      %v2047 = vpack.c.b16 %v1911, %v1907
      %v2048 = vpack.c.b16 %v1912, %v1908
      %v2049 = vpack.c.b16 %v1913, %v1909
      %v2050 = vpack.c.b16 %v1914, %v1910
      %v2051 = vpack.c.b16 %v1919, %v1915
      %v2052 = vpack.c.b16 %v1920, %v1916
      %v2053 = vpack.c.b16 %v1921, %v1917
      %v2054 = vpack.c.b16 %v1922, %v1918
      %v2055 = vpack.c.b16 %v1927, %v1923
      %v2056 = vpack.c.b16 %v1928, %v1924
      %v2057 = vpack.c.b16 %v1929, %v1925
      %v2058 = vpack.c.b16 %v1930, %v1926
      %2187 = vmatprep.subr.bf16.mxu0 %v1932
      %2188 = vmatpush1.bf16.msra.mxu0 %v1931
      %2189 = vmatprep.subr.bf16.mxu0 %v1936
      %2190 = vmatpush1.bf16.msra.mxu0 %v1935
      %2191 = vmatprep.subr.bf16.mxu0 %v1940
      %2192 = vmatpush1.bf16.msra.mxu0 %v1939
      %2193 = vmatprep.subr.bf16.mxu0 %v1944
      %2194 = vmatpush1.bf16.msra.mxu0 %v1943
      %2195 = vmatprep.subr.bf16.mxu0 %v1948
      %2196 = vmatpush1.bf16.msra.mxu0 %v1947
      %2197 = vmatprep.subr.bf16.mxu0 %v1952
      %2198 = vmatpush1.bf16.msra.mxu0 %v1951
      %2199 = vmatprep.subr.bf16.mxu0 %v1956
      %2200 = vmatpush1.bf16.msra.mxu0 %v1955
      %2201 = vmatprep.subr.bf16.mxu0 %v1960
      %2202 = vmatpush1.bf16.msra.mxu0 %v1959
      %2203 = vmatprep.subr.bf16.mxu0 %v1964
      %2204 = vmatpush1.bf16.msra.mxu0 %v1963
      %2205 = vmatprep.subr.bf16.mxu0 %v1968
      %2206 = vmatpush1.bf16.msra.mxu0 %v1967
      %2207 = vmatprep.subr.bf16.mxu0 %v1972
      %2208 = vmatpush1.bf16.msra.mxu0 %v1971
      %2209 = vmatprep.subr.bf16.mxu0 %v1976
      %2210 = vmatpush1.bf16.msra.mxu0 %v1975
      %2211 = vmatprep.subr.bf16.mxu0 %v1980
      %2212 = vmatpush1.bf16.msra.mxu0 %v1979
      %2213 = vmatprep.subr.bf16.mxu0 %v1984
      %2214 = vmatpush1.bf16.msra.mxu0 %v1983
      %2215 = vmatprep.subr.bf16.mxu0 %v1988
      %2216 = vmatpush1.bf16.msra.mxu0 %v1987
      %2217 = vmatprep.subr.bf16.mxu0 %v1992
      %2218 = vmatpush1.bf16.msra.mxu0 %v1991
      %2219 = vmatprep.mubr.bf16.mxu0 %v406
      %2220 = vmatmul.mubr.bf16.gmra.mrb[0].mxu0 %v405
      %v2221 = vpop.f32.mrb[0].mxu0
      %v2222 = vadd.f32 %v1453, %v2221
      %v2223 = vpop.f32.mrb[0].mxu0
      %v2224 = vadd.f32 %v1455, %v2223
      %v2225 = vpop.f32.mrb[0].mxu0
      %v2226 = vadd.f32 %v1457, %v2225
      %v2227 = vpop.f32.mrb[0].mxu0
      %v2228 = vadd.f32 %v1459, %v2227
      %2229 = vdwg.mxu0
      %2230 = vmatprep.subr.bf16.mxu0 %v1996
      %2231 = vmatpush1.bf16.msra.mxu0 %v1995
      %2232 = vmatprep.subr.bf16.mxu0 %v2000
      %2233 = vmatpush1.bf16.msra.mxu0 %v1999
      %2234 = vmatprep.subr.bf16.mxu0 %v2004
      %2235 = vmatpush1.bf16.msra.mxu0 %v2003
      %2236 = vmatprep.subr.bf16.mxu0 %v2008
      %2237 = vmatpush1.bf16.msra.mxu0 %v2007
      %2238 = vmatprep.subr.bf16.mxu0 %v2012
      %2239 = vmatpush1.bf16.msra.mxu0 %v2011
      %2240 = vmatprep.subr.bf16.mxu0 %v2016
      %2241 = vmatpush1.bf16.msra.mxu0 %v2015
      %2242 = vmatprep.subr.bf16.mxu0 %v2020
      %2243 = vmatpush1.bf16.msra.mxu0 %v2019
      %2244 = vmatprep.subr.bf16.mxu0 %v2024
      %2245 = vmatpush1.bf16.msra.mxu0 %v2023
      %2246 = vmatprep.subr.bf16.mxu0 %v2028
      %2247 = vmatpush1.bf16.msra.mxu0 %v2027
      %2248 = vmatprep.subr.bf16.mxu0 %v2032
      %2249 = vmatpush1.bf16.msra.mxu0 %v2031
      %2250 = vmatprep.subr.bf16.mxu0 %v2036
      %2251 = vmatpush1.bf16.msra.mxu0 %v2035
      %2252 = vmatprep.subr.bf16.mxu0 %v2040
      %2253 = vmatpush1.bf16.msra.mxu0 %v2039
      %2254 = vmatprep.subr.bf16.mxu0 %v2044
      %2255 = vmatpush1.bf16.msra.mxu0 %v2043
      %2256 = vmatprep.subr.bf16.mxu0 %v2048
      %2257 = vmatpush1.bf16.msra.mxu0 %v2047
      %2258 = vmatprep.subr.bf16.mxu0 %v2052
      %2259 = vmatpush1.bf16.msra.mxu0 %v2051
      %2260 = vmatprep.subr.bf16.mxu0 %v2056
      %2261 = vmatpush1.bf16.msra.mxu0 %v2055
      %2262 = vmatprep.mubr.bf16.mxu0 %v408
      %2263 = vmatmul.mubr.bf16.gmra.mrb[0].mxu0 %v407
      %v2264 = vpop.f32.mrb[0].mxu0
      %v2265 = vadd.f32 %v2222, %v2264
      %v2266 = vpop.f32.mrb[0].mxu0
      %v2267 = vadd.f32 %v2224, %v2266
      %v2268 = vpop.f32.mrb[0].mxu0
      %v2269 = vadd.f32 %v2226, %v2268
      %v2270 = vpop.f32.mrb[0].mxu0
      %v2271 = vadd.f32 %v2228, %v2270
      %2272 = vdwg.mxu0
      %2273 = vmatprep.subr.bf16.mxu0 %v1934
      %2274 = vmatpush1.bf16.msra.mxu0 %v1933
      %2275 = vmatprep.subr.bf16.mxu0 %v1938
      %2276 = vmatpush1.bf16.msra.mxu0 %v1937
      %2277 = vmatprep.subr.bf16.mxu0 %v1942
      %2278 = vmatpush1.bf16.msra.mxu0 %v1941
      %2279 = vmatprep.subr.bf16.mxu0 %v1946
      %2280 = vmatpush1.bf16.msra.mxu0 %v1945
      %2281 = vmatprep.subr.bf16.mxu0 %v1950
      %2282 = vmatpush1.bf16.msra.mxu0 %v1949
      %2283 = vmatprep.subr.bf16.mxu0 %v1954
      %2284 = vmatpush1.bf16.msra.mxu0 %v1953
      %2285 = vmatprep.subr.bf16.mxu0 %v1958
      %2286 = vmatpush1.bf16.msra.mxu0 %v1957
      %2287 = vmatprep.subr.bf16.mxu0 %v1962
      %2288 = vmatpush1.bf16.msra.mxu0 %v1961
      %2289 = vmatprep.subr.bf16.mxu0 %v1966
      %2290 = vmatpush1.bf16.msra.mxu0 %v1965
      %2291 = vmatprep.subr.bf16.mxu0 %v1970
      %2292 = vmatpush1.bf16.msra.mxu0 %v1969
      %2293 = vmatprep.subr.bf16.mxu0 %v1974
      %2294 = vmatpush1.bf16.msra.mxu0 %v1973
      %2295 = vmatprep.subr.bf16.mxu0 %v1978
      %2296 = vmatpush1.bf16.msra.mxu0 %v1977
      %2297 = vmatprep.subr.bf16.mxu0 %v1982
      %2298 = vmatpush1.bf16.msra.mxu0 %v1981
      %2299 = vmatprep.subr.bf16.mxu0 %v1986
      %2300 = vmatpush1.bf16.msra.mxu0 %v1985
      %2301 = vmatprep.subr.bf16.mxu0 %v1990
      %2302 = vmatpush1.bf16.msra.mxu0 %v1989
      %2303 = vmatprep.subr.bf16.mxu0 %v1994
      %2304 = vmatpush1.bf16.msra.mxu0 %v1993
      %2305 = vmatprep.mubr.bf16.mxu0 %v406
      %2306 = vmatmul.mubr.bf16.gmra.mrb[0].mxu0 %v405
      %v2307 = vpop.f32.mrb[0].mxu0
      %v2308 = vadd.f32 %v1539, %v2307
      %v2309 = vpop.f32.mrb[0].mxu0
      %v2310 = vadd.f32 %v1541, %v2309
      %v2311 = vpop.f32.mrb[0].mxu0
      %v2312 = vadd.f32 %v1543, %v2311
      %v2313 = vpop.f32.mrb[0].mxu0
      %v2314 = vadd.f32 %v1545, %v2313
      %2315 = vdwg.mxu0
      %2316 = vmatprep.subr.bf16.mxu0 %v1998
      %2317 = vmatpush1.bf16.msra.mxu0 %v1997
      %2318 = vmatprep.subr.bf16.mxu0 %v2002
      %2319 = vmatpush1.bf16.msra.mxu0 %v2001
      %2320 = vmatprep.subr.bf16.mxu0 %v2006
      %2321 = vmatpush1.bf16.msra.mxu0 %v2005
      %2322 = vmatprep.subr.bf16.mxu0 %v2010
      %2323 = vmatpush1.bf16.msra.mxu0 %v2009
      %2324 = vmatprep.subr.bf16.mxu0 %v2014
      %2325 = vmatpush1.bf16.msra.mxu0 %v2013
      %2326 = vmatprep.subr.bf16.mxu0 %v2018
      %2327 = vmatpush1.bf16.msra.mxu0 %v2017
      %2328 = vmatprep.subr.bf16.mxu0 %v2022
      %2329 = vmatpush1.bf16.msra.mxu0 %v2021
      %2330 = vmatprep.subr.bf16.mxu0 %v2026
      %2331 = vmatpush1.bf16.msra.mxu0 %v2025
      %2332 = vmatprep.subr.bf16.mxu0 %v2030
      %2333 = vmatpush1.bf16.msra.mxu0 %v2029
      %2334 = vmatprep.subr.bf16.mxu0 %v2034
      %2335 = vmatpush1.bf16.msra.mxu0 %v2033
      %2336 = vmatprep.subr.bf16.mxu0 %v2038
      %2337 = vmatpush1.bf16.msra.mxu0 %v2037
      %2338 = vmatprep.subr.bf16.mxu0 %v2042
      %2339 = vmatpush1.bf16.msra.mxu0 %v2041
      %2340 = vmatprep.subr.bf16.mxu0 %v2046
      %2341 = vmatpush1.bf16.msra.mxu0 %v2045
      %2342 = vmatprep.subr.bf16.mxu0 %v2050
      %2343 = vmatpush1.bf16.msra.mxu0 %v2049
      %2344 = vmatprep.subr.bf16.mxu0 %v2054
      %2345 = vmatpush1.bf16.msra.mxu0 %v2053
      %2346 = vmatprep.subr.bf16.mxu0 %v2058
      %2347 = vmatpush1.bf16.msra.mxu0 %v2057
      %2348 = vmatprep.mubr.bf16.mxu0 %v408
      %2349 = vmatmul.mubr.bf16.gmra.mrb[0].mxu0 %v407
      %v2350 = vpop.f32.mrb[0].mxu0
      %v2351 = vadd.f32 %v2308, %v2350
      %v2352 = vpop.f32.mrb[0].mxu0
      %v2353 = vadd.f32 %v2310, %v2352
      %v2354 = vpop.f32.mrb[0].mxu0
      %v2355 = vadd.f32 %v2312, %v2354
      %v2356 = vpop.f32.mrb[0].mxu0
      %v2357 = vadd.f32 %v2314, %v2356
      %2358 = vdwg.mxu0
      %v2359 = vld [vmem:[#allocation2] sm:$0xfc]
      %v2360 = vld [vmem:[#allocation2 + $0x8] sm:$0xfc]
      %v2361 = vld [vmem:[#allocation2 + $0x10] sm:$0xfc]
      %v2362 = vld [vmem:[#allocation2 + $0x18] sm:$0xfc]
      %v2363 = vld [vmem:[#allocation2 + $0x40] sm:$0x3]
      %v2364 = vld [vmem:[#allocation2 + $0x48] sm:$0x3]
      %v2365 = vld [vmem:[#allocation2 + $0x50] sm:$0x3]
      %v2366 = vld [vmem:[#allocation2 + $0x58] sm:$0x3]
      %v2367 = vpack.c.bf16 %v401, %v2359
      %v2368 = vpack.c.bf16 %v402, %v2360
      %v2369 = vpack.c.bf16 %v403, %v2361
      %v2370 = vpack.c.bf16 %v404, %v2362
      %v2371 = vpack.c.bf16 %v2363, %v2363
      %v2372 = vpack.c.bf16 %v2364, %v2364
      %v2373 = vpack.c.bf16 %v2365, %v2365
      %v2374 = vpack.c.bf16 %v2366, %v2366
      %s2375 = scalar_lea.vmem %s1, 2048
      %v2376 = vld [vmem:[%s2375] sm:$0xff]
      %v2377 = vld [vmem:[%s2375 + $0x8] sm:$0xff]
      %v2378 = vld [vmem:[%s2375 + $0x10] sm:$0xff]
      %v2379 = vld [vmem:[%s2375 + $0x18] sm:$0xff]
      %v2380 = vld [vmem:[%s2375 + $0x20] sm:$0xff]
      %v2381 = vld [vmem:[%s2375 + $0x28] sm:$0xff]
      %v2382 = vld [vmem:[%s2375 + $0x30] sm:$0xff]
      %v2383 = vld [vmem:[%s2375 + $0x38] sm:$0xff]
      %v2384 = vld [vmem:[%s2375 + $0x40] sm:$0xff]
      %v2385 = vld [vmem:[%s2375 + $0x48] sm:$0xff]
      %v2386 = vld [vmem:[%s2375 + $0x50] sm:$0xff]
      %v2387 = vld [vmem:[%s2375 + $0x58] sm:$0xff]
      %v2388 = vld [vmem:[%s2375 + $0x60] sm:$0xff]
      %v2389 = vld [vmem:[%s2375 + $0x68] sm:$0xff]
      %v2390 = vld [vmem:[%s2375 + $0x70] sm:$0xff]
      %v2391 = vld [vmem:[%s2375 + $0x78] sm:$0xff]
      %v2392 = vld [vmem:[%s2375 + $0x80] sm:$0xff]
      %v2393 = vld [vmem:[%s2375 + $0x88] sm:$0xff]
      %v2394 = vld [vmem:[%s2375 + $0x90] sm:$0xff]
      %v2395 = vld [vmem:[%s2375 + $0x98] sm:$0xff]
      %v2396 = vld [vmem:[%s2375 + $0xa0] sm:$0xff]
      %v2397 = vld [vmem:[%s2375 + $0xa8] sm:$0xff]
      %v2398 = vld [vmem:[%s2375 + $0xb0] sm:$0xff]
      %v2399 = vld [vmem:[%s2375 + $0xb8] sm:$0xff]
      %v2400 = vld [vmem:[%s2375 + $0xc0] sm:$0xff]
      %v2401 = vld [vmem:[%s2375 + $0xc8] sm:$0xff]
      %v2402 = vld [vmem:[%s2375 + $0xd0] sm:$0xff]
      %v2403 = vld [vmem:[%s2375 + $0xd8] sm:$0xff]
      %v2404 = vld [vmem:[%s2375 + $0xe0] sm:$0xff]
      %v2405 = vld [vmem:[%s2375 + $0xe8] sm:$0xff]
      %v2406 = vld [vmem:[%s2375 + $0xf0] sm:$0xff]
      %v2407 = vld [vmem:[%s2375 + $0xf8] sm:$0xff]
      %v2408 = vld [vmem:[%s2375 + $0x100] sm:$0xff]
      %v2409 = vld [vmem:[%s2375 + $0x108] sm:$0xff]
      %v2410 = vld [vmem:[%s2375 + $0x110] sm:$0xff]
      %v2411 = vld [vmem:[%s2375 + $0x118] sm:$0xff]
      %v2412 = vld [vmem:[%s2375 + $0x120] sm:$0xff]
      %v2413 = vld [vmem:[%s2375 + $0x128] sm:$0xff]
      %v2414 = vld [vmem:[%s2375 + $0x130] sm:$0xff]
      %v2415 = vld [vmem:[%s2375 + $0x138] sm:$0xff]
      %v2416 = vld [vmem:[%s2375 + $0x140] sm:$0xff]
      %v2417 = vld [vmem:[%s2375 + $0x148] sm:$0xff]
      %v2418 = vld [vmem:[%s2375 + $0x150] sm:$0xff]
      %v2419 = vld [vmem:[%s2375 + $0x158] sm:$0xff]
      %v2420 = vld [vmem:[%s2375 + $0x160] sm:$0xff]
      %v2421 = vld [vmem:[%s2375 + $0x168] sm:$0xff]
      %v2422 = vld [vmem:[%s2375 + $0x170] sm:$0xff]
      %v2423 = vld [vmem:[%s2375 + $0x178] sm:$0xff]
      %v2424 = vld [vmem:[%s2375 + $0x180] sm:$0xff]
      %v2425 = vld [vmem:[%s2375 + $0x188] sm:$0xff]
      %v2426 = vld [vmem:[%s2375 + $0x190] sm:$0xff]
      %v2427 = vld [vmem:[%s2375 + $0x198] sm:$0xff]
      %v2428 = vld [vmem:[%s2375 + $0x1a0] sm:$0xff]
      %v2429 = vld [vmem:[%s2375 + $0x1a8] sm:$0xff]
      %v2430 = vld [vmem:[%s2375 + $0x1b0] sm:$0xff]
      %v2431 = vld [vmem:[%s2375 + $0x1b8] sm:$0xff]
      %v2432 = vld [vmem:[%s2375 + $0x1c0] sm:$0xff]
      %v2433 = vld [vmem:[%s2375 + $0x1c8] sm:$0xff]
      %v2434 = vld [vmem:[%s2375 + $0x1d0] sm:$0xff]
      %v2435 = vld [vmem:[%s2375 + $0x1d8] sm:$0xff]
      %v2436 = vld [vmem:[%s2375 + $0x1e0] sm:$0xff]
      %v2437 = vld [vmem:[%s2375 + $0x1e8] sm:$0xff]
      %v2438 = vld [vmem:[%s2375 + $0x1f0] sm:$0xff]
      %v2439 = vld [vmem:[%s2375 + $0x1f8] sm:$0xff]
      %v2440 = vld [vmem:[%s2375 + $0x200] sm:$0xff]
      %v2441 = vld [vmem:[%s2375 + $0x208] sm:$0xff]
      %v2442 = vld [vmem:[%s2375 + $0x210] sm:$0xff]
      %v2443 = vld [vmem:[%s2375 + $0x218] sm:$0xff]
      %v2444 = vld [vmem:[%s2375 + $0x220] sm:$0xff]
      %v2445 = vld [vmem:[%s2375 + $0x228] sm:$0xff]
      %v2446 = vld [vmem:[%s2375 + $0x230] sm:$0xff]
      %v2447 = vld [vmem:[%s2375 + $0x238] sm:$0xff]
      %v2448 = vld [vmem:[%s2375 + $0x240] sm:$0xff]
      %v2449 = vld [vmem:[%s2375 + $0x248] sm:$0xff]
      %v2450 = vld [vmem:[%s2375 + $0x250] sm:$0xff]
      %v2451 = vld [vmem:[%s2375 + $0x258] sm:$0xff]
      %v2452 = vld [vmem:[%s2375 + $0x260] sm:$0xff]
      %v2453 = vld [vmem:[%s2375 + $0x268] sm:$0xff]
      %v2454 = vld [vmem:[%s2375 + $0x270] sm:$0xff]
      %v2455 = vld [vmem:[%s2375 + $0x278] sm:$0xff]
      %v2456 = vld [vmem:[%s2375 + $0x280] sm:$0xff]
      %v2457 = vld [vmem:[%s2375 + $0x288] sm:$0xff]
      %v2458 = vld [vmem:[%s2375 + $0x290] sm:$0xff]
      %v2459 = vld [vmem:[%s2375 + $0x298] sm:$0xff]
      %v2460 = vld [vmem:[%s2375 + $0x2a0] sm:$0xff]
      %v2461 = vld [vmem:[%s2375 + $0x2a8] sm:$0xff]
      %v2462 = vld [vmem:[%s2375 + $0x2b0] sm:$0xff]
      %v2463 = vld [vmem:[%s2375 + $0x2b8] sm:$0xff]
      %v2464 = vld [vmem:[%s2375 + $0x2c0] sm:$0xff]
      %v2465 = vld [vmem:[%s2375 + $0x2c8] sm:$0xff]
      %v2466 = vld [vmem:[%s2375 + $0x2d0] sm:$0xff]
      %v2467 = vld [vmem:[%s2375 + $0x2d8] sm:$0xff]
      %v2468 = vld [vmem:[%s2375 + $0x2e0] sm:$0xff]
      %v2469 = vld [vmem:[%s2375 + $0x2e8] sm:$0xff]
      %v2470 = vld [vmem:[%s2375 + $0x2f0] sm:$0xff]
      %v2471 = vld [vmem:[%s2375 + $0x2f8] sm:$0xff]
      %v2472 = vld [vmem:[%s2375 + $0x300] sm:$0xff]
      %v2473 = vld [vmem:[%s2375 + $0x308] sm:$0xff]
      %v2474 = vld [vmem:[%s2375 + $0x310] sm:$0xff]
      %v2475 = vld [vmem:[%s2375 + $0x318] sm:$0xff]
      %v2476 = vld [vmem:[%s2375 + $0x320] sm:$0xff]
      %v2477 = vld [vmem:[%s2375 + $0x328] sm:$0xff]
      %v2478 = vld [vmem:[%s2375 + $0x330] sm:$0xff]
      %v2479 = vld [vmem:[%s2375 + $0x338] sm:$0xff]
      %v2480 = vld [vmem:[%s2375 + $0x340] sm:$0xff]
      %v2481 = vld [vmem:[%s2375 + $0x348] sm:$0xff]
      %v2482 = vld [vmem:[%s2375 + $0x350] sm:$0xff]
      %v2483 = vld [vmem:[%s2375 + $0x358] sm:$0xff]
      %v2484 = vld [vmem:[%s2375 + $0x360] sm:$0xff]
      %v2485 = vld [vmem:[%s2375 + $0x368] sm:$0xff]
      %v2486 = vld [vmem:[%s2375 + $0x370] sm:$0xff]
      %v2487 = vld [vmem:[%s2375 + $0x378] sm:$0xff]
      %v2488 = vld [vmem:[%s2375 + $0x380] sm:$0xff]
      %v2489 = vld [vmem:[%s2375 + $0x388] sm:$0xff]
      %v2490 = vld [vmem:[%s2375 + $0x390] sm:$0xff]
      %v2491 = vld [vmem:[%s2375 + $0x398] sm:$0xff]
      %v2492 = vld [vmem:[%s2375 + $0x3a0] sm:$0xff]
      %v2493 = vld [vmem:[%s2375 + $0x3a8] sm:$0xff]
      %v2494 = vld [vmem:[%s2375 + $0x3b0] sm:$0xff]
      %v2495 = vld [vmem:[%s2375 + $0x3b8] sm:$0xff]
      %v2496 = vld [vmem:[%s2375 + $0x3c0] sm:$0xff]
      %v2497 = vld [vmem:[%s2375 + $0x3c8] sm:$0xff]
      %v2498 = vld [vmem:[%s2375 + $0x3d0] sm:$0xff]
      %v2499 = vld [vmem:[%s2375 + $0x3d8] sm:$0xff]
      %v2500 = vld [vmem:[%s2375 + $0x3e0] sm:$0xff]
      %v2501 = vld [vmem:[%s2375 + $0x3e8] sm:$0xff]
      %v2502 = vld [vmem:[%s2375 + $0x3f0] sm:$0xff]
      %v2503 = vld [vmem:[%s2375 + $0x3f8] sm:$0xff]
      %vm2512 = vcmask 1046528
      %v2513 = vrot.slane %v2367, 1
      %v2514 = vrot.slane %v2371, 1
      %v2515 = vsel %vm2512, %v2513, %v2514
      %v2516 = vrot.slane %v2368, 1
      %v2517 = vrot.slane %v2372, 1
      %v2518 = vsel %vm2512, %v2516, %v2517
      %v2519 = vrot.slane %v2369, 1
      %v2520 = vrot.slane %v2373, 1
      %v2521 = vsel %vm2512, %v2519, %v2520
      %v2522 = vrot.slane %v2370, 1
      %v2523 = vrot.slane %v2374, 1
      %v2524 = vsel %vm2512, %v2522, %v2523
      %v2657 = vunpack.c.l.b16 %v2376
      %v2658 = vunpack.c.h.b16 %v2376
      %v2659 = vunpack.c.l.b16 %v2377
      %v2660 = vunpack.c.h.b16 %v2377
      %v2661 = vunpack.c.l.b16 %v2378
      %v2662 = vunpack.c.h.b16 %v2378
      %v2663 = vunpack.c.l.b16 %v2379
      %v2664 = vunpack.c.h.b16 %v2379
      %v2665 = vunpack.c.l.b16 %v2380
      %v2666 = vunpack.c.h.b16 %v2380
      %v2667 = vunpack.c.l.b16 %v2381
      %v2668 = vunpack.c.h.b16 %v2381
      %v2669 = vunpack.c.l.b16 %v2382
      %v2670 = vunpack.c.h.b16 %v2382
      %v2671 = vunpack.c.l.b16 %v2383
      %v2672 = vunpack.c.h.b16 %v2383
      %v2673 = vunpack.c.l.b16 %v2384
      %v2674 = vunpack.c.h.b16 %v2384
      %v2675 = vunpack.c.l.b16 %v2385
      %v2676 = vunpack.c.h.b16 %v2385
      %v2677 = vunpack.c.l.b16 %v2386
      %v2678 = vunpack.c.h.b16 %v2386
      %v2679 = vunpack.c.l.b16 %v2387
      %v2680 = vunpack.c.h.b16 %v2387
      %v2681 = vunpack.c.l.b16 %v2388
      %v2682 = vunpack.c.h.b16 %v2388
      %v2683 = vunpack.c.l.b16 %v2389
      %v2684 = vunpack.c.h.b16 %v2389
      %v2685 = vunpack.c.l.b16 %v2390
      %v2686 = vunpack.c.h.b16 %v2390
      %v2687 = vunpack.c.l.b16 %v2391
      %v2688 = vunpack.c.h.b16 %v2391
      %v2689 = vunpack.c.l.b16 %v2392
      %v2690 = vunpack.c.h.b16 %v2392
      %v2691 = vunpack.c.l.b16 %v2393
      %v2692 = vunpack.c.h.b16 %v2393
      %v2693 = vunpack.c.l.b16 %v2394
      %v2694 = vunpack.c.h.b16 %v2394
      %v2695 = vunpack.c.l.b16 %v2395
      %v2696 = vunpack.c.h.b16 %v2395
      %v2697 = vunpack.c.l.b16 %v2396
      %v2698 = vunpack.c.h.b16 %v2396
      %v2699 = vunpack.c.l.b16 %v2397
      %v2700 = vunpack.c.h.b16 %v2397
      %v2701 = vunpack.c.l.b16 %v2398
      %v2702 = vunpack.c.h.b16 %v2398
      %v2703 = vunpack.c.l.b16 %v2399
      %v2704 = vunpack.c.h.b16 %v2399
      %v2705 = vunpack.c.l.b16 %v2400
      %v2706 = vunpack.c.h.b16 %v2400
      %v2707 = vunpack.c.l.b16 %v2401
      %v2708 = vunpack.c.h.b16 %v2401
      %v2709 = vunpack.c.l.b16 %v2402
      %v2710 = vunpack.c.h.b16 %v2402
      %v2711 = vunpack.c.l.b16 %v2403
      %v2712 = vunpack.c.h.b16 %v2403
      %v2713 = vunpack.c.l.b16 %v2404
      %v2714 = vunpack.c.h.b16 %v2404
      %v2715 = vunpack.c.l.b16 %v2405
      %v2716 = vunpack.c.h.b16 %v2405
      %v2717 = vunpack.c.l.b16 %v2406
      %v2718 = vunpack.c.h.b16 %v2406
      %v2719 = vunpack.c.l.b16 %v2407
      %v2720 = vunpack.c.h.b16 %v2407
      %v2721 = vunpack.c.l.b16 %v2408
      %v2722 = vunpack.c.h.b16 %v2408
      %v2723 = vunpack.c.l.b16 %v2409
      %v2724 = vunpack.c.h.b16 %v2409
      %v2725 = vunpack.c.l.b16 %v2410
      %v2726 = vunpack.c.h.b16 %v2410
      %v2727 = vunpack.c.l.b16 %v2411
      %v2728 = vunpack.c.h.b16 %v2411
      %v2729 = vunpack.c.l.b16 %v2412
      %v2730 = vunpack.c.h.b16 %v2412
      %v2731 = vunpack.c.l.b16 %v2413
      %v2732 = vunpack.c.h.b16 %v2413
      %v2733 = vunpack.c.l.b16 %v2414
      %v2734 = vunpack.c.h.b16 %v2414
      %v2735 = vunpack.c.l.b16 %v2415
      %v2736 = vunpack.c.h.b16 %v2415
      %v2737 = vunpack.c.l.b16 %v2416
      %v2738 = vunpack.c.h.b16 %v2416
      %v2739 = vunpack.c.l.b16 %v2417
      %v2740 = vunpack.c.h.b16 %v2417
      %v2741 = vunpack.c.l.b16 %v2418
      %v2742 = vunpack.c.h.b16 %v2418
      %v2743 = vunpack.c.l.b16 %v2419
      %v2744 = vunpack.c.h.b16 %v2419
      %v2745 = vunpack.c.l.b16 %v2420
      %v2746 = vunpack.c.h.b16 %v2420
      %v2747 = vunpack.c.l.b16 %v2421
      %v2748 = vunpack.c.h.b16 %v2421
      %v2749 = vunpack.c.l.b16 %v2422
      %v2750 = vunpack.c.h.b16 %v2422
      %v2751 = vunpack.c.l.b16 %v2423
      %v2752 = vunpack.c.h.b16 %v2423
      %v2753 = vunpack.c.l.b16 %v2424
      %v2754 = vunpack.c.h.b16 %v2424
      %v2755 = vunpack.c.l.b16 %v2425
      %v2756 = vunpack.c.h.b16 %v2425
      %v2757 = vunpack.c.l.b16 %v2426
      %v2758 = vunpack.c.h.b16 %v2426
      %v2759 = vunpack.c.l.b16 %v2427
      %v2760 = vunpack.c.h.b16 %v2427
      %v2761 = vunpack.c.l.b16 %v2428
      %v2762 = vunpack.c.h.b16 %v2428
      %v2763 = vunpack.c.l.b16 %v2429
      %v2764 = vunpack.c.h.b16 %v2429
      %v2765 = vunpack.c.l.b16 %v2430
      %v2766 = vunpack.c.h.b16 %v2430
      %v2767 = vunpack.c.l.b16 %v2431
      %v2768 = vunpack.c.h.b16 %v2431
      %v2769 = vunpack.c.l.b16 %v2432
      %v2770 = vunpack.c.h.b16 %v2432
      %v2771 = vunpack.c.l.b16 %v2433
      %v2772 = vunpack.c.h.b16 %v2433
      %v2773 = vunpack.c.l.b16 %v2434
      %v2774 = vunpack.c.h.b16 %v2434
      %v2775 = vunpack.c.l.b16 %v2435
      %v2776 = vunpack.c.h.b16 %v2435
      %v2777 = vunpack.c.l.b16 %v2436
      %v2778 = vunpack.c.h.b16 %v2436
      %v2779 = vunpack.c.l.b16 %v2437
      %v2780 = vunpack.c.h.b16 %v2437
      %v2781 = vunpack.c.l.b16 %v2438
      %v2782 = vunpack.c.h.b16 %v2438
      %v2783 = vunpack.c.l.b16 %v2439
      %v2784 = vunpack.c.h.b16 %v2439
      %v2785 = vunpack.c.l.b16 %v2440
      %v2786 = vunpack.c.h.b16 %v2440
      %v2787 = vunpack.c.l.b16 %v2441
      %v2788 = vunpack.c.h.b16 %v2441
      %v2789 = vunpack.c.l.b16 %v2442
      %v2790 = vunpack.c.h.b16 %v2442
      %v2791 = vunpack.c.l.b16 %v2443
      %v2792 = vunpack.c.h.b16 %v2443
      %v2793 = vunpack.c.l.b16 %v2444
      %v2794 = vunpack.c.h.b16 %v2444
      %v2795 = vunpack.c.l.b16 %v2445
      %v2796 = vunpack.c.h.b16 %v2445
      %v2797 = vunpack.c.l.b16 %v2446
      %v2798 = vunpack.c.h.b16 %v2446
      %v2799 = vunpack.c.l.b16 %v2447
      %v2800 = vunpack.c.h.b16 %v2447
      %v2801 = vunpack.c.l.b16 %v2448
      %v2802 = vunpack.c.h.b16 %v2448
      %v2803 = vunpack.c.l.b16 %v2449
      %v2804 = vunpack.c.h.b16 %v2449
      %v2805 = vunpack.c.l.b16 %v2450
      %v2806 = vunpack.c.h.b16 %v2450
      %v2807 = vunpack.c.l.b16 %v2451
      %v2808 = vunpack.c.h.b16 %v2451
      %v2809 = vunpack.c.l.b16 %v2452
      %v2810 = vunpack.c.h.b16 %v2452
      %v2811 = vunpack.c.l.b16 %v2453
      %v2812 = vunpack.c.h.b16 %v2453
      %v2813 = vunpack.c.l.b16 %v2454
      %v2814 = vunpack.c.h.b16 %v2454
      %v2815 = vunpack.c.l.b16 %v2455
      %v2816 = vunpack.c.h.b16 %v2455
      %v2817 = vunpack.c.l.b16 %v2456
      %v2818 = vunpack.c.h.b16 %v2456
      %v2819 = vunpack.c.l.b16 %v2457
      %v2820 = vunpack.c.h.b16 %v2457
      %v2821 = vunpack.c.l.b16 %v2458
      %v2822 = vunpack.c.h.b16 %v2458
      %v2823 = vunpack.c.l.b16 %v2459
      %v2824 = vunpack.c.h.b16 %v2459
      %v2825 = vunpack.c.l.b16 %v2460
      %v2826 = vunpack.c.h.b16 %v2460
      %v2827 = vunpack.c.l.b16 %v2461
      %v2828 = vunpack.c.h.b16 %v2461
      %v2829 = vunpack.c.l.b16 %v2462
      %v2830 = vunpack.c.h.b16 %v2462
      %v2831 = vunpack.c.l.b16 %v2463
      %v2832 = vunpack.c.h.b16 %v2463
      %v2833 = vunpack.c.l.b16 %v2464
      %v2834 = vunpack.c.h.b16 %v2464
      %v2835 = vunpack.c.l.b16 %v2465
      %v2836 = vunpack.c.h.b16 %v2465
      %v2837 = vunpack.c.l.b16 %v2466
      %v2838 = vunpack.c.h.b16 %v2466
      %v2839 = vunpack.c.l.b16 %v2467
      %v2840 = vunpack.c.h.b16 %v2467
      %v2841 = vunpack.c.l.b16 %v2468
      %v2842 = vunpack.c.h.b16 %v2468
      %v2843 = vunpack.c.l.b16 %v2469
      %v2844 = vunpack.c.h.b16 %v2469
      %v2845 = vunpack.c.l.b16 %v2470
      %v2846 = vunpack.c.h.b16 %v2470
      %v2847 = vunpack.c.l.b16 %v2471
      %v2848 = vunpack.c.h.b16 %v2471
      %v2849 = vunpack.c.l.b16 %v2472
      %v2850 = vunpack.c.h.b16 %v2472
      %v2851 = vunpack.c.l.b16 %v2473
      %v2852 = vunpack.c.h.b16 %v2473
      %v2853 = vunpack.c.l.b16 %v2474
      %v2854 = vunpack.c.h.b16 %v2474
      %v2855 = vunpack.c.l.b16 %v2475
      %v2856 = vunpack.c.h.b16 %v2475
      %v2857 = vunpack.c.l.b16 %v2476
      %v2858 = vunpack.c.h.b16 %v2476
      %v2859 = vunpack.c.l.b16 %v2477
      %v2860 = vunpack.c.h.b16 %v2477
      %v2861 = vunpack.c.l.b16 %v2478
      %v2862 = vunpack.c.h.b16 %v2478
      %v2863 = vunpack.c.l.b16 %v2479
      %v2864 = vunpack.c.h.b16 %v2479
      %v2865 = vunpack.c.l.b16 %v2480
      %v2866 = vunpack.c.h.b16 %v2480
      %v2867 = vunpack.c.l.b16 %v2481
      %v2868 = vunpack.c.h.b16 %v2481
      %v2869 = vunpack.c.l.b16 %v2482
      %v2870 = vunpack.c.h.b16 %v2482
      %v2871 = vunpack.c.l.b16 %v2483
      %v2872 = vunpack.c.h.b16 %v2483
      %v2873 = vunpack.c.l.b16 %v2484
      %v2874 = vunpack.c.h.b16 %v2484
      %v2875 = vunpack.c.l.b16 %v2485
      %v2876 = vunpack.c.h.b16 %v2485
      %v2877 = vunpack.c.l.b16 %v2486
      %v2878 = vunpack.c.h.b16 %v2486
      %v2879 = vunpack.c.l.b16 %v2487
      %v2880 = vunpack.c.h.b16 %v2487
      %v2881 = vunpack.c.l.b16 %v2488
      %v2882 = vunpack.c.h.b16 %v2488
      %v2883 = vunpack.c.l.b16 %v2489
      %v2884 = vunpack.c.h.b16 %v2489
      %v2885 = vunpack.c.l.b16 %v2490
      %v2886 = vunpack.c.h.b16 %v2490
      %v2887 = vunpack.c.l.b16 %v2491
      %v2888 = vunpack.c.h.b16 %v2491
      %v2889 = vunpack.c.l.b16 %v2492
      %v2890 = vunpack.c.h.b16 %v2492
      %v2891 = vunpack.c.l.b16 %v2493
      %v2892 = vunpack.c.h.b16 %v2493
      %v2893 = vunpack.c.l.b16 %v2494
      %v2894 = vunpack.c.h.b16 %v2494
      %v2895 = vunpack.c.l.b16 %v2495
      %v2896 = vunpack.c.h.b16 %v2495
      %v2897 = vunpack.c.l.b16 %v2496
      %v2898 = vunpack.c.h.b16 %v2496
      %v2899 = vunpack.c.l.b16 %v2497
      %v2900 = vunpack.c.h.b16 %v2497
      %v2901 = vunpack.c.l.b16 %v2498
      %v2902 = vunpack.c.h.b16 %v2498
      %v2903 = vunpack.c.l.b16 %v2499
      %v2904 = vunpack.c.h.b16 %v2499
      %v2905 = vunpack.c.l.b16 %v2500
      %v2906 = vunpack.c.h.b16 %v2500
      %v2907 = vunpack.c.l.b16 %v2501
      %v2908 = vunpack.c.h.b16 %v2501
      %v2909 = vunpack.c.l.b16 %v2502
      %v2910 = vunpack.c.h.b16 %v2502
      %v2911 = vunpack.c.l.b16 %v2503
      %v2912 = vunpack.c.h.b16 %v2503
      %v2913 = vpack.c.b16 %v2661, %v2657
      %v2914 = vpack.c.b16 %v2662, %v2658
      %v2915 = vpack.c.b16 %v2663, %v2659
      %v2916 = vpack.c.b16 %v2664, %v2660
      %v2917 = vpack.c.b16 %v2669, %v2665
      %v2918 = vpack.c.b16 %v2670, %v2666
      %v2919 = vpack.c.b16 %v2671, %v2667
      %v2920 = vpack.c.b16 %v2672, %v2668
      %v2921 = vpack.c.b16 %v2677, %v2673
      %v2922 = vpack.c.b16 %v2678, %v2674
      %v2923 = vpack.c.b16 %v2679, %v2675
      %v2924 = vpack.c.b16 %v2680, %v2676
      %v2925 = vpack.c.b16 %v2685, %v2681
      %v2926 = vpack.c.b16 %v2686, %v2682
      %v2927 = vpack.c.b16 %v2687, %v2683
      %v2928 = vpack.c.b16 %v2688, %v2684
      %v2929 = vpack.c.b16 %v2693, %v2689
      %v2930 = vpack.c.b16 %v2694, %v2690
      %v2931 = vpack.c.b16 %v2695, %v2691
      %v2932 = vpack.c.b16 %v2696, %v2692
      %v2933 = vpack.c.b16 %v2701, %v2697
      %v2934 = vpack.c.b16 %v2702, %v2698
      %v2935 = vpack.c.b16 %v2703, %v2699
      %v2936 = vpack.c.b16 %v2704, %v2700
      %v2937 = vpack.c.b16 %v2709, %v2705
      %v2938 = vpack.c.b16 %v2710, %v2706
      %v2939 = vpack.c.b16 %v2711, %v2707
      %v2940 = vpack.c.b16 %v2712, %v2708
      %v2941 = vpack.c.b16 %v2717, %v2713
      %v2942 = vpack.c.b16 %v2718, %v2714
      %v2943 = vpack.c.b16 %v2719, %v2715
      %v2944 = vpack.c.b16 %v2720, %v2716
      %v2945 = vpack.c.b16 %v2725, %v2721
      %v2946 = vpack.c.b16 %v2726, %v2722
      %v2947 = vpack.c.b16 %v2727, %v2723
      %v2948 = vpack.c.b16 %v2728, %v2724
      %v2949 = vpack.c.b16 %v2733, %v2729
      %v2950 = vpack.c.b16 %v2734, %v2730
      %v2951 = vpack.c.b16 %v2735, %v2731
      %v2952 = vpack.c.b16 %v2736, %v2732
      %v2953 = vpack.c.b16 %v2741, %v2737
      %v2954 = vpack.c.b16 %v2742, %v2738
      %v2955 = vpack.c.b16 %v2743, %v2739
      %v2956 = vpack.c.b16 %v2744, %v2740
      %v2957 = vpack.c.b16 %v2749, %v2745
      %v2958 = vpack.c.b16 %v2750, %v2746
      %v2959 = vpack.c.b16 %v2751, %v2747
      %v2960 = vpack.c.b16 %v2752, %v2748
      %v2961 = vpack.c.b16 %v2757, %v2753
      %v2962 = vpack.c.b16 %v2758, %v2754
      %v2963 = vpack.c.b16 %v2759, %v2755
      %v2964 = vpack.c.b16 %v2760, %v2756
      %v2965 = vpack.c.b16 %v2765, %v2761
      %v2966 = vpack.c.b16 %v2766, %v2762
      %v2967 = vpack.c.b16 %v2767, %v2763
      %v2968 = vpack.c.b16 %v2768, %v2764
      %v2969 = vpack.c.b16 %v2773, %v2769
      %v2970 = vpack.c.b16 %v2774, %v2770
      %v2971 = vpack.c.b16 %v2775, %v2771
      %v2972 = vpack.c.b16 %v2776, %v2772
      %v2973 = vpack.c.b16 %v2781, %v2777
      %v2974 = vpack.c.b16 %v2782, %v2778
      %v2975 = vpack.c.b16 %v2783, %v2779
      %v2976 = vpack.c.b16 %v2784, %v2780
      %v2977 = vpack.c.b16 %v2789, %v2785
      %v2978 = vpack.c.b16 %v2790, %v2786
      %v2979 = vpack.c.b16 %v2791, %v2787
      %v2980 = vpack.c.b16 %v2792, %v2788
      %v2981 = vpack.c.b16 %v2797, %v2793
      %v2982 = vpack.c.b16 %v2798, %v2794
      %v2983 = vpack.c.b16 %v2799, %v2795
      %v2984 = vpack.c.b16 %v2800, %v2796
      %v2985 = vpack.c.b16 %v2805, %v2801
      %v2986 = vpack.c.b16 %v2806, %v2802
      %v2987 = vpack.c.b16 %v2807, %v2803
      %v2988 = vpack.c.b16 %v2808, %v2804
      %v2989 = vpack.c.b16 %v2813, %v2809
      %v2990 = vpack.c.b16 %v2814, %v2810
      %v2991 = vpack.c.b16 %v2815, %v2811
      %v2992 = vpack.c.b16 %v2816, %v2812
      %v2993 = vpack.c.b16 %v2821, %v2817
      %v2994 = vpack.c.b16 %v2822, %v2818
      %v2995 = vpack.c.b16 %v2823, %v2819
      %v2996 = vpack.c.b16 %v2824, %v2820
      %v2997 = vpack.c.b16 %v2829, %v2825
      %v2998 = vpack.c.b16 %v2830, %v2826
      %v2999 = vpack.c.b16 %v2831, %v2827
      %v3000 = vpack.c.b16 %v2832, %v2828
      %v3001 = vpack.c.b16 %v2837, %v2833
      %v3002 = vpack.c.b16 %v2838, %v2834
      %v3003 = vpack.c.b16 %v2839, %v2835
      %v3004 = vpack.c.b16 %v2840, %v2836
      %v3005 = vpack.c.b16 %v2845, %v2841
      %v3006 = vpack.c.b16 %v2846, %v2842
      %v3007 = vpack.c.b16 %v2847, %v2843
      %v3008 = vpack.c.b16 %v2848, %v2844
      %v3009 = vpack.c.b16 %v2853, %v2849
      %v3010 = vpack.c.b16 %v2854, %v2850
      %v3011 = vpack.c.b16 %v2855, %v2851
      %v3012 = vpack.c.b16 %v2856, %v2852
      %v3013 = vpack.c.b16 %v2861, %v2857
      %v3014 = vpack.c.b16 %v2862, %v2858
      %v3015 = vpack.c.b16 %v2863, %v2859
      %v3016 = vpack.c.b16 %v2864, %v2860
      %v3017 = vpack.c.b16 %v2869, %v2865
      %v3018 = vpack.c.b16 %v2870, %v2866
      %v3019 = vpack.c.b16 %v2871, %v2867
      %v3020 = vpack.c.b16 %v2872, %v2868
      %v3021 = vpack.c.b16 %v2877, %v2873
      %v3022 = vpack.c.b16 %v2878, %v2874
      %v3023 = vpack.c.b16 %v2879, %v2875
      %v3024 = vpack.c.b16 %v2880, %v2876
      %v3025 = vpack.c.b16 %v2885, %v2881
      %v3026 = vpack.c.b16 %v2886, %v2882
      %v3027 = vpack.c.b16 %v2887, %v2883
      %v3028 = vpack.c.b16 %v2888, %v2884
      %v3029 = vpack.c.b16 %v2893, %v2889
      %v3030 = vpack.c.b16 %v2894, %v2890
      %v3031 = vpack.c.b16 %v2895, %v2891
      %v3032 = vpack.c.b16 %v2896, %v2892
      %v3033 = vpack.c.b16 %v2901, %v2897
      %v3034 = vpack.c.b16 %v2902, %v2898
      %v3035 = vpack.c.b16 %v2903, %v2899
      %v3036 = vpack.c.b16 %v2904, %v2900
      %v3037 = vpack.c.b16 %v2909, %v2905
      %v3038 = vpack.c.b16 %v2910, %v2906
      %v3039 = vpack.c.b16 %v2911, %v2907
      %v3040 = vpack.c.b16 %v2912, %v2908
      %3169 = vmatprep.subr.bf16.mxu0 %v2914
      %3170 = vmatpush1.bf16.msra.mxu0 %v2913
      %3171 = vmatprep.subr.bf16.mxu0 %v2918
      %3172 = vmatpush1.bf16.msra.mxu0 %v2917
      %3173 = vmatprep.subr.bf16.mxu0 %v2922
      %3174 = vmatpush1.bf16.msra.mxu0 %v2921
      %3175 = vmatprep.subr.bf16.mxu0 %v2926
      %3176 = vmatpush1.bf16.msra.mxu0 %v2925
      %3177 = vmatprep.subr.bf16.mxu0 %v2930
      %3178 = vmatpush1.bf16.msra.mxu0 %v2929
      %3179 = vmatprep.subr.bf16.mxu0 %v2934
      %3180 = vmatpush1.bf16.msra.mxu0 %v2933
      %3181 = vmatprep.subr.bf16.mxu0 %v2938
      %3182 = vmatpush1.bf16.msra.mxu0 %v2937
      %3183 = vmatprep.subr.bf16.mxu0 %v2942
      %3184 = vmatpush1.bf16.msra.mxu0 %v2941
      %3185 = vmatprep.subr.bf16.mxu0 %v2946
      %3186 = vmatpush1.bf16.msra.mxu0 %v2945
      %3187 = vmatprep.subr.bf16.mxu0 %v2950
      %3188 = vmatpush1.bf16.msra.mxu0 %v2949
      %3189 = vmatprep.subr.bf16.mxu0 %v2954
      %3190 = vmatpush1.bf16.msra.mxu0 %v2953
      %3191 = vmatprep.subr.bf16.mxu0 %v2958
      %3192 = vmatpush1.bf16.msra.mxu0 %v2957
      %3193 = vmatprep.subr.bf16.mxu0 %v2962
      %3194 = vmatpush1.bf16.msra.mxu0 %v2961
      %3195 = vmatprep.subr.bf16.mxu0 %v2966
      %3196 = vmatpush1.bf16.msra.mxu0 %v2965
      %3197 = vmatprep.subr.bf16.mxu0 %v2970
      %3198 = vmatpush1.bf16.msra.mxu0 %v2969
      %3199 = vmatprep.subr.bf16.mxu0 %v2974
      %3200 = vmatpush1.bf16.msra.mxu0 %v2973
      %3201 = vmatprep.mubr.bf16.mxu0 %v2518
      %3202 = vmatmul.mubr.bf16.gmra.mrb[0].mxu0 %v2515
      %v3203 = vpop.f32.mrb[0].mxu0
      %v3204 = vadd.f32 0.0, %v3203
      %v3205 = vpop.f32.mrb[0].mxu0
      %v3206 = vadd.f32 0.0, %v3205
      %v3207 = vpop.f32.mrb[0].mxu0
      %v3208 = vadd.f32 0.0, %v3207
      %v3209 = vpop.f32.mrb[0].mxu0
      %v3210 = vadd.f32 0.0, %v3209
      %3211 = vdwg.mxu0
      %3212 = vmatprep.subr.bf16.mxu0 %v2978
      %3213 = vmatpush1.bf16.msra.mxu0 %v2977
      %3214 = vmatprep.subr.bf16.mxu0 %v2982
      %3215 = vmatpush1.bf16.msra.mxu0 %v2981
      %3216 = vmatprep.subr.bf16.mxu0 %v2986
      %3217 = vmatpush1.bf16.msra.mxu0 %v2985
      %3218 = vmatprep.subr.bf16.mxu0 %v2990
      %3219 = vmatpush1.bf16.msra.mxu0 %v2989
      %3220 = vmatprep.subr.bf16.mxu0 %v2994
      %3221 = vmatpush1.bf16.msra.mxu0 %v2993
      %3222 = vmatprep.subr.bf16.mxu0 %v2998
      %3223 = vmatpush1.bf16.msra.mxu0 %v2997
      %3224 = vmatprep.subr.bf16.mxu0 %v3002
      %3225 = vmatpush1.bf16.msra.mxu0 %v3001
      %3226 = vmatprep.subr.bf16.mxu0 %v3006
      %3227 = vmatpush1.bf16.msra.mxu0 %v3005
      %3228 = vmatprep.subr.bf16.mxu0 %v3010
      %3229 = vmatpush1.bf16.msra.mxu0 %v3009
      %3230 = vmatprep.subr.bf16.mxu0 %v3014
      %3231 = vmatpush1.bf16.msra.mxu0 %v3013
      %3232 = vmatprep.subr.bf16.mxu0 %v3018
      %3233 = vmatpush1.bf16.msra.mxu0 %v3017
      %3234 = vmatprep.subr.bf16.mxu0 %v3022
      %3235 = vmatpush1.bf16.msra.mxu0 %v3021
      %3236 = vmatprep.subr.bf16.mxu0 %v3026
      %3237 = vmatpush1.bf16.msra.mxu0 %v3025
      %3238 = vmatprep.subr.bf16.mxu0 %v3030
      %3239 = vmatpush1.bf16.msra.mxu0 %v3029
      %3240 = vmatprep.subr.bf16.mxu0 %v3034
      %3241 = vmatpush1.bf16.msra.mxu0 %v3033
      %3242 = vmatprep.subr.bf16.mxu0 %v3038
      %3243 = vmatpush1.bf16.msra.mxu0 %v3037
      %3244 = vmatprep.mubr.bf16.mxu0 %v2524
      %3245 = vmatmul.mubr.bf16.gmra.mrb[0].mxu0 %v2521
      %v3246 = vpop.f32.mrb[0].mxu0
      %v3247 = vadd.f32 %v3204, %v3246
      %v3248 = vpop.f32.mrb[0].mxu0
      %v3249 = vadd.f32 %v3206, %v3248
      %v3250 = vpop.f32.mrb[0].mxu0
      %v3251 = vadd.f32 %v3208, %v3250
      %v3252 = vpop.f32.mrb[0].mxu0
      %v3253 = vadd.f32 %v3210, %v3252
      %3254 = vdwg.mxu0
      %3255 = vmatprep.subr.bf16.mxu0 %v2916
      %3256 = vmatpush1.bf16.msra.mxu0 %v2915
      %3257 = vmatprep.subr.bf16.mxu0 %v2920
      %3258 = vmatpush1.bf16.msra.mxu0 %v2919
      %3259 = vmatprep.subr.bf16.mxu0 %v2924
      %3260 = vmatpush1.bf16.msra.mxu0 %v2923
      %3261 = vmatprep.subr.bf16.mxu0 %v2928
      %3262 = vmatpush1.bf16.msra.mxu0 %v2927
      %3263 = vmatprep.subr.bf16.mxu0 %v2932
      %3264 = vmatpush1.bf16.msra.mxu0 %v2931
      %3265 = vmatprep.subr.bf16.mxu0 %v2936
      %3266 = vmatpush1.bf16.msra.mxu0 %v2935
      %3267 = vmatprep.subr.bf16.mxu0 %v2940
      %3268 = vmatpush1.bf16.msra.mxu0 %v2939
      %3269 = vmatprep.subr.bf16.mxu0 %v2944
      %3270 = vmatpush1.bf16.msra.mxu0 %v2943
      %3271 = vmatprep.subr.bf16.mxu0 %v2948
      %3272 = vmatpush1.bf16.msra.mxu0 %v2947
      %3273 = vmatprep.subr.bf16.mxu0 %v2952
      %3274 = vmatpush1.bf16.msra.mxu0 %v2951
      %3275 = vmatprep.subr.bf16.mxu0 %v2956
      %3276 = vmatpush1.bf16.msra.mxu0 %v2955
      %3277 = vmatprep.subr.bf16.mxu0 %v2960
      %3278 = vmatpush1.bf16.msra.mxu0 %v2959
      %3279 = vmatprep.subr.bf16.mxu0 %v2964
      %3280 = vmatpush1.bf16.msra.mxu0 %v2963
      %3281 = vmatprep.subr.bf16.mxu0 %v2968
      %3282 = vmatpush1.bf16.msra.mxu0 %v2967
      %3283 = vmatprep.subr.bf16.mxu0 %v2972
      %3284 = vmatpush1.bf16.msra.mxu0 %v2971
      %3285 = vmatprep.subr.bf16.mxu0 %v2976
      %3286 = vmatpush1.bf16.msra.mxu0 %v2975
      %3287 = vmatprep.mubr.bf16.mxu0 %v2518
      %3288 = vmatmul.mubr.bf16.gmra.mrb[0].mxu0 %v2515
      %v3289 = vpop.f32.mrb[0].mxu0
      %v3290 = vadd.f32 0.0, %v3289
      %v3291 = vpop.f32.mrb[0].mxu0
      %v3292 = vadd.f32 0.0, %v3291
      %v3293 = vpop.f32.mrb[0].mxu0
      %v3294 = vadd.f32 0.0, %v3293
      %v3295 = vpop.f32.mrb[0].mxu0
      %v3296 = vadd.f32 0.0, %v3295
      %3297 = vdwg.mxu0
      %3298 = vmatprep.subr.bf16.mxu0 %v2980
      %3299 = vmatpush1.bf16.msra.mxu0 %v2979
      %3300 = vmatprep.subr.bf16.mxu0 %v2984
      %3301 = vmatpush1.bf16.msra.mxu0 %v2983
      %3302 = vmatprep.subr.bf16.mxu0 %v2988
      %3303 = vmatpush1.bf16.msra.mxu0 %v2987
      %3304 = vmatprep.subr.bf16.mxu0 %v2992
      %3305 = vmatpush1.bf16.msra.mxu0 %v2991
      %3306 = vmatprep.subr.bf16.mxu0 %v2996
      %3307 = vmatpush1.bf16.msra.mxu0 %v2995
      %3308 = vmatprep.subr.bf16.mxu0 %v3000
      %3309 = vmatpush1.bf16.msra.mxu0 %v2999
      %3310 = vmatprep.subr.bf16.mxu0 %v3004
      %3311 = vmatpush1.bf16.msra.mxu0 %v3003
      %3312 = vmatprep.subr.bf16.mxu0 %v3008
      %3313 = vmatpush1.bf16.msra.mxu0 %v3007
      %3314 = vmatprep.subr.bf16.mxu0 %v3012
      %3315 = vmatpush1.bf16.msra.mxu0 %v3011
      %3316 = vmatprep.subr.bf16.mxu0 %v3016
      %3317 = vmatpush1.bf16.msra.mxu0 %v3015
      %3318 = vmatprep.subr.bf16.mxu0 %v3020
      %3319 = vmatpush1.bf16.msra.mxu0 %v3019
      %3320 = vmatprep.subr.bf16.mxu0 %v3024
      %3321 = vmatpush1.bf16.msra.mxu0 %v3023
      %3322 = vmatprep.subr.bf16.mxu0 %v3028
      %3323 = vmatpush1.bf16.msra.mxu0 %v3027
      %3324 = vmatprep.subr.bf16.mxu0 %v3032
      %3325 = vmatpush1.bf16.msra.mxu0 %v3031
      %3326 = vmatprep.subr.bf16.mxu0 %v3036
      %3327 = vmatpush1.bf16.msra.mxu0 %v3035
      %3328 = vmatprep.subr.bf16.mxu0 %v3040
      %3329 = vmatpush1.bf16.msra.mxu0 %v3039
      %3330 = vmatprep.mubr.bf16.mxu0 %v2524
      %3331 = vmatmul.mubr.bf16.gmra.mrb[0].mxu0 %v2521
      %v3332 = vpop.f32.mrb[0].mxu0
      %v3333 = vadd.f32 %v3290, %v3332
      %v3334 = vpop.f32.mrb[0].mxu0
      %v3335 = vadd.f32 %v3292, %v3334
      %v3336 = vpop.f32.mrb[0].mxu0
      %v3337 = vadd.f32 %v3294, %v3336
      %v3338 = vpop.f32.mrb[0].mxu0
      %v3339 = vadd.f32 %v3296, %v3338
      %3340 = vdwg.mxu0
      %v3341 = vadd.f32 %v2265, %v3247
      %v3342 = vadd.f32 %v2267, %v3249
      %v3343 = vadd.f32 %v2351, %v3333
      %v3344 = vadd.f32 %v2353, %v3335
      %v3345 = vadd.f32 %v2269, %v3251
      %v3346 = vadd.f32 %v2271, %v3253
      %v3347 = vadd.f32 %v2355, %v3337
      %v3348 = vadd.f32 %v2357, %v3339
      %v3350 = vlaneseq
      %v3351 = vshrl.u32 %v3350, 7
      %v3352 = vsub.s32 0, %v3351
      %v3353 = vrot.slane %v342, %v3352
      %v3354 = vlaneseq
      %v3355 = vshrl.u32 %v3354, 7
      %v3356 = vsub.s32 1, %v3355
      %v3357 = vrot.slane %v342, %v3356
      %v3358 = vlaneseq
      %v3359 = vshrl.u32 %v3358, 7
      %v3360 = vsub.s32 2, %v3359
      %v3361 = vrot.slane %v342, %v3360
      %v3362 = vlaneseq
      %v3363 = vshrl.u32 %v3362, 7
      %v3364 = vsub.s32 3, %v3363
      %v3365 = vrot.slane %v342, %v3364
      %v3370 = vadd.f32 %v3341, %v3353
      %v3371 = vadd.f32 %v3342, %v3357
      %v3372 = vadd.f32 %v3343, %v3361
      %v3373 = vadd.f32 %v3344, %v3365
      %v3374 = vadd.f32 %v3345, %v3353
      %v3375 = vadd.f32 %v3346, %v3357
      %v3376 = vadd.f32 %v3347, %v3361
      %v3377 = vadd.f32 %v3348, %v3365
      %v3378 = vmax.f32 %v3370, 0.0
      %v3379 = vmax.f32 %v3371, 0.0
      %v3380 = vmax.f32 %v3372, 0.0
      %v3381 = vmax.f32 %v3373, 0.0
      %v3382 = vmax.f32 %v3374, 0.0
      %v3383 = vmax.f32 %v3375, 0.0
      %v3384 = vmax.f32 %v3376, 0.0
      %v3385 = vmax.f32 %v3377, 0.0
      %v3394 = vrot.slane %v3378, 7
      %v3395 = vrot.slane %v3379, 7
      %v3396 = vrot.slane %v3380, 7
      %v3397 = vrot.slane %v3381, 7
      %v3398 = vrot.slane %v3382, 7
      %v3399 = vsel %vm360, %v3394, %v3398
      %v3400 = vrot.slane %v3383, 7
      %v3401 = vsel %vm360, %v3395, %v3400
      %v3402 = vrot.slane %v3384, 7
      %v3403 = vsel %vm360, %v3396, %v3402
      %v3404 = vrot.slane %v3385, 7
      %v3405 = vsel %vm360, %v3397, %v3404
      %3418 = vst [vmem:[#allocation2] sm:$0xfe] %v3394
      %3419 = vst [vmem:[#allocation2 + $0x8] sm:$0xfe] %v3395
      %3420 = vst [vmem:[#allocation2 + $0x10] sm:$0xfe] %v3396
      %3421 = vst [vmem:[#allocation2 + $0x18] sm:$0xfe] %v3397
      %3422 = vst [vmem:[#allocation2 + $0x20] sm:$0xff] %v3399
      %3423 = vst [vmem:[#allocation2 + $0x28] sm:$0xff] %v3401
      %3424 = vst [vmem:[#allocation2 + $0x30] sm:$0xff] %v3403
      %3425 = vst [vmem:[#allocation2 + $0x38] sm:$0xff] %v3405
      %3426 = vst [vmem:[#allocation2 + $0x40] sm:$0x1] %v3398
      %3427 = vst [vmem:[#allocation2 + $0x48] sm:$0x1] %v3400
      %3428 = vst [vmem:[#allocation2 + $0x50] sm:$0x1] %v3402
      %3429 = vst [vmem:[#allocation2 + $0x58] sm:$0x1] %v3404
      %v3430 = vld [vmem:[#allocation2] sm:$0xff]
      %v3431 = vld [vmem:[#allocation2 + $0x8] sm:$0xff]
      %v3432 = vld [vmem:[#allocation2 + $0x10] sm:$0xff]
      %v3433 = vld [vmem:[#allocation2 + $0x18] sm:$0xff]
      %v3434 = vld [vmem:[#allocation2 + $0x20] sm:$0xff]
      %v3435 = vld [vmem:[#allocation2 + $0x28] sm:$0xff]
      %v3436 = vld [vmem:[#allocation2 + $0x30] sm:$0xff]
      %v3437 = vld [vmem:[#allocation2 + $0x38] sm:$0xff]
      %v3438 = vpack.c.bf16 %v3434, %v3430
      %v3439 = vpack.c.bf16 %v3435, %v3431
      %v3440 = vpack.c.bf16 %v3436, %v3432
      %v3441 = vpack.c.bf16 %v3437, %v3433
      %v3442 = vld [vmem:[%s3] sm:$0xff]
      %v3443 = vld [vmem:[%s3 + $0x8] sm:$0xff]
      %v3444 = vld [vmem:[%s3 + $0x10] sm:$0xff]
      %v3445 = vld [vmem:[%s3 + $0x18] sm:$0xff]
      %v3446 = vld [vmem:[%s3 + $0x20] sm:$0xff]
      %v3447 = vld [vmem:[%s3 + $0x28] sm:$0xff]
      %v3448 = vld [vmem:[%s3 + $0x30] sm:$0xff]
      %v3449 = vld [vmem:[%s3 + $0x38] sm:$0xff]
      %v3450 = vld [vmem:[%s3 + $0x40] sm:$0xff]
      %v3451 = vld [vmem:[%s3 + $0x48] sm:$0xff]
      %v3452 = vld [vmem:[%s3 + $0x50] sm:$0xff]
      %v3453 = vld [vmem:[%s3 + $0x58] sm:$0xff]
      %v3454 = vld [vmem:[%s3 + $0x60] sm:$0xff]
      %v3455 = vld [vmem:[%s3 + $0x68] sm:$0xff]
      %v3456 = vld [vmem:[%s3 + $0x70] sm:$0xff]
      %v3457 = vld [vmem:[%s3 + $0x78] sm:$0xff]
      %v3458 = vld [vmem:[%s3 + $0x80] sm:$0xff]
      %v3459 = vld [vmem:[%s3 + $0x88] sm:$0xff]
      %v3460 = vld [vmem:[%s3 + $0x90] sm:$0xff]
      %v3461 = vld [vmem:[%s3 + $0x98] sm:$0xff]
      %v3462 = vld [vmem:[%s3 + $0xa0] sm:$0xff]
      %v3463 = vld [vmem:[%s3 + $0xa8] sm:$0xff]
      %v3464 = vld [vmem:[%s3 + $0xb0] sm:$0xff]
      %v3465 = vld [vmem:[%s3 + $0xb8] sm:$0xff]
      %v3466 = vld [vmem:[%s3 + $0xc0] sm:$0xff]
      %v3467 = vld [vmem:[%s3 + $0xc8] sm:$0xff]
      %v3468 = vld [vmem:[%s3 + $0xd0] sm:$0xff]
      %v3469 = vld [vmem:[%s3 + $0xd8] sm:$0xff]
      %v3470 = vld [vmem:[%s3 + $0xe0] sm:$0xff]
      %v3471 = vld [vmem:[%s3 + $0xe8] sm:$0xff]
      %v3472 = vld [vmem:[%s3 + $0xf0] sm:$0xff]
      %v3473 = vld [vmem:[%s3 + $0xf8] sm:$0xff]
      %v3474 = vld [vmem:[%s3 + $0x100] sm:$0xff]
      %v3475 = vld [vmem:[%s3 + $0x108] sm:$0xff]
      %v3476 = vld [vmem:[%s3 + $0x110] sm:$0xff]
      %v3477 = vld [vmem:[%s3 + $0x118] sm:$0xff]
      %v3478 = vld [vmem:[%s3 + $0x120] sm:$0xff]
      %v3479 = vld [vmem:[%s3 + $0x128] sm:$0xff]
      %v3480 = vld [vmem:[%s3 + $0x130] sm:$0xff]
      %v3481 = vld [vmem:[%s3 + $0x138] sm:$0xff]
      %v3482 = vld [vmem:[%s3 + $0x140] sm:$0xff]
      %v3483 = vld [vmem:[%s3 + $0x148] sm:$0xff]
      %v3484 = vld [vmem:[%s3 + $0x150] sm:$0xff]
      %v3485 = vld [vmem:[%s3 + $0x158] sm:$0xff]
      %v3486 = vld [vmem:[%s3 + $0x160] sm:$0xff]
      %v3487 = vld [vmem:[%s3 + $0x168] sm:$0xff]
      %v3488 = vld [vmem:[%s3 + $0x170] sm:$0xff]
      %v3489 = vld [vmem:[%s3 + $0x178] sm:$0xff]
      %v3490 = vld [vmem:[%s3 + $0x180] sm:$0xff]
      %v3491 = vld [vmem:[%s3 + $0x188] sm:$0xff]
      %v3492 = vld [vmem:[%s3 + $0x190] sm:$0xff]
      %v3493 = vld [vmem:[%s3 + $0x198] sm:$0xff]
      %v3494 = vld [vmem:[%s3 + $0x1a0] sm:$0xff]
      %v3495 = vld [vmem:[%s3 + $0x1a8] sm:$0xff]
      %v3496 = vld [vmem:[%s3 + $0x1b0] sm:$0xff]
      %v3497 = vld [vmem:[%s3 + $0x1b8] sm:$0xff]
      %v3498 = vld [vmem:[%s3 + $0x1c0] sm:$0xff]
      %v3499 = vld [vmem:[%s3 + $0x1c8] sm:$0xff]
      %v3500 = vld [vmem:[%s3 + $0x1d0] sm:$0xff]
      %v3501 = vld [vmem:[%s3 + $0x1d8] sm:$0xff]
      %v3502 = vld [vmem:[%s3 + $0x1e0] sm:$0xff]
      %v3503 = vld [vmem:[%s3 + $0x1e8] sm:$0xff]
      %v3504 = vld [vmem:[%s3 + $0x1f0] sm:$0xff]
      %v3505 = vld [vmem:[%s3 + $0x1f8] sm:$0xff]
      %v3506 = vld [vmem:[%s3 + $0x200] sm:$0xff]
      %v3507 = vld [vmem:[%s3 + $0x208] sm:$0xff]
      %v3508 = vld [vmem:[%s3 + $0x210] sm:$0xff]
      %v3509 = vld [vmem:[%s3 + $0x218] sm:$0xff]
      %v3510 = vld [vmem:[%s3 + $0x220] sm:$0xff]
      %v3511 = vld [vmem:[%s3 + $0x228] sm:$0xff]
      %v3512 = vld [vmem:[%s3 + $0x230] sm:$0xff]
      %v3513 = vld [vmem:[%s3 + $0x238] sm:$0xff]
      %v3514 = vld [vmem:[%s3 + $0x240] sm:$0xff]
      %v3515 = vld [vmem:[%s3 + $0x248] sm:$0xff]
      %v3516 = vld [vmem:[%s3 + $0x250] sm:$0xff]
      %v3517 = vld [vmem:[%s3 + $0x258] sm:$0xff]
      %v3518 = vld [vmem:[%s3 + $0x260] sm:$0xff]
      %v3519 = vld [vmem:[%s3 + $0x268] sm:$0xff]
      %v3520 = vld [vmem:[%s3 + $0x270] sm:$0xff]
      %v3521 = vld [vmem:[%s3 + $0x278] sm:$0xff]
      %v3522 = vld [vmem:[%s3 + $0x280] sm:$0xff]
      %v3523 = vld [vmem:[%s3 + $0x288] sm:$0xff]
      %v3524 = vld [vmem:[%s3 + $0x290] sm:$0xff]
      %v3525 = vld [vmem:[%s3 + $0x298] sm:$0xff]
      %v3526 = vld [vmem:[%s3 + $0x2a0] sm:$0xff]
      %v3527 = vld [vmem:[%s3 + $0x2a8] sm:$0xff]
      %v3528 = vld [vmem:[%s3 + $0x2b0] sm:$0xff]
      %v3529 = vld [vmem:[%s3 + $0x2b8] sm:$0xff]
      %v3530 = vld [vmem:[%s3 + $0x2c0] sm:$0xff]
      %v3531 = vld [vmem:[%s3 + $0x2c8] sm:$0xff]
      %v3532 = vld [vmem:[%s3 + $0x2d0] sm:$0xff]
      %v3533 = vld [vmem:[%s3 + $0x2d8] sm:$0xff]
      %v3534 = vld [vmem:[%s3 + $0x2e0] sm:$0xff]
      %v3535 = vld [vmem:[%s3 + $0x2e8] sm:$0xff]
      %v3536 = vld [vmem:[%s3 + $0x2f0] sm:$0xff]
      %v3537 = vld [vmem:[%s3 + $0x2f8] sm:$0xff]
      %v3538 = vld [vmem:[%s3 + $0x300] sm:$0xff]
      %v3539 = vld [vmem:[%s3 + $0x308] sm:$0xff]
      %v3540 = vld [vmem:[%s3 + $0x310] sm:$0xff]
      %v3541 = vld [vmem:[%s3 + $0x318] sm:$0xff]
      %v3542 = vld [vmem:[%s3 + $0x320] sm:$0xff]
      %v3543 = vld [vmem:[%s3 + $0x328] sm:$0xff]
      %v3544 = vld [vmem:[%s3 + $0x330] sm:$0xff]
      %v3545 = vld [vmem:[%s3 + $0x338] sm:$0xff]
      %v3546 = vld [vmem:[%s3 + $0x340] sm:$0xff]
      %v3547 = vld [vmem:[%s3 + $0x348] sm:$0xff]
      %v3548 = vld [vmem:[%s3 + $0x350] sm:$0xff]
      %v3549 = vld [vmem:[%s3 + $0x358] sm:$0xff]
      %v3550 = vld [vmem:[%s3 + $0x360] sm:$0xff]
      %v3551 = vld [vmem:[%s3 + $0x368] sm:$0xff]
      %v3552 = vld [vmem:[%s3 + $0x370] sm:$0xff]
      %v3553 = vld [vmem:[%s3 + $0x378] sm:$0xff]
      %v3554 = vld [vmem:[%s3 + $0x380] sm:$0xff]
      %v3555 = vld [vmem:[%s3 + $0x388] sm:$0xff]
      %v3556 = vld [vmem:[%s3 + $0x390] sm:$0xff]
      %v3557 = vld [vmem:[%s3 + $0x398] sm:$0xff]
      %v3558 = vld [vmem:[%s3 + $0x3a0] sm:$0xff]
      %v3559 = vld [vmem:[%s3 + $0x3a8] sm:$0xff]
      %v3560 = vld [vmem:[%s3 + $0x3b0] sm:$0xff]
      %v3561 = vld [vmem:[%s3 + $0x3b8] sm:$0xff]
      %v3562 = vld [vmem:[%s3 + $0x3c0] sm:$0xff]
      %v3563 = vld [vmem:[%s3 + $0x3c8] sm:$0xff]
      %v3564 = vld [vmem:[%s3 + $0x3d0] sm:$0xff]
      %v3565 = vld [vmem:[%s3 + $0x3d8] sm:$0xff]
      %v3566 = vld [vmem:[%s3 + $0x3e0] sm:$0xff]
      %v3567 = vld [vmem:[%s3 + $0x3e8] sm:$0xff]
      %v3568 = vld [vmem:[%s3 + $0x3f0] sm:$0xff]
      %v3569 = vld [vmem:[%s3 + $0x3f8] sm:$0xff]
      %v3570 = vld [vmem:[#allocation2] sm:$0xfe]
      %v3571 = vld [vmem:[#allocation2 + $0x8] sm:$0xfe]
      %v3572 = vld [vmem:[#allocation2 + $0x10] sm:$0xfe]
      %v3573 = vld [vmem:[#allocation2 + $0x18] sm:$0xfe]
      %v3574 = vld [vmem:[#allocation2 + $0x40] sm:$0x1]
      %v3575 = vld [vmem:[#allocation2 + $0x48] sm:$0x1]
      %v3576 = vld [vmem:[#allocation2 + $0x50] sm:$0x1]
      %v3577 = vld [vmem:[#allocation2 + $0x58] sm:$0x1]
      %v3578 = vpack.c.bf16 %v3434, %v3570
      %v3579 = vpack.c.bf16 %v3435, %v3571
      %v3580 = vpack.c.bf16 %v3436, %v3572
      %v3581 = vpack.c.bf16 %v3437, %v3573
      %v3582 = vpack.c.bf16 %v3574, %v3574
      %v3583 = vpack.c.bf16 %v3575, %v3575
      %v3584 = vpack.c.bf16 %v3576, %v3576
      %v3585 = vpack.c.bf16 %v3577, %v3577
      %s3586 = scalar_lea.vmem %s3, 1024
      %v3587 = vld [vmem:[%s3586] sm:$0xff]
      %v3588 = vld [vmem:[%s3586 + $0x8] sm:$0xff]
      %v3589 = vld [vmem:[%s3586 + $0x10] sm:$0xff]
      %v3590 = vld [vmem:[%s3586 + $0x18] sm:$0xff]
      %v3591 = vld [vmem:[%s3586 + $0x20] sm:$0xff]
      %v3592 = vld [vmem:[%s3586 + $0x28] sm:$0xff]
      %v3593 = vld [vmem:[%s3586 + $0x30] sm:$0xff]
      %v3594 = vld [vmem:[%s3586 + $0x38] sm:$0xff]
      %v3595 = vld [vmem:[%s3586 + $0x40] sm:$0xff]
      %v3596 = vld [vmem:[%s3586 + $0x48] sm:$0xff]
      %v3597 = vld [vmem:[%s3586 + $0x50] sm:$0xff]
      %v3598 = vld [vmem:[%s3586 + $0x58] sm:$0xff]
      %v3599 = vld [vmem:[%s3586 + $0x60] sm:$0xff]
      %v3600 = vld [vmem:[%s3586 + $0x68] sm:$0xff]
      %v3601 = vld [vmem:[%s3586 + $0x70] sm:$0xff]
      %v3602 = vld [vmem:[%s3586 + $0x78] sm:$0xff]
      %v3603 = vld [vmem:[%s3586 + $0x80] sm:$0xff]
      %v3604 = vld [vmem:[%s3586 + $0x88] sm:$0xff]
      %v3605 = vld [vmem:[%s3586 + $0x90] sm:$0xff]
      %v3606 = vld [vmem:[%s3586 + $0x98] sm:$0xff]
      %v3607 = vld [vmem:[%s3586 + $0xa0] sm:$0xff]
      %v3608 = vld [vmem:[%s3586 + $0xa8] sm:$0xff]
      %v3609 = vld [vmem:[%s3586 + $0xb0] sm:$0xff]
      %v3610 = vld [vmem:[%s3586 + $0xb8] sm:$0xff]
      %v3611 = vld [vmem:[%s3586 + $0xc0] sm:$0xff]
      %v3612 = vld [vmem:[%s3586 + $0xc8] sm:$0xff]
      %v3613 = vld [vmem:[%s3586 + $0xd0] sm:$0xff]
      %v3614 = vld [vmem:[%s3586 + $0xd8] sm:$0xff]
      %v3615 = vld [vmem:[%s3586 + $0xe0] sm:$0xff]
      %v3616 = vld [vmem:[%s3586 + $0xe8] sm:$0xff]
      %v3617 = vld [vmem:[%s3586 + $0xf0] sm:$0xff]
      %v3618 = vld [vmem:[%s3586 + $0xf8] sm:$0xff]
      %v3619 = vld [vmem:[%s3586 + $0x100] sm:$0xff]
      %v3620 = vld [vmem:[%s3586 + $0x108] sm:$0xff]
      %v3621 = vld [vmem:[%s3586 + $0x110] sm:$0xff]
      %v3622 = vld [vmem:[%s3586 + $0x118] sm:$0xff]
      %v3623 = vld [vmem:[%s3586 + $0x120] sm:$0xff]
      %v3624 = vld [vmem:[%s3586 + $0x128] sm:$0xff]
      %v3625 = vld [vmem:[%s3586 + $0x130] sm:$0xff]
      %v3626 = vld [vmem:[%s3586 + $0x138] sm:$0xff]
      %v3627 = vld [vmem:[%s3586 + $0x140] sm:$0xff]
      %v3628 = vld [vmem:[%s3586 + $0x148] sm:$0xff]
      %v3629 = vld [vmem:[%s3586 + $0x150] sm:$0xff]
      %v3630 = vld [vmem:[%s3586 + $0x158] sm:$0xff]
      %v3631 = vld [vmem:[%s3586 + $0x160] sm:$0xff]
      %v3632 = vld [vmem:[%s3586 + $0x168] sm:$0xff]
      %v3633 = vld [vmem:[%s3586 + $0x170] sm:$0xff]
      %v3634 = vld [vmem:[%s3586 + $0x178] sm:$0xff]
      %v3635 = vld [vmem:[%s3586 + $0x180] sm:$0xff]
      %v3636 = vld [vmem:[%s3586 + $0x188] sm:$0xff]
      %v3637 = vld [vmem:[%s3586 + $0x190] sm:$0xff]
      %v3638 = vld [vmem:[%s3586 + $0x198] sm:$0xff]
      %v3639 = vld [vmem:[%s3586 + $0x1a0] sm:$0xff]
      %v3640 = vld [vmem:[%s3586 + $0x1a8] sm:$0xff]
      %v3641 = vld [vmem:[%s3586 + $0x1b0] sm:$0xff]
      %v3642 = vld [vmem:[%s3586 + $0x1b8] sm:$0xff]
      %v3643 = vld [vmem:[%s3586 + $0x1c0] sm:$0xff]
      %v3644 = vld [vmem:[%s3586 + $0x1c8] sm:$0xff]
      %v3645 = vld [vmem:[%s3586 + $0x1d0] sm:$0xff]
      %v3646 = vld [vmem:[%s3586 + $0x1d8] sm:$0xff]
      %v3647 = vld [vmem:[%s3586 + $0x1e0] sm:$0xff]
      %v3648 = vld [vmem:[%s3586 + $0x1e8] sm:$0xff]
      %v3649 = vld [vmem:[%s3586 + $0x1f0] sm:$0xff]
      %v3650 = vld [vmem:[%s3586 + $0x1f8] sm:$0xff]
      %v3651 = vld [vmem:[%s3586 + $0x200] sm:$0xff]
      %v3652 = vld [vmem:[%s3586 + $0x208] sm:$0xff]
      %v3653 = vld [vmem:[%s3586 + $0x210] sm:$0xff]
      %v3654 = vld [vmem:[%s3586 + $0x218] sm:$0xff]
      %v3655 = vld [vmem:[%s3586 + $0x220] sm:$0xff]
      %v3656 = vld [vmem:[%s3586 + $0x228] sm:$0xff]
      %v3657 = vld [vmem:[%s3586 + $0x230] sm:$0xff]
      %v3658 = vld [vmem:[%s3586 + $0x238] sm:$0xff]
      %v3659 = vld [vmem:[%s3586 + $0x240] sm:$0xff]
      %v3660 = vld [vmem:[%s3586 + $0x248] sm:$0xff]
      %v3661 = vld [vmem:[%s3586 + $0x250] sm:$0xff]
      %v3662 = vld [vmem:[%s3586 + $0x258] sm:$0xff]
      %v3663 = vld [vmem:[%s3586 + $0x260] sm:$0xff]
      %v3664 = vld [vmem:[%s3586 + $0x268] sm:$0xff]
      %v3665 = vld [vmem:[%s3586 + $0x270] sm:$0xff]
      %v3666 = vld [vmem:[%s3586 + $0x278] sm:$0xff]
      %v3667 = vld [vmem:[%s3586 + $0x280] sm:$0xff]
      %v3668 = vld [vmem:[%s3586 + $0x288] sm:$0xff]
      %v3669 = vld [vmem:[%s3586 + $0x290] sm:$0xff]
      %v3670 = vld [vmem:[%s3586 + $0x298] sm:$0xff]
      %v3671 = vld [vmem:[%s3586 + $0x2a0] sm:$0xff]
      %v3672 = vld [vmem:[%s3586 + $0x2a8] sm:$0xff]
      %v3673 = vld [vmem:[%s3586 + $0x2b0] sm:$0xff]
      %v3674 = vld [vmem:[%s3586 + $0x2b8] sm:$0xff]
      %v3675 = vld [vmem:[%s3586 + $0x2c0] sm:$0xff]
      %v3676 = vld [vmem:[%s3586 + $0x2c8] sm:$0xff]
      %v3677 = vld [vmem:[%s3586 + $0x2d0] sm:$0xff]
      %v3678 = vld [vmem:[%s3586 + $0x2d8] sm:$0xff]
      %v3679 = vld [vmem:[%s3586 + $0x2e0] sm:$0xff]
      %v3680 = vld [vmem:[%s3586 + $0x2e8] sm:$0xff]
      %v3681 = vld [vmem:[%s3586 + $0x2f0] sm:$0xff]
      %v3682 = vld [vmem:[%s3586 + $0x2f8] sm:$0xff]
      %v3683 = vld [vmem:[%s3586 + $0x300] sm:$0xff]
      %v3684 = vld [vmem:[%s3586 + $0x308] sm:$0xff]
      %v3685 = vld [vmem:[%s3586 + $0x310] sm:$0xff]
      %v3686 = vld [vmem:[%s3586 + $0x318] sm:$0xff]
      %v3687 = vld [vmem:[%s3586 + $0x320] sm:$0xff]
      %v3688 = vld [vmem:[%s3586 + $0x328] sm:$0xff]
      %v3689 = vld [vmem:[%s3586 + $0x330] sm:$0xff]
      %v3690 = vld [vmem:[%s3586 + $0x338] sm:$0xff]
      %v3691 = vld [vmem:[%s3586 + $0x340] sm:$0xff]
      %v3692 = vld [vmem:[%s3586 + $0x348] sm:$0xff]
      %v3693 = vld [vmem:[%s3586 + $0x350] sm:$0xff]
      %v3694 = vld [vmem:[%s3586 + $0x358] sm:$0xff]
      %v3695 = vld [vmem:[%s3586 + $0x360] sm:$0xff]
      %v3696 = vld [vmem:[%s3586 + $0x368] sm:$0xff]
      %v3697 = vld [vmem:[%s3586 + $0x370] sm:$0xff]
      %v3698 = vld [vmem:[%s3586 + $0x378] sm:$0xff]
      %v3699 = vld [vmem:[%s3586 + $0x380] sm:$0xff]
      %v3700 = vld [vmem:[%s3586 + $0x388] sm:$0xff]
      %v3701 = vld [vmem:[%s3586 + $0x390] sm:$0xff]
      %v3702 = vld [vmem:[%s3586 + $0x398] sm:$0xff]
      %v3703 = vld [vmem:[%s3586 + $0x3a0] sm:$0xff]
      %v3704 = vld [vmem:[%s3586 + $0x3a8] sm:$0xff]
      %v3705 = vld [vmem:[%s3586 + $0x3b0] sm:$0xff]
      %v3706 = vld [vmem:[%s3586 + $0x3b8] sm:$0xff]
      %v3707 = vld [vmem:[%s3586 + $0x3c0] sm:$0xff]
      %v3708 = vld [vmem:[%s3586 + $0x3c8] sm:$0xff]
      %v3709 = vld [vmem:[%s3586 + $0x3d0] sm:$0xff]
      %v3710 = vld [vmem:[%s3586 + $0x3d8] sm:$0xff]
      %v3711 = vld [vmem:[%s3586 + $0x3e0] sm:$0xff]
      %v3712 = vld [vmem:[%s3586 + $0x3e8] sm:$0xff]
      %v3713 = vld [vmem:[%s3586 + $0x3f0] sm:$0xff]
      %v3714 = vld [vmem:[%s3586 + $0x3f8] sm:$0xff]
      %v3716 = vshrl.u32 %v3578, 16
      %v3718 = vshll.u32 %v3578, 16
      %v3720 = vrot.slane %v3718, 1
      %v3721 = vor.u32 %v3716, %v3720
      %v3723 = vshll.u32 %v3582, 16
      %v3725 = vrot.slane %v3723, 1
      %v3726 = vsel %vm682, %v3721, %v3725
      %v3728 = vshrl.u32 %v3579, 16
      %v3730 = vshll.u32 %v3579, 16
      %v3732 = vrot.slane %v3730, 1
      %v3733 = vor.u32 %v3728, %v3732
      %v3735 = vshll.u32 %v3583, 16
      %v3737 = vrot.slane %v3735, 1
      %v3738 = vsel %vm682, %v3733, %v3737
      %v3740 = vshrl.u32 %v3580, 16
      %v3742 = vshll.u32 %v3580, 16
      %v3744 = vrot.slane %v3742, 1
      %v3745 = vor.u32 %v3740, %v3744
      %v3747 = vshll.u32 %v3584, 16
      %v3749 = vrot.slane %v3747, 1
      %v3750 = vsel %vm682, %v3745, %v3749
      %v3752 = vshrl.u32 %v3581, 16
      %v3754 = vshll.u32 %v3581, 16
      %v3756 = vrot.slane %v3754, 1
      %v3757 = vor.u32 %v3752, %v3756
      %v3759 = vshll.u32 %v3585, 16
      %v3761 = vrot.slane %v3759, 1
      %v3762 = vsel %vm682, %v3757, %v3761
      %v3895 = vunpack.c.l.b16 %v3587
      %v3896 = vunpack.c.h.b16 %v3587
      %v3897 = vunpack.c.l.b16 %v3588
      %v3898 = vunpack.c.h.b16 %v3588
      %v3899 = vunpack.c.l.b16 %v3589
      %v3900 = vunpack.c.h.b16 %v3589
      %v3901 = vunpack.c.l.b16 %v3590
      %v3902 = vunpack.c.h.b16 %v3590
      %v3903 = vunpack.c.l.b16 %v3591
      %v3904 = vunpack.c.h.b16 %v3591
      %v3905 = vunpack.c.l.b16 %v3592
      %v3906 = vunpack.c.h.b16 %v3592
      %v3907 = vunpack.c.l.b16 %v3593
      %v3908 = vunpack.c.h.b16 %v3593
      %v3909 = vunpack.c.l.b16 %v3594
      %v3910 = vunpack.c.h.b16 %v3594
      %v3911 = vunpack.c.l.b16 %v3595
      %v3912 = vunpack.c.h.b16 %v3595
      %v3913 = vunpack.c.l.b16 %v3596
      %v3914 = vunpack.c.h.b16 %v3596
      %v3915 = vunpack.c.l.b16 %v3597
      %v3916 = vunpack.c.h.b16 %v3597
      %v3917 = vunpack.c.l.b16 %v3598
      %v3918 = vunpack.c.h.b16 %v3598
      %v3919 = vunpack.c.l.b16 %v3599
      %v3920 = vunpack.c.h.b16 %v3599
      %v3921 = vunpack.c.l.b16 %v3600
      %v3922 = vunpack.c.h.b16 %v3600
      %v3923 = vunpack.c.l.b16 %v3601
      %v3924 = vunpack.c.h.b16 %v3601
      %v3925 = vunpack.c.l.b16 %v3602
      %v3926 = vunpack.c.h.b16 %v3602
      %v3927 = vunpack.c.l.b16 %v3603
      %v3928 = vunpack.c.h.b16 %v3603
      %v3929 = vunpack.c.l.b16 %v3604
      %v3930 = vunpack.c.h.b16 %v3604
      %v3931 = vunpack.c.l.b16 %v3605
      %v3932 = vunpack.c.h.b16 %v3605
      %v3933 = vunpack.c.l.b16 %v3606
      %v3934 = vunpack.c.h.b16 %v3606
      %v3935 = vunpack.c.l.b16 %v3607
      %v3936 = vunpack.c.h.b16 %v3607
      %v3937 = vunpack.c.l.b16 %v3608
      %v3938 = vunpack.c.h.b16 %v3608
      %v3939 = vunpack.c.l.b16 %v3609
      %v3940 = vunpack.c.h.b16 %v3609
      %v3941 = vunpack.c.l.b16 %v3610
      %v3942 = vunpack.c.h.b16 %v3610
      %v3943 = vunpack.c.l.b16 %v3611
      %v3944 = vunpack.c.h.b16 %v3611
      %v3945 = vunpack.c.l.b16 %v3612
      %v3946 = vunpack.c.h.b16 %v3612
      %v3947 = vunpack.c.l.b16 %v3613
      %v3948 = vunpack.c.h.b16 %v3613
      %v3949 = vunpack.c.l.b16 %v3614
      %v3950 = vunpack.c.h.b16 %v3614
      %v3951 = vunpack.c.l.b16 %v3615
      %v3952 = vunpack.c.h.b16 %v3615
      %v3953 = vunpack.c.l.b16 %v3616
      %v3954 = vunpack.c.h.b16 %v3616
      %v3955 = vunpack.c.l.b16 %v3617
      %v3956 = vunpack.c.h.b16 %v3617
      %v3957 = vunpack.c.l.b16 %v3618
      %v3958 = vunpack.c.h.b16 %v3618
      %v3959 = vunpack.c.l.b16 %v3619
      %v3960 = vunpack.c.h.b16 %v3619
      %v3961 = vunpack.c.l.b16 %v3620
      %v3962 = vunpack.c.h.b16 %v3620
      %v3963 = vunpack.c.l.b16 %v3621
      %v3964 = vunpack.c.h.b16 %v3621
      %v3965 = vunpack.c.l.b16 %v3622
      %v3966 = vunpack.c.h.b16 %v3622
      %v3967 = vunpack.c.l.b16 %v3623
      %v3968 = vunpack.c.h.b16 %v3623
      %v3969 = vunpack.c.l.b16 %v3624
      %v3970 = vunpack.c.h.b16 %v3624
      %v3971 = vunpack.c.l.b16 %v3625
      %v3972 = vunpack.c.h.b16 %v3625
      %v3973 = vunpack.c.l.b16 %v3626
      %v3974 = vunpack.c.h.b16 %v3626
      %v3975 = vunpack.c.l.b16 %v3627
      %v3976 = vunpack.c.h.b16 %v3627
      %v3977 = vunpack.c.l.b16 %v3628
      %v3978 = vunpack.c.h.b16 %v3628
      %v3979 = vunpack.c.l.b16 %v3629
      %v3980 = vunpack.c.h.b16 %v3629
      %v3981 = vunpack.c.l.b16 %v3630
      %v3982 = vunpack.c.h.b16 %v3630
      %v3983 = vunpack.c.l.b16 %v3631
      %v3984 = vunpack.c.h.b16 %v3631
      %v3985 = vunpack.c.l.b16 %v3632
      %v3986 = vunpack.c.h.b16 %v3632
      %v3987 = vunpack.c.l.b16 %v3633
      %v3988 = vunpack.c.h.b16 %v3633
      %v3989 = vunpack.c.l.b16 %v3634
      %v3990 = vunpack.c.h.b16 %v3634
      %v3991 = vunpack.c.l.b16 %v3635
      %v3992 = vunpack.c.h.b16 %v3635
      %v3993 = vunpack.c.l.b16 %v3636
      %v3994 = vunpack.c.h.b16 %v3636
      %v3995 = vunpack.c.l.b16 %v3637
      %v3996 = vunpack.c.h.b16 %v3637
      %v3997 = vunpack.c.l.b16 %v3638
      %v3998 = vunpack.c.h.b16 %v3638
      %v3999 = vunpack.c.l.b16 %v3639
      %v4000 = vunpack.c.h.b16 %v3639
      %v4001 = vunpack.c.l.b16 %v3640
      %v4002 = vunpack.c.h.b16 %v3640
      %v4003 = vunpack.c.l.b16 %v3641
      %v4004 = vunpack.c.h.b16 %v3641
      %v4005 = vunpack.c.l.b16 %v3642
      %v4006 = vunpack.c.h.b16 %v3642
      %v4007 = vunpack.c.l.b16 %v3643
      %v4008 = vunpack.c.h.b16 %v3643
      %v4009 = vunpack.c.l.b16 %v3644
      %v4010 = vunpack.c.h.b16 %v3644
      %v4011 = vunpack.c.l.b16 %v3645
      %v4012 = vunpack.c.h.b16 %v3645
      %v4013 = vunpack.c.l.b16 %v3646
      %v4014 = vunpack.c.h.b16 %v3646
      %v4015 = vunpack.c.l.b16 %v3647
      %v4016 = vunpack.c.h.b16 %v3647
      %v4017 = vunpack.c.l.b16 %v3648
      %v4018 = vunpack.c.h.b16 %v3648
      %v4019 = vunpack.c.l.b16 %v3649
      %v4020 = vunpack.c.h.b16 %v3649
      %v4021 = vunpack.c.l.b16 %v3650
      %v4022 = vunpack.c.h.b16 %v3650
      %v4023 = vunpack.c.l.b16 %v3651
      %v4024 = vunpack.c.h.b16 %v3651
      %v4025 = vunpack.c.l.b16 %v3652
      %v4026 = vunpack.c.h.b16 %v3652
      %v4027 = vunpack.c.l.b16 %v3653
      %v4028 = vunpack.c.h.b16 %v3653
      %v4029 = vunpack.c.l.b16 %v3654
      %v4030 = vunpack.c.h.b16 %v3654
      %v4031 = vunpack.c.l.b16 %v3655
      %v4032 = vunpack.c.h.b16 %v3655
      %v4033 = vunpack.c.l.b16 %v3656
      %v4034 = vunpack.c.h.b16 %v3656
      %v4035 = vunpack.c.l.b16 %v3657
      %v4036 = vunpack.c.h.b16 %v3657
      %v4037 = vunpack.c.l.b16 %v3658
      %v4038 = vunpack.c.h.b16 %v3658
      %v4039 = vunpack.c.l.b16 %v3659
      %v4040 = vunpack.c.h.b16 %v3659
      %v4041 = vunpack.c.l.b16 %v3660
      %v4042 = vunpack.c.h.b16 %v3660
      %v4043 = vunpack.c.l.b16 %v3661
      %v4044 = vunpack.c.h.b16 %v3661
      %v4045 = vunpack.c.l.b16 %v3662
      %v4046 = vunpack.c.h.b16 %v3662
      %v4047 = vunpack.c.l.b16 %v3663
      %v4048 = vunpack.c.h.b16 %v3663
      %v4049 = vunpack.c.l.b16 %v3664
      %v4050 = vunpack.c.h.b16 %v3664
      %v4051 = vunpack.c.l.b16 %v3665
      %v4052 = vunpack.c.h.b16 %v3665
      %v4053 = vunpack.c.l.b16 %v3666
      %v4054 = vunpack.c.h.b16 %v3666
      %v4055 = vunpack.c.l.b16 %v3667
      %v4056 = vunpack.c.h.b16 %v3667
      %v4057 = vunpack.c.l.b16 %v3668
      %v4058 = vunpack.c.h.b16 %v3668
      %v4059 = vunpack.c.l.b16 %v3669
      %v4060 = vunpack.c.h.b16 %v3669
      %v4061 = vunpack.c.l.b16 %v3670
      %v4062 = vunpack.c.h.b16 %v3670
      %v4063 = vunpack.c.l.b16 %v3671
      %v4064 = vunpack.c.h.b16 %v3671
      %v4065 = vunpack.c.l.b16 %v3672
      %v4066 = vunpack.c.h.b16 %v3672
      %v4067 = vunpack.c.l.b16 %v3673
      %v4068 = vunpack.c.h.b16 %v3673
      %v4069 = vunpack.c.l.b16 %v3674
      %v4070 = vunpack.c.h.b16 %v3674
      %v4071 = vunpack.c.l.b16 %v3675
      %v4072 = vunpack.c.h.b16 %v3675
      %v4073 = vunpack.c.l.b16 %v3676
      %v4074 = vunpack.c.h.b16 %v3676
      %v4075 = vunpack.c.l.b16 %v3677
      %v4076 = vunpack.c.h.b16 %v3677
      %v4077 = vunpack.c.l.b16 %v3678
      %v4078 = vunpack.c.h.b16 %v3678
      %v4079 = vunpack.c.l.b16 %v3679
      %v4080 = vunpack.c.h.b16 %v3679
      %v4081 = vunpack.c.l.b16 %v3680
      %v4082 = vunpack.c.h.b16 %v3680
      %v4083 = vunpack.c.l.b16 %v3681
      %v4084 = vunpack.c.h.b16 %v3681
      %v4085 = vunpack.c.l.b16 %v3682
      %v4086 = vunpack.c.h.b16 %v3682
      %v4087 = vunpack.c.l.b16 %v3683
      %v4088 = vunpack.c.h.b16 %v3683
      %v4089 = vunpack.c.l.b16 %v3684
      %v4090 = vunpack.c.h.b16 %v3684
      %v4091 = vunpack.c.l.b16 %v3685
      %v4092 = vunpack.c.h.b16 %v3685
      %v4093 = vunpack.c.l.b16 %v3686
      %v4094 = vunpack.c.h.b16 %v3686
      %v4095 = vunpack.c.l.b16 %v3687
      %v4096 = vunpack.c.h.b16 %v3687
      %v4097 = vunpack.c.l.b16 %v3688
      %v4098 = vunpack.c.h.b16 %v3688
      %v4099 = vunpack.c.l.b16 %v3689
      %v4100 = vunpack.c.h.b16 %v3689
      %v4101 = vunpack.c.l.b16 %v3690
      %v4102 = vunpack.c.h.b16 %v3690
      %v4103 = vunpack.c.l.b16 %v3691
      %v4104 = vunpack.c.h.b16 %v3691
      %v4105 = vunpack.c.l.b16 %v3692
      %v4106 = vunpack.c.h.b16 %v3692
      %v4107 = vunpack.c.l.b16 %v3693
      %v4108 = vunpack.c.h.b16 %v3693
      %v4109 = vunpack.c.l.b16 %v3694
      %v4110 = vunpack.c.h.b16 %v3694
      %v4111 = vunpack.c.l.b16 %v3695
      %v4112 = vunpack.c.h.b16 %v3695
      %v4113 = vunpack.c.l.b16 %v3696
      %v4114 = vunpack.c.h.b16 %v3696
      %v4115 = vunpack.c.l.b16 %v3697
      %v4116 = vunpack.c.h.b16 %v3697
      %v4117 = vunpack.c.l.b16 %v3698
      %v4118 = vunpack.c.h.b16 %v3698
      %v4119 = vunpack.c.l.b16 %v3699
      %v4120 = vunpack.c.h.b16 %v3699
      %v4121 = vunpack.c.l.b16 %v3700
      %v4122 = vunpack.c.h.b16 %v3700
      %v4123 = vunpack.c.l.b16 %v3701
      %v4124 = vunpack.c.h.b16 %v3701
      %v4125 = vunpack.c.l.b16 %v3702
      %v4126 = vunpack.c.h.b16 %v3702
      %v4127 = vunpack.c.l.b16 %v3703
      %v4128 = vunpack.c.h.b16 %v3703
      %v4129 = vunpack.c.l.b16 %v3704
      %v4130 = vunpack.c.h.b16 %v3704
      %v4131 = vunpack.c.l.b16 %v3705
      %v4132 = vunpack.c.h.b16 %v3705
      %v4133 = vunpack.c.l.b16 %v3706
      %v4134 = vunpack.c.h.b16 %v3706
      %v4135 = vunpack.c.l.b16 %v3707
      %v4136 = vunpack.c.h.b16 %v3707
      %v4137 = vunpack.c.l.b16 %v3708
      %v4138 = vunpack.c.h.b16 %v3708
      %v4139 = vunpack.c.l.b16 %v3709
      %v4140 = vunpack.c.h.b16 %v3709
      %v4141 = vunpack.c.l.b16 %v3710
      %v4142 = vunpack.c.h.b16 %v3710
      %v4143 = vunpack.c.l.b16 %v3711
      %v4144 = vunpack.c.h.b16 %v3711
      %v4145 = vunpack.c.l.b16 %v3712
      %v4146 = vunpack.c.h.b16 %v3712
      %v4147 = vunpack.c.l.b16 %v3713
      %v4148 = vunpack.c.h.b16 %v3713
      %v4149 = vunpack.c.l.b16 %v3714
      %v4150 = vunpack.c.h.b16 %v3714
      %v4151 = vpack.c.b16 %v3899, %v3895
      %v4152 = vpack.c.b16 %v3900, %v3896
      %v4153 = vpack.c.b16 %v3901, %v3897
      %v4154 = vpack.c.b16 %v3902, %v3898
      %v4155 = vpack.c.b16 %v3907, %v3903
      %v4156 = vpack.c.b16 %v3908, %v3904
      %v4157 = vpack.c.b16 %v3909, %v3905
      %v4158 = vpack.c.b16 %v3910, %v3906
      %v4159 = vpack.c.b16 %v3915, %v3911
      %v4160 = vpack.c.b16 %v3916, %v3912
      %v4161 = vpack.c.b16 %v3917, %v3913
      %v4162 = vpack.c.b16 %v3918, %v3914
      %v4163 = vpack.c.b16 %v3923, %v3919
      %v4164 = vpack.c.b16 %v3924, %v3920
      %v4165 = vpack.c.b16 %v3925, %v3921
      %v4166 = vpack.c.b16 %v3926, %v3922
      %v4167 = vpack.c.b16 %v3931, %v3927
      %v4168 = vpack.c.b16 %v3932, %v3928
      %v4169 = vpack.c.b16 %v3933, %v3929
      %v4170 = vpack.c.b16 %v3934, %v3930
      %v4171 = vpack.c.b16 %v3939, %v3935
      %v4172 = vpack.c.b16 %v3940, %v3936
      %v4173 = vpack.c.b16 %v3941, %v3937
      %v4174 = vpack.c.b16 %v3942, %v3938
      %v4175 = vpack.c.b16 %v3947, %v3943
      %v4176 = vpack.c.b16 %v3948, %v3944
      %v4177 = vpack.c.b16 %v3949, %v3945
      %v4178 = vpack.c.b16 %v3950, %v3946
      %v4179 = vpack.c.b16 %v3955, %v3951
      %v4180 = vpack.c.b16 %v3956, %v3952
      %v4181 = vpack.c.b16 %v3957, %v3953
      %v4182 = vpack.c.b16 %v3958, %v3954
      %v4183 = vpack.c.b16 %v3963, %v3959
      %v4184 = vpack.c.b16 %v3964, %v3960
      %v4185 = vpack.c.b16 %v3965, %v3961
      %v4186 = vpack.c.b16 %v3966, %v3962
      %v4187 = vpack.c.b16 %v3971, %v3967
      %v4188 = vpack.c.b16 %v3972, %v3968
      %v4189 = vpack.c.b16 %v3973, %v3969
      %v4190 = vpack.c.b16 %v3974, %v3970
      %v4191 = vpack.c.b16 %v3979, %v3975
      %v4192 = vpack.c.b16 %v3980, %v3976
      %v4193 = vpack.c.b16 %v3981, %v3977
      %v4194 = vpack.c.b16 %v3982, %v3978
      %v4195 = vpack.c.b16 %v3987, %v3983
      %v4196 = vpack.c.b16 %v3988, %v3984
      %v4197 = vpack.c.b16 %v3989, %v3985
      %v4198 = vpack.c.b16 %v3990, %v3986
      %v4199 = vpack.c.b16 %v3995, %v3991
      %v4200 = vpack.c.b16 %v3996, %v3992
      %v4201 = vpack.c.b16 %v3997, %v3993
      %v4202 = vpack.c.b16 %v3998, %v3994
      %v4203 = vpack.c.b16 %v4003, %v3999
      %v4204 = vpack.c.b16 %v4004, %v4000
      %v4205 = vpack.c.b16 %v4005, %v4001
      %v4206 = vpack.c.b16 %v4006, %v4002
      %v4207 = vpack.c.b16 %v4011, %v4007
      %v4208 = vpack.c.b16 %v4012, %v4008
      %v4209 = vpack.c.b16 %v4013, %v4009
      %v4210 = vpack.c.b16 %v4014, %v4010
      %v4211 = vpack.c.b16 %v4019, %v4015
      %v4212 = vpack.c.b16 %v4020, %v4016
      %v4213 = vpack.c.b16 %v4021, %v4017
      %v4214 = vpack.c.b16 %v4022, %v4018
      %v4215 = vpack.c.b16 %v4027, %v4023
      %v4216 = vpack.c.b16 %v4028, %v4024
      %v4217 = vpack.c.b16 %v4029, %v4025
      %v4218 = vpack.c.b16 %v4030, %v4026
      %v4219 = vpack.c.b16 %v4035, %v4031
      %v4220 = vpack.c.b16 %v4036, %v4032
      %v4221 = vpack.c.b16 %v4037, %v4033
      %v4222 = vpack.c.b16 %v4038, %v4034
      %v4223 = vpack.c.b16 %v4043, %v4039
      %v4224 = vpack.c.b16 %v4044, %v4040
      %v4225 = vpack.c.b16 %v4045, %v4041
      %v4226 = vpack.c.b16 %v4046, %v4042
      %v4227 = vpack.c.b16 %v4051, %v4047
      %v4228 = vpack.c.b16 %v4052, %v4048
      %v4229 = vpack.c.b16 %v4053, %v4049
      %v4230 = vpack.c.b16 %v4054, %v4050
      %v4231 = vpack.c.b16 %v4059, %v4055
      %v4232 = vpack.c.b16 %v4060, %v4056
      %v4233 = vpack.c.b16 %v4061, %v4057
      %v4234 = vpack.c.b16 %v4062, %v4058
      %v4235 = vpack.c.b16 %v4067, %v4063
      %v4236 = vpack.c.b16 %v4068, %v4064
      %v4237 = vpack.c.b16 %v4069, %v4065
      %v4238 = vpack.c.b16 %v4070, %v4066
      %v4239 = vpack.c.b16 %v4075, %v4071
      %v4240 = vpack.c.b16 %v4076, %v4072
      %v4241 = vpack.c.b16 %v4077, %v4073
      %v4242 = vpack.c.b16 %v4078, %v4074
      %v4243 = vpack.c.b16 %v4083, %v4079
      %v4244 = vpack.c.b16 %v4084, %v4080
      %v4245 = vpack.c.b16 %v4085, %v4081
      %v4246 = vpack.c.b16 %v4086, %v4082
      %v4247 = vpack.c.b16 %v4091, %v4087
      %v4248 = vpack.c.b16 %v4092, %v4088
      %v4249 = vpack.c.b16 %v4093, %v4089
      %v4250 = vpack.c.b16 %v4094, %v4090
      %v4251 = vpack.c.b16 %v4099, %v4095
      %v4252 = vpack.c.b16 %v4100, %v4096
      %v4253 = vpack.c.b16 %v4101, %v4097
      %v4254 = vpack.c.b16 %v4102, %v4098
      %v4255 = vpack.c.b16 %v4107, %v4103
      %v4256 = vpack.c.b16 %v4108, %v4104
      %v4257 = vpack.c.b16 %v4109, %v4105
      %v4258 = vpack.c.b16 %v4110, %v4106
      %v4259 = vpack.c.b16 %v4115, %v4111
      %v4260 = vpack.c.b16 %v4116, %v4112
      %v4261 = vpack.c.b16 %v4117, %v4113
      %v4262 = vpack.c.b16 %v4118, %v4114
      %v4263 = vpack.c.b16 %v4123, %v4119
      %v4264 = vpack.c.b16 %v4124, %v4120
      %v4265 = vpack.c.b16 %v4125, %v4121
      %v4266 = vpack.c.b16 %v4126, %v4122
      %v4267 = vpack.c.b16 %v4131, %v4127
      %v4268 = vpack.c.b16 %v4132, %v4128
      %v4269 = vpack.c.b16 %v4133, %v4129
      %v4270 = vpack.c.b16 %v4134, %v4130
      %v4271 = vpack.c.b16 %v4139, %v4135
      %v4272 = vpack.c.b16 %v4140, %v4136
      %v4273 = vpack.c.b16 %v4141, %v4137
      %v4274 = vpack.c.b16 %v4142, %v4138
      %v4275 = vpack.c.b16 %v4147, %v4143
      %v4276 = vpack.c.b16 %v4148, %v4144
      %v4277 = vpack.c.b16 %v4149, %v4145
      %v4278 = vpack.c.b16 %v4150, %v4146
      %4407 = vmatprep.subr.bf16.mxu0 %v4152
      %4408 = vmatpush1.bf16.msra.mxu0 %v4151
      %4409 = vmatprep.subr.bf16.mxu0 %v4156
      %4410 = vmatpush1.bf16.msra.mxu0 %v4155
      %4411 = vmatprep.subr.bf16.mxu0 %v4160
      %4412 = vmatpush1.bf16.msra.mxu0 %v4159
      %4413 = vmatprep.subr.bf16.mxu0 %v4164
      %4414 = vmatpush1.bf16.msra.mxu0 %v4163
      %4415 = vmatprep.subr.bf16.mxu0 %v4168
      %4416 = vmatpush1.bf16.msra.mxu0 %v4167
      %4417 = vmatprep.subr.bf16.mxu0 %v4172
      %4418 = vmatpush1.bf16.msra.mxu0 %v4171
      %4419 = vmatprep.subr.bf16.mxu0 %v4176
      %4420 = vmatpush1.bf16.msra.mxu0 %v4175
      %4421 = vmatprep.subr.bf16.mxu0 %v4180
      %4422 = vmatpush1.bf16.msra.mxu0 %v4179
      %4423 = vmatprep.subr.bf16.mxu0 %v4184
      %4424 = vmatpush1.bf16.msra.mxu0 %v4183
      %4425 = vmatprep.subr.bf16.mxu0 %v4188
      %4426 = vmatpush1.bf16.msra.mxu0 %v4187
      %4427 = vmatprep.subr.bf16.mxu0 %v4192
      %4428 = vmatpush1.bf16.msra.mxu0 %v4191
      %4429 = vmatprep.subr.bf16.mxu0 %v4196
      %4430 = vmatpush1.bf16.msra.mxu0 %v4195
      %4431 = vmatprep.subr.bf16.mxu0 %v4200
      %4432 = vmatpush1.bf16.msra.mxu0 %v4199
      %4433 = vmatprep.subr.bf16.mxu0 %v4204
      %4434 = vmatpush1.bf16.msra.mxu0 %v4203
      %4435 = vmatprep.subr.bf16.mxu0 %v4208
      %4436 = vmatpush1.bf16.msra.mxu0 %v4207
      %4437 = vmatprep.subr.bf16.mxu0 %v4212
      %4438 = vmatpush1.bf16.msra.mxu0 %v4211
      %4439 = vmatprep.mubr.bf16.mxu0 %v3738
      %4440 = vmatmul.mubr.bf16.gmra.mrb[0].mxu0 %v3726
      %v4441 = vpop.f32.mrb[0].mxu0
      %v4442 = vadd.f32 0.0, %v4441
      %v4443 = vpop.f32.mrb[0].mxu0
      %v4444 = vadd.f32 0.0, %v4443
      %v4445 = vpop.f32.mrb[0].mxu0
      %v4446 = vadd.f32 0.0, %v4445
      %v4447 = vpop.f32.mrb[0].mxu0
      %v4448 = vadd.f32 0.0, %v4447
      %4449 = vdwg.mxu0
      %4450 = vmatprep.subr.bf16.mxu0 %v4216
      %4451 = vmatpush1.bf16.msra.mxu0 %v4215
      %4452 = vmatprep.subr.bf16.mxu0 %v4220
      %4453 = vmatpush1.bf16.msra.mxu0 %v4219
      %4454 = vmatprep.subr.bf16.mxu0 %v4224
      %4455 = vmatpush1.bf16.msra.mxu0 %v4223
      %4456 = vmatprep.subr.bf16.mxu0 %v4228
      %4457 = vmatpush1.bf16.msra.mxu0 %v4227
      %4458 = vmatprep.subr.bf16.mxu0 %v4232
      %4459 = vmatpush1.bf16.msra.mxu0 %v4231
      %4460 = vmatprep.subr.bf16.mxu0 %v4236
      %4461 = vmatpush1.bf16.msra.mxu0 %v4235
      %4462 = vmatprep.subr.bf16.mxu0 %v4240
      %4463 = vmatpush1.bf16.msra.mxu0 %v4239
      %4464 = vmatprep.subr.bf16.mxu0 %v4244
      %4465 = vmatpush1.bf16.msra.mxu0 %v4243
      %4466 = vmatprep.subr.bf16.mxu0 %v4248
      %4467 = vmatpush1.bf16.msra.mxu0 %v4247
      %4468 = vmatprep.subr.bf16.mxu0 %v4252
      %4469 = vmatpush1.bf16.msra.mxu0 %v4251
      %4470 = vmatprep.subr.bf16.mxu0 %v4256
      %4471 = vmatpush1.bf16.msra.mxu0 %v4255
      %4472 = vmatprep.subr.bf16.mxu0 %v4260
      %4473 = vmatpush1.bf16.msra.mxu0 %v4259
      %4474 = vmatprep.subr.bf16.mxu0 %v4264
      %4475 = vmatpush1.bf16.msra.mxu0 %v4263
      %4476 = vmatprep.subr.bf16.mxu0 %v4268
      %4477 = vmatpush1.bf16.msra.mxu0 %v4267
      %4478 = vmatprep.subr.bf16.mxu0 %v4272
      %4479 = vmatpush1.bf16.msra.mxu0 %v4271
      %4480 = vmatprep.subr.bf16.mxu0 %v4276
      %4481 = vmatpush1.bf16.msra.mxu0 %v4275
      %4482 = vmatprep.mubr.bf16.mxu0 %v3762
      %4483 = vmatmul.mubr.bf16.gmra.mrb[0].mxu0 %v3750
      %v4484 = vpop.f32.mrb[0].mxu0
      %v4485 = vadd.f32 %v4442, %v4484
      %v4486 = vpop.f32.mrb[0].mxu0
      %v4487 = vadd.f32 %v4444, %v4486
      %v4488 = vpop.f32.mrb[0].mxu0
      %v4489 = vadd.f32 %v4446, %v4488
      %v4490 = vpop.f32.mrb[0].mxu0
      %v4491 = vadd.f32 %v4448, %v4490
      %4492 = vdwg.mxu0
      %4493 = vmatprep.subr.bf16.mxu0 %v4154
      %4494 = vmatpush1.bf16.msra.mxu0 %v4153
      %4495 = vmatprep.subr.bf16.mxu0 %v4158
      %4496 = vmatpush1.bf16.msra.mxu0 %v4157
      %4497 = vmatprep.subr.bf16.mxu0 %v4162
      %4498 = vmatpush1.bf16.msra.mxu0 %v4161
      %4499 = vmatprep.subr.bf16.mxu0 %v4166
      %4500 = vmatpush1.bf16.msra.mxu0 %v4165
      %4501 = vmatprep.subr.bf16.mxu0 %v4170
      %4502 = vmatpush1.bf16.msra.mxu0 %v4169
      %4503 = vmatprep.subr.bf16.mxu0 %v4174
      %4504 = vmatpush1.bf16.msra.mxu0 %v4173
      %4505 = vmatprep.subr.bf16.mxu0 %v4178
      %4506 = vmatpush1.bf16.msra.mxu0 %v4177
      %4507 = vmatprep.subr.bf16.mxu0 %v4182
      %4508 = vmatpush1.bf16.msra.mxu0 %v4181
      %4509 = vmatprep.subr.bf16.mxu0 %v4186
      %4510 = vmatpush1.bf16.msra.mxu0 %v4185
      %4511 = vmatprep.subr.bf16.mxu0 %v4190
      %4512 = vmatpush1.bf16.msra.mxu0 %v4189
      %4513 = vmatprep.subr.bf16.mxu0 %v4194
      %4514 = vmatpush1.bf16.msra.mxu0 %v4193
      %4515 = vmatprep.subr.bf16.mxu0 %v4198
      %4516 = vmatpush1.bf16.msra.mxu0 %v4197
      %4517 = vmatprep.subr.bf16.mxu0 %v4202
      %4518 = vmatpush1.bf16.msra.mxu0 %v4201
      %4519 = vmatprep.subr.bf16.mxu0 %v4206
      %4520 = vmatpush1.bf16.msra.mxu0 %v4205
      %4521 = vmatprep.subr.bf16.mxu0 %v4210
      %4522 = vmatpush1.bf16.msra.mxu0 %v4209
      %4523 = vmatprep.subr.bf16.mxu0 %v4214
      %4524 = vmatpush1.bf16.msra.mxu0 %v4213
      %4525 = vmatprep.mubr.bf16.mxu0 %v3738
      %4526 = vmatmul.mubr.bf16.gmra.mrb[0].mxu0 %v3726
      %v4527 = vpop.f32.mrb[0].mxu0
      %v4528 = vadd.f32 0.0, %v4527
      %v4529 = vpop.f32.mrb[0].mxu0
      %v4530 = vadd.f32 0.0, %v4529
      %v4531 = vpop.f32.mrb[0].mxu0
      %v4532 = vadd.f32 0.0, %v4531
      %v4533 = vpop.f32.mrb[0].mxu0
      %v4534 = vadd.f32 0.0, %v4533
      %4535 = vdwg.mxu0
      %4536 = vmatprep.subr.bf16.mxu0 %v4218
      %4537 = vmatpush1.bf16.msra.mxu0 %v4217
      %4538 = vmatprep.subr.bf16.mxu0 %v4222
      %4539 = vmatpush1.bf16.msra.mxu0 %v4221
      %4540 = vmatprep.subr.bf16.mxu0 %v4226
      %4541 = vmatpush1.bf16.msra.mxu0 %v4225
      %4542 = vmatprep.subr.bf16.mxu0 %v4230
      %4543 = vmatpush1.bf16.msra.mxu0 %v4229
      %4544 = vmatprep.subr.bf16.mxu0 %v4234
      %4545 = vmatpush1.bf16.msra.mxu0 %v4233
      %4546 = vmatprep.subr.bf16.mxu0 %v4238
      %4547 = vmatpush1.bf16.msra.mxu0 %v4237
      %4548 = vmatprep.subr.bf16.mxu0 %v4242
      %4549 = vmatpush1.bf16.msra.mxu0 %v4241
      %4550 = vmatprep.subr.bf16.mxu0 %v4246
      %4551 = vmatpush1.bf16.msra.mxu0 %v4245
      %4552 = vmatprep.subr.bf16.mxu0 %v4250
      %4553 = vmatpush1.bf16.msra.mxu0 %v4249
      %4554 = vmatprep.subr.bf16.mxu0 %v4254
      %4555 = vmatpush1.bf16.msra.mxu0 %v4253
      %4556 = vmatprep.subr.bf16.mxu0 %v4258
      %4557 = vmatpush1.bf16.msra.mxu0 %v4257
      %4558 = vmatprep.subr.bf16.mxu0 %v4262
      %4559 = vmatpush1.bf16.msra.mxu0 %v4261
      %4560 = vmatprep.subr.bf16.mxu0 %v4266
      %4561 = vmatpush1.bf16.msra.mxu0 %v4265
      %4562 = vmatprep.subr.bf16.mxu0 %v4270
      %4563 = vmatpush1.bf16.msra.mxu0 %v4269
      %4564 = vmatprep.subr.bf16.mxu0 %v4274
      %4565 = vmatpush1.bf16.msra.mxu0 %v4273
      %4566 = vmatprep.subr.bf16.mxu0 %v4278
      %4567 = vmatpush1.bf16.msra.mxu0 %v4277
      %4568 = vmatprep.mubr.bf16.mxu0 %v3762
      %4569 = vmatmul.mubr.bf16.gmra.mrb[0].mxu0 %v3750
      %v4570 = vpop.f32.mrb[0].mxu0
      %v4571 = vadd.f32 %v4528, %v4570
      %v4572 = vpop.f32.mrb[0].mxu0
      %v4573 = vadd.f32 %v4530, %v4572
      %v4574 = vpop.f32.mrb[0].mxu0
      %v4575 = vadd.f32 %v4532, %v4574
      %v4576 = vpop.f32.mrb[0].mxu0
      %v4577 = vadd.f32 %v4534, %v4576
      %4578 = vdwg.mxu0
      %v4707 = vunpack.c.l.b16 %v3442
      %v4708 = vunpack.c.h.b16 %v3442
      %v4709 = vunpack.c.l.b16 %v3443
      %v4710 = vunpack.c.h.b16 %v3443
      %v4711 = vunpack.c.l.b16 %v3444
      %v4712 = vunpack.c.h.b16 %v3444
      %v4713 = vunpack.c.l.b16 %v3445
      %v4714 = vunpack.c.h.b16 %v3445
      %v4715 = vunpack.c.l.b16 %v3446
      %v4716 = vunpack.c.h.b16 %v3446
      %v4717 = vunpack.c.l.b16 %v3447
      %v4718 = vunpack.c.h.b16 %v3447
      %v4719 = vunpack.c.l.b16 %v3448
      %v4720 = vunpack.c.h.b16 %v3448
      %v4721 = vunpack.c.l.b16 %v3449
      %v4722 = vunpack.c.h.b16 %v3449
      %v4723 = vunpack.c.l.b16 %v3450
      %v4724 = vunpack.c.h.b16 %v3450
      %v4725 = vunpack.c.l.b16 %v3451
      %v4726 = vunpack.c.h.b16 %v3451
      %v4727 = vunpack.c.l.b16 %v3452
      %v4728 = vunpack.c.h.b16 %v3452
      %v4729 = vunpack.c.l.b16 %v3453
      %v4730 = vunpack.c.h.b16 %v3453
      %v4731 = vunpack.c.l.b16 %v3454
      %v4732 = vunpack.c.h.b16 %v3454
      %v4733 = vunpack.c.l.b16 %v3455
      %v4734 = vunpack.c.h.b16 %v3455
      %v4735 = vunpack.c.l.b16 %v3456
      %v4736 = vunpack.c.h.b16 %v3456
      %v4737 = vunpack.c.l.b16 %v3457
      %v4738 = vunpack.c.h.b16 %v3457
      %v4739 = vunpack.c.l.b16 %v3458
      %v4740 = vunpack.c.h.b16 %v3458
      %v4741 = vunpack.c.l.b16 %v3459
      %v4742 = vunpack.c.h.b16 %v3459
      %v4743 = vunpack.c.l.b16 %v3460
      %v4744 = vunpack.c.h.b16 %v3460
      %v4745 = vunpack.c.l.b16 %v3461
      %v4746 = vunpack.c.h.b16 %v3461
      %v4747 = vunpack.c.l.b16 %v3462
      %v4748 = vunpack.c.h.b16 %v3462
      %v4749 = vunpack.c.l.b16 %v3463
      %v4750 = vunpack.c.h.b16 %v3463
      %v4751 = vunpack.c.l.b16 %v3464
      %v4752 = vunpack.c.h.b16 %v3464
      %v4753 = vunpack.c.l.b16 %v3465
      %v4754 = vunpack.c.h.b16 %v3465
      %v4755 = vunpack.c.l.b16 %v3466
      %v4756 = vunpack.c.h.b16 %v3466
      %v4757 = vunpack.c.l.b16 %v3467
      %v4758 = vunpack.c.h.b16 %v3467
      %v4759 = vunpack.c.l.b16 %v3468
      %v4760 = vunpack.c.h.b16 %v3468
      %v4761 = vunpack.c.l.b16 %v3469
      %v4762 = vunpack.c.h.b16 %v3469
      %v4763 = vunpack.c.l.b16 %v3470
      %v4764 = vunpack.c.h.b16 %v3470
      %v4765 = vunpack.c.l.b16 %v3471
      %v4766 = vunpack.c.h.b16 %v3471
      %v4767 = vunpack.c.l.b16 %v3472
      %v4768 = vunpack.c.h.b16 %v3472
      %v4769 = vunpack.c.l.b16 %v3473
      %v4770 = vunpack.c.h.b16 %v3473
      %v4771 = vunpack.c.l.b16 %v3474
      %v4772 = vunpack.c.h.b16 %v3474
      %v4773 = vunpack.c.l.b16 %v3475
      %v4774 = vunpack.c.h.b16 %v3475
      %v4775 = vunpack.c.l.b16 %v3476
      %v4776 = vunpack.c.h.b16 %v3476
      %v4777 = vunpack.c.l.b16 %v3477
      %v4778 = vunpack.c.h.b16 %v3477
      %v4779 = vunpack.c.l.b16 %v3478
      %v4780 = vunpack.c.h.b16 %v3478
      %v4781 = vunpack.c.l.b16 %v3479
      %v4782 = vunpack.c.h.b16 %v3479
      %v4783 = vunpack.c.l.b16 %v3480
      %v4784 = vunpack.c.h.b16 %v3480
      %v4785 = vunpack.c.l.b16 %v3481
      %v4786 = vunpack.c.h.b16 %v3481
      %v4787 = vunpack.c.l.b16 %v3482
      %v4788 = vunpack.c.h.b16 %v3482
      %v4789 = vunpack.c.l.b16 %v3483
      %v4790 = vunpack.c.h.b16 %v3483
      %v4791 = vunpack.c.l.b16 %v3484
      %v4792 = vunpack.c.h.b16 %v3484
      %v4793 = vunpack.c.l.b16 %v3485
      %v4794 = vunpack.c.h.b16 %v3485
      %v4795 = vunpack.c.l.b16 %v3486
      %v4796 = vunpack.c.h.b16 %v3486
      %v4797 = vunpack.c.l.b16 %v3487
      %v4798 = vunpack.c.h.b16 %v3487
      %v4799 = vunpack.c.l.b16 %v3488
      %v4800 = vunpack.c.h.b16 %v3488
      %v4801 = vunpack.c.l.b16 %v3489
      %v4802 = vunpack.c.h.b16 %v3489
      %v4803 = vunpack.c.l.b16 %v3490
      %v4804 = vunpack.c.h.b16 %v3490
      %v4805 = vunpack.c.l.b16 %v3491
      %v4806 = vunpack.c.h.b16 %v3491
      %v4807 = vunpack.c.l.b16 %v3492
      %v4808 = vunpack.c.h.b16 %v3492
      %v4809 = vunpack.c.l.b16 %v3493
      %v4810 = vunpack.c.h.b16 %v3493
      %v4811 = vunpack.c.l.b16 %v3494
      %v4812 = vunpack.c.h.b16 %v3494
      %v4813 = vunpack.c.l.b16 %v3495
      %v4814 = vunpack.c.h.b16 %v3495
      %v4815 = vunpack.c.l.b16 %v3496
      %v4816 = vunpack.c.h.b16 %v3496
      %v4817 = vunpack.c.l.b16 %v3497
      %v4818 = vunpack.c.h.b16 %v3497
      %v4819 = vunpack.c.l.b16 %v3498
      %v4820 = vunpack.c.h.b16 %v3498
      %v4821 = vunpack.c.l.b16 %v3499
      %v4822 = vunpack.c.h.b16 %v3499
      %v4823 = vunpack.c.l.b16 %v3500
      %v4824 = vunpack.c.h.b16 %v3500
      %v4825 = vunpack.c.l.b16 %v3501
      %v4826 = vunpack.c.h.b16 %v3501
      %v4827 = vunpack.c.l.b16 %v3502
      %v4828 = vunpack.c.h.b16 %v3502
      %v4829 = vunpack.c.l.b16 %v3503
      %v4830 = vunpack.c.h.b16 %v3503
      %v4831 = vunpack.c.l.b16 %v3504
      %v4832 = vunpack.c.h.b16 %v3504
      %v4833 = vunpack.c.l.b16 %v3505
      %v4834 = vunpack.c.h.b16 %v3505
      %v4835 = vunpack.c.l.b16 %v3506
      %v4836 = vunpack.c.h.b16 %v3506
      %v4837 = vunpack.c.l.b16 %v3507
      %v4838 = vunpack.c.h.b16 %v3507
      %v4839 = vunpack.c.l.b16 %v3508
      %v4840 = vunpack.c.h.b16 %v3508
      %v4841 = vunpack.c.l.b16 %v3509
      %v4842 = vunpack.c.h.b16 %v3509
      %v4843 = vunpack.c.l.b16 %v3510
      %v4844 = vunpack.c.h.b16 %v3510
      %v4845 = vunpack.c.l.b16 %v3511
      %v4846 = vunpack.c.h.b16 %v3511
      %v4847 = vunpack.c.l.b16 %v3512
      %v4848 = vunpack.c.h.b16 %v3512
      %v4849 = vunpack.c.l.b16 %v3513
      %v4850 = vunpack.c.h.b16 %v3513
      %v4851 = vunpack.c.l.b16 %v3514
      %v4852 = vunpack.c.h.b16 %v3514
      %v4853 = vunpack.c.l.b16 %v3515
      %v4854 = vunpack.c.h.b16 %v3515
      %v4855 = vunpack.c.l.b16 %v3516
      %v4856 = vunpack.c.h.b16 %v3516
      %v4857 = vunpack.c.l.b16 %v3517
      %v4858 = vunpack.c.h.b16 %v3517
      %v4859 = vunpack.c.l.b16 %v3518
      %v4860 = vunpack.c.h.b16 %v3518
      %v4861 = vunpack.c.l.b16 %v3519
      %v4862 = vunpack.c.h.b16 %v3519
      %v4863 = vunpack.c.l.b16 %v3520
      %v4864 = vunpack.c.h.b16 %v3520
      %v4865 = vunpack.c.l.b16 %v3521
      %v4866 = vunpack.c.h.b16 %v3521
      %v4867 = vunpack.c.l.b16 %v3522
      %v4868 = vunpack.c.h.b16 %v3522
      %v4869 = vunpack.c.l.b16 %v3523
      %v4870 = vunpack.c.h.b16 %v3523
      %v4871 = vunpack.c.l.b16 %v3524
      %v4872 = vunpack.c.h.b16 %v3524
      %v4873 = vunpack.c.l.b16 %v3525
      %v4874 = vunpack.c.h.b16 %v3525
      %v4875 = vunpack.c.l.b16 %v3526
      %v4876 = vunpack.c.h.b16 %v3526
      %v4877 = vunpack.c.l.b16 %v3527
      %v4878 = vunpack.c.h.b16 %v3527
      %v4879 = vunpack.c.l.b16 %v3528
      %v4880 = vunpack.c.h.b16 %v3528
      %v4881 = vunpack.c.l.b16 %v3529
      %v4882 = vunpack.c.h.b16 %v3529
      %v4883 = vunpack.c.l.b16 %v3530
      %v4884 = vunpack.c.h.b16 %v3530
      %v4885 = vunpack.c.l.b16 %v3531
      %v4886 = vunpack.c.h.b16 %v3531
      %v4887 = vunpack.c.l.b16 %v3532
      %v4888 = vunpack.c.h.b16 %v3532
      %v4889 = vunpack.c.l.b16 %v3533
      %v4890 = vunpack.c.h.b16 %v3533
      %v4891 = vunpack.c.l.b16 %v3534
      %v4892 = vunpack.c.h.b16 %v3534
      %v4893 = vunpack.c.l.b16 %v3535
      %v4894 = vunpack.c.h.b16 %v3535
      %v4895 = vunpack.c.l.b16 %v3536
      %v4896 = vunpack.c.h.b16 %v3536
      %v4897 = vunpack.c.l.b16 %v3537
      %v4898 = vunpack.c.h.b16 %v3537
      %v4899 = vunpack.c.l.b16 %v3538
      %v4900 = vunpack.c.h.b16 %v3538
      %v4901 = vunpack.c.l.b16 %v3539
      %v4902 = vunpack.c.h.b16 %v3539
      %v4903 = vunpack.c.l.b16 %v3540
      %v4904 = vunpack.c.h.b16 %v3540
      %v4905 = vunpack.c.l.b16 %v3541
      %v4906 = vunpack.c.h.b16 %v3541
      %v4907 = vunpack.c.l.b16 %v3542
      %v4908 = vunpack.c.h.b16 %v3542
      %v4909 = vunpack.c.l.b16 %v3543
      %v4910 = vunpack.c.h.b16 %v3543
      %v4911 = vunpack.c.l.b16 %v3544
      %v4912 = vunpack.c.h.b16 %v3544
      %v4913 = vunpack.c.l.b16 %v3545
      %v4914 = vunpack.c.h.b16 %v3545
      %v4915 = vunpack.c.l.b16 %v3546
      %v4916 = vunpack.c.h.b16 %v3546
      %v4917 = vunpack.c.l.b16 %v3547
      %v4918 = vunpack.c.h.b16 %v3547
      %v4919 = vunpack.c.l.b16 %v3548
      %v4920 = vunpack.c.h.b16 %v3548
      %v4921 = vunpack.c.l.b16 %v3549
      %v4922 = vunpack.c.h.b16 %v3549
      %v4923 = vunpack.c.l.b16 %v3550
      %v4924 = vunpack.c.h.b16 %v3550
      %v4925 = vunpack.c.l.b16 %v3551
      %v4926 = vunpack.c.h.b16 %v3551
      %v4927 = vunpack.c.l.b16 %v3552
      %v4928 = vunpack.c.h.b16 %v3552
      %v4929 = vunpack.c.l.b16 %v3553
      %v4930 = vunpack.c.h.b16 %v3553
      %v4931 = vunpack.c.l.b16 %v3554
      %v4932 = vunpack.c.h.b16 %v3554
      %v4933 = vunpack.c.l.b16 %v3555
      %v4934 = vunpack.c.h.b16 %v3555
      %v4935 = vunpack.c.l.b16 %v3556
      %v4936 = vunpack.c.h.b16 %v3556
      %v4937 = vunpack.c.l.b16 %v3557
      %v4938 = vunpack.c.h.b16 %v3557
      %v4939 = vunpack.c.l.b16 %v3558
      %v4940 = vunpack.c.h.b16 %v3558
      %v4941 = vunpack.c.l.b16 %v3559
      %v4942 = vunpack.c.h.b16 %v3559
      %v4943 = vunpack.c.l.b16 %v3560
      %v4944 = vunpack.c.h.b16 %v3560
      %v4945 = vunpack.c.l.b16 %v3561
      %v4946 = vunpack.c.h.b16 %v3561
      %v4947 = vunpack.c.l.b16 %v3562
      %v4948 = vunpack.c.h.b16 %v3562
      %v4949 = vunpack.c.l.b16 %v3563
      %v4950 = vunpack.c.h.b16 %v3563
      %v4951 = vunpack.c.l.b16 %v3564
      %v4952 = vunpack.c.h.b16 %v3564
      %v4953 = vunpack.c.l.b16 %v3565
      %v4954 = vunpack.c.h.b16 %v3565
      %v4955 = vunpack.c.l.b16 %v3566
      %v4956 = vunpack.c.h.b16 %v3566
      %v4957 = vunpack.c.l.b16 %v3567
      %v4958 = vunpack.c.h.b16 %v3567
      %v4959 = vunpack.c.l.b16 %v3568
      %v4960 = vunpack.c.h.b16 %v3568
      %v4961 = vunpack.c.l.b16 %v3569
      %v4962 = vunpack.c.h.b16 %v3569
      %v4963 = vpack.c.b16 %v4711, %v4707
      %v4964 = vpack.c.b16 %v4712, %v4708
      %v4965 = vpack.c.b16 %v4713, %v4709
      %v4966 = vpack.c.b16 %v4714, %v4710
      %v4967 = vpack.c.b16 %v4719, %v4715
      %v4968 = vpack.c.b16 %v4720, %v4716
      %v4969 = vpack.c.b16 %v4721, %v4717
      %v4970 = vpack.c.b16 %v4722, %v4718
      %v4971 = vpack.c.b16 %v4727, %v4723
      %v4972 = vpack.c.b16 %v4728, %v4724
      %v4973 = vpack.c.b16 %v4729, %v4725
      %v4974 = vpack.c.b16 %v4730, %v4726
      %v4975 = vpack.c.b16 %v4735, %v4731
      %v4976 = vpack.c.b16 %v4736, %v4732
      %v4977 = vpack.c.b16 %v4737, %v4733
      %v4978 = vpack.c.b16 %v4738, %v4734
      %v4979 = vpack.c.b16 %v4743, %v4739
      %v4980 = vpack.c.b16 %v4744, %v4740
      %v4981 = vpack.c.b16 %v4745, %v4741
      %v4982 = vpack.c.b16 %v4746, %v4742
      %v4983 = vpack.c.b16 %v4751, %v4747
      %v4984 = vpack.c.b16 %v4752, %v4748
      %v4985 = vpack.c.b16 %v4753, %v4749
      %v4986 = vpack.c.b16 %v4754, %v4750
      %v4987 = vpack.c.b16 %v4759, %v4755
      %v4988 = vpack.c.b16 %v4760, %v4756
      %v4989 = vpack.c.b16 %v4761, %v4757
      %v4990 = vpack.c.b16 %v4762, %v4758
      %v4991 = vpack.c.b16 %v4767, %v4763
      %v4992 = vpack.c.b16 %v4768, %v4764
      %v4993 = vpack.c.b16 %v4769, %v4765
      %v4994 = vpack.c.b16 %v4770, %v4766
      %v4995 = vpack.c.b16 %v4775, %v4771
      %v4996 = vpack.c.b16 %v4776, %v4772
      %v4997 = vpack.c.b16 %v4777, %v4773
      %v4998 = vpack.c.b16 %v4778, %v4774
      %v4999 = vpack.c.b16 %v4783, %v4779
      %v5000 = vpack.c.b16 %v4784, %v4780
      %v5001 = vpack.c.b16 %v4785, %v4781
      %v5002 = vpack.c.b16 %v4786, %v4782
      %v5003 = vpack.c.b16 %v4791, %v4787
      %v5004 = vpack.c.b16 %v4792, %v4788
      %v5005 = vpack.c.b16 %v4793, %v4789
      %v5006 = vpack.c.b16 %v4794, %v4790
      %v5007 = vpack.c.b16 %v4799, %v4795
      %v5008 = vpack.c.b16 %v4800, %v4796
      %v5009 = vpack.c.b16 %v4801, %v4797
      %v5010 = vpack.c.b16 %v4802, %v4798
      %v5011 = vpack.c.b16 %v4807, %v4803
      %v5012 = vpack.c.b16 %v4808, %v4804
      %v5013 = vpack.c.b16 %v4809, %v4805
      %v5014 = vpack.c.b16 %v4810, %v4806
      %v5015 = vpack.c.b16 %v4815, %v4811
      %v5016 = vpack.c.b16 %v4816, %v4812
      %v5017 = vpack.c.b16 %v4817, %v4813
      %v5018 = vpack.c.b16 %v4818, %v4814
      %v5019 = vpack.c.b16 %v4823, %v4819
      %v5020 = vpack.c.b16 %v4824, %v4820
      %v5021 = vpack.c.b16 %v4825, %v4821
      %v5022 = vpack.c.b16 %v4826, %v4822
      %v5023 = vpack.c.b16 %v4831, %v4827
      %v5024 = vpack.c.b16 %v4832, %v4828
      %v5025 = vpack.c.b16 %v4833, %v4829
      %v5026 = vpack.c.b16 %v4834, %v4830
      %v5027 = vpack.c.b16 %v4839, %v4835
      %v5028 = vpack.c.b16 %v4840, %v4836
      %v5029 = vpack.c.b16 %v4841, %v4837
      %v5030 = vpack.c.b16 %v4842, %v4838
      %v5031 = vpack.c.b16 %v4847, %v4843
      %v5032 = vpack.c.b16 %v4848, %v4844
      %v5033 = vpack.c.b16 %v4849, %v4845
      %v5034 = vpack.c.b16 %v4850, %v4846
      %v5035 = vpack.c.b16 %v4855, %v4851
      %v5036 = vpack.c.b16 %v4856, %v4852
      %v5037 = vpack.c.b16 %v4857, %v4853
      %v5038 = vpack.c.b16 %v4858, %v4854
      %v5039 = vpack.c.b16 %v4863, %v4859
      %v5040 = vpack.c.b16 %v4864, %v4860
      %v5041 = vpack.c.b16 %v4865, %v4861
      %v5042 = vpack.c.b16 %v4866, %v4862
      %v5043 = vpack.c.b16 %v4871, %v4867
      %v5044 = vpack.c.b16 %v4872, %v4868
      %v5045 = vpack.c.b16 %v4873, %v4869
      %v5046 = vpack.c.b16 %v4874, %v4870
      %v5047 = vpack.c.b16 %v4879, %v4875
      %v5048 = vpack.c.b16 %v4880, %v4876
      %v5049 = vpack.c.b16 %v4881, %v4877
      %v5050 = vpack.c.b16 %v4882, %v4878
      %v5051 = vpack.c.b16 %v4887, %v4883
      %v5052 = vpack.c.b16 %v4888, %v4884
      %v5053 = vpack.c.b16 %v4889, %v4885
      %v5054 = vpack.c.b16 %v4890, %v4886
      %v5055 = vpack.c.b16 %v4895, %v4891
      %v5056 = vpack.c.b16 %v4896, %v4892
      %v5057 = vpack.c.b16 %v4897, %v4893
      %v5058 = vpack.c.b16 %v4898, %v4894
      %v5059 = vpack.c.b16 %v4903, %v4899
      %v5060 = vpack.c.b16 %v4904, %v4900
      %v5061 = vpack.c.b16 %v4905, %v4901
      %v5062 = vpack.c.b16 %v4906, %v4902
      %v5063 = vpack.c.b16 %v4911, %v4907
      %v5064 = vpack.c.b16 %v4912, %v4908
      %v5065 = vpack.c.b16 %v4913, %v4909
      %v5066 = vpack.c.b16 %v4914, %v4910
      %v5067 = vpack.c.b16 %v4919, %v4915
      %v5068 = vpack.c.b16 %v4920, %v4916
      %v5069 = vpack.c.b16 %v4921, %v4917
      %v5070 = vpack.c.b16 %v4922, %v4918
      %v5071 = vpack.c.b16 %v4927, %v4923
      %v5072 = vpack.c.b16 %v4928, %v4924
      %v5073 = vpack.c.b16 %v4929, %v4925
      %v5074 = vpack.c.b16 %v4930, %v4926
      %v5075 = vpack.c.b16 %v4935, %v4931
      %v5076 = vpack.c.b16 %v4936, %v4932
      %v5077 = vpack.c.b16 %v4937, %v4933
      %v5078 = vpack.c.b16 %v4938, %v4934
      %v5079 = vpack.c.b16 %v4943, %v4939
      %v5080 = vpack.c.b16 %v4944, %v4940
      %v5081 = vpack.c.b16 %v4945, %v4941
      %v5082 = vpack.c.b16 %v4946, %v4942
      %v5083 = vpack.c.b16 %v4951, %v4947
      %v5084 = vpack.c.b16 %v4952, %v4948
      %v5085 = vpack.c.b16 %v4953, %v4949
      %v5086 = vpack.c.b16 %v4954, %v4950
      %v5087 = vpack.c.b16 %v4959, %v4955
      %v5088 = vpack.c.b16 %v4960, %v4956
      %v5089 = vpack.c.b16 %v4961, %v4957
      %v5090 = vpack.c.b16 %v4962, %v4958
      %5219 = vmatprep.subr.bf16.mxu0 %v4964
      %5220 = vmatpush1.bf16.msra.mxu0 %v4963
      %5221 = vmatprep.subr.bf16.mxu0 %v4968
      %5222 = vmatpush1.bf16.msra.mxu0 %v4967
      %5223 = vmatprep.subr.bf16.mxu0 %v4972
      %5224 = vmatpush1.bf16.msra.mxu0 %v4971
      %5225 = vmatprep.subr.bf16.mxu0 %v4976
      %5226 = vmatpush1.bf16.msra.mxu0 %v4975
      %5227 = vmatprep.subr.bf16.mxu0 %v4980
      %5228 = vmatpush1.bf16.msra.mxu0 %v4979
      %5229 = vmatprep.subr.bf16.mxu0 %v4984
      %5230 = vmatpush1.bf16.msra.mxu0 %v4983
      %5231 = vmatprep.subr.bf16.mxu0 %v4988
      %5232 = vmatpush1.bf16.msra.mxu0 %v4987
      %5233 = vmatprep.subr.bf16.mxu0 %v4992
      %5234 = vmatpush1.bf16.msra.mxu0 %v4991
      %5235 = vmatprep.subr.bf16.mxu0 %v4996
      %5236 = vmatpush1.bf16.msra.mxu0 %v4995
      %5237 = vmatprep.subr.bf16.mxu0 %v5000
      %5238 = vmatpush1.bf16.msra.mxu0 %v4999
      %5239 = vmatprep.subr.bf16.mxu0 %v5004
      %5240 = vmatpush1.bf16.msra.mxu0 %v5003
      %5241 = vmatprep.subr.bf16.mxu0 %v5008
      %5242 = vmatpush1.bf16.msra.mxu0 %v5007
      %5243 = vmatprep.subr.bf16.mxu0 %v5012
      %5244 = vmatpush1.bf16.msra.mxu0 %v5011
      %5245 = vmatprep.subr.bf16.mxu0 %v5016
      %5246 = vmatpush1.bf16.msra.mxu0 %v5015
      %5247 = vmatprep.subr.bf16.mxu0 %v5020
      %5248 = vmatpush1.bf16.msra.mxu0 %v5019
      %5249 = vmatprep.subr.bf16.mxu0 %v5024
      %5250 = vmatpush1.bf16.msra.mxu0 %v5023
      %5251 = vmatprep.mubr.bf16.mxu0 %v3439
      %5252 = vmatmul.mubr.bf16.gmra.mrb[0].mxu0 %v3438
      %v5253 = vpop.f32.mrb[0].mxu0
      %v5254 = vadd.f32 %v4485, %v5253
      %v5255 = vpop.f32.mrb[0].mxu0
      %v5256 = vadd.f32 %v4487, %v5255
      %v5257 = vpop.f32.mrb[0].mxu0
      %v5258 = vadd.f32 %v4489, %v5257
      %v5259 = vpop.f32.mrb[0].mxu0
      %v5260 = vadd.f32 %v4491, %v5259
      %5261 = vdwg.mxu0
      %5262 = vmatprep.subr.bf16.mxu0 %v5028
      %5263 = vmatpush1.bf16.msra.mxu0 %v5027
      %5264 = vmatprep.subr.bf16.mxu0 %v5032
      %5265 = vmatpush1.bf16.msra.mxu0 %v5031
      %5266 = vmatprep.subr.bf16.mxu0 %v5036
      %5267 = vmatpush1.bf16.msra.mxu0 %v5035
      %5268 = vmatprep.subr.bf16.mxu0 %v5040
      %5269 = vmatpush1.bf16.msra.mxu0 %v5039
      %5270 = vmatprep.subr.bf16.mxu0 %v5044
      %5271 = vmatpush1.bf16.msra.mxu0 %v5043
      %5272 = vmatprep.subr.bf16.mxu0 %v5048
      %5273 = vmatpush1.bf16.msra.mxu0 %v5047
      %5274 = vmatprep.subr.bf16.mxu0 %v5052
      %5275 = vmatpush1.bf16.msra.mxu0 %v5051
      %5276 = vmatprep.subr.bf16.mxu0 %v5056
      %5277 = vmatpush1.bf16.msra.mxu0 %v5055
      %5278 = vmatprep.subr.bf16.mxu0 %v5060
      %5279 = vmatpush1.bf16.msra.mxu0 %v5059
      %5280 = vmatprep.subr.bf16.mxu0 %v5064
      %5281 = vmatpush1.bf16.msra.mxu0 %v5063
      %5282 = vmatprep.subr.bf16.mxu0 %v5068
      %5283 = vmatpush1.bf16.msra.mxu0 %v5067
      %5284 = vmatprep.subr.bf16.mxu0 %v5072
      %5285 = vmatpush1.bf16.msra.mxu0 %v5071
      %5286 = vmatprep.subr.bf16.mxu0 %v5076
      %5287 = vmatpush1.bf16.msra.mxu0 %v5075
      %5288 = vmatprep.subr.bf16.mxu0 %v5080
      %5289 = vmatpush1.bf16.msra.mxu0 %v5079
      %5290 = vmatprep.subr.bf16.mxu0 %v5084
      %5291 = vmatpush1.bf16.msra.mxu0 %v5083
      %5292 = vmatprep.subr.bf16.mxu0 %v5088
      %5293 = vmatpush1.bf16.msra.mxu0 %v5087
      %5294 = vmatprep.mubr.bf16.mxu0 %v3441
      %5295 = vmatmul.mubr.bf16.gmra.mrb[0].mxu0 %v3440
      %v5296 = vpop.f32.mrb[0].mxu0
      %v5297 = vadd.f32 %v5254, %v5296
      %v5298 = vpop.f32.mrb[0].mxu0
      %v5299 = vadd.f32 %v5256, %v5298
      %v5300 = vpop.f32.mrb[0].mxu0
      %v5301 = vadd.f32 %v5258, %v5300
      %v5302 = vpop.f32.mrb[0].mxu0
      %v5303 = vadd.f32 %v5260, %v5302
      %5304 = vdwg.mxu0
      %5305 = vmatprep.subr.bf16.mxu0 %v4966
      %5306 = vmatpush1.bf16.msra.mxu0 %v4965
      %5307 = vmatprep.subr.bf16.mxu0 %v4970
      %5308 = vmatpush1.bf16.msra.mxu0 %v4969
      %5309 = vmatprep.subr.bf16.mxu0 %v4974
      %5310 = vmatpush1.bf16.msra.mxu0 %v4973
      %5311 = vmatprep.subr.bf16.mxu0 %v4978
      %5312 = vmatpush1.bf16.msra.mxu0 %v4977
      %5313 = vmatprep.subr.bf16.mxu0 %v4982
      %5314 = vmatpush1.bf16.msra.mxu0 %v4981
      %5315 = vmatprep.subr.bf16.mxu0 %v4986
      %5316 = vmatpush1.bf16.msra.mxu0 %v4985
      %5317 = vmatprep.subr.bf16.mxu0 %v4990
      %5318 = vmatpush1.bf16.msra.mxu0 %v4989
      %5319 = vmatprep.subr.bf16.mxu0 %v4994
      %5320 = vmatpush1.bf16.msra.mxu0 %v4993
      %5321 = vmatprep.subr.bf16.mxu0 %v4998
      %5322 = vmatpush1.bf16.msra.mxu0 %v4997
      %5323 = vmatprep.subr.bf16.mxu0 %v5002
      %5324 = vmatpush1.bf16.msra.mxu0 %v5001
      %5325 = vmatprep.subr.bf16.mxu0 %v5006
      %5326 = vmatpush1.bf16.msra.mxu0 %v5005
      %5327 = vmatprep.subr.bf16.mxu0 %v5010
      %5328 = vmatpush1.bf16.msra.mxu0 %v5009
      %5329 = vmatprep.subr.bf16.mxu0 %v5014
      %5330 = vmatpush1.bf16.msra.mxu0 %v5013
      %5331 = vmatprep.subr.bf16.mxu0 %v5018
      %5332 = vmatpush1.bf16.msra.mxu0 %v5017
      %5333 = vmatprep.subr.bf16.mxu0 %v5022
      %5334 = vmatpush1.bf16.msra.mxu0 %v5021
      %5335 = vmatprep.subr.bf16.mxu0 %v5026
      %5336 = vmatpush1.bf16.msra.mxu0 %v5025
      %5337 = vmatprep.mubr.bf16.mxu0 %v3439
      %5338 = vmatmul.mubr.bf16.gmra.mrb[0].mxu0 %v3438
      %v5339 = vpop.f32.mrb[0].mxu0
      %v5340 = vadd.f32 %v4571, %v5339
      %v5341 = vpop.f32.mrb[0].mxu0
      %v5342 = vadd.f32 %v4573, %v5341
      %v5343 = vpop.f32.mrb[0].mxu0
      %v5344 = vadd.f32 %v4575, %v5343
      %v5345 = vpop.f32.mrb[0].mxu0
      %v5346 = vadd.f32 %v4577, %v5345
      %5347 = vdwg.mxu0
      %5348 = vmatprep.subr.bf16.mxu0 %v5030
      %5349 = vmatpush1.bf16.msra.mxu0 %v5029
      %5350 = vmatprep.subr.bf16.mxu0 %v5034
      %5351 = vmatpush1.bf16.msra.mxu0 %v5033
      %5352 = vmatprep.subr.bf16.mxu0 %v5038
      %5353 = vmatpush1.bf16.msra.mxu0 %v5037
      %5354 = vmatprep.subr.bf16.mxu0 %v5042
      %5355 = vmatpush1.bf16.msra.mxu0 %v5041
      %5356 = vmatprep.subr.bf16.mxu0 %v5046
      %5357 = vmatpush1.bf16.msra.mxu0 %v5045
      %5358 = vmatprep.subr.bf16.mxu0 %v5050
      %5359 = vmatpush1.bf16.msra.mxu0 %v5049
      %5360 = vmatprep.subr.bf16.mxu0 %v5054
      %5361 = vmatpush1.bf16.msra.mxu0 %v5053
      %5362 = vmatprep.subr.bf16.mxu0 %v5058
      %5363 = vmatpush1.bf16.msra.mxu0 %v5057
      %5364 = vmatprep.subr.bf16.mxu0 %v5062
      %5365 = vmatpush1.bf16.msra.mxu0 %v5061
      %5366 = vmatprep.subr.bf16.mxu0 %v5066
      %5367 = vmatpush1.bf16.msra.mxu0 %v5065
      %5368 = vmatprep.subr.bf16.mxu0 %v5070
      %5369 = vmatpush1.bf16.msra.mxu0 %v5069
      %5370 = vmatprep.subr.bf16.mxu0 %v5074
      %5371 = vmatpush1.bf16.msra.mxu0 %v5073
      %5372 = vmatprep.subr.bf16.mxu0 %v5078
      %5373 = vmatpush1.bf16.msra.mxu0 %v5077
      %5374 = vmatprep.subr.bf16.mxu0 %v5082
      %5375 = vmatpush1.bf16.msra.mxu0 %v5081
      %5376 = vmatprep.subr.bf16.mxu0 %v5086
      %5377 = vmatpush1.bf16.msra.mxu0 %v5085
      %5378 = vmatprep.subr.bf16.mxu0 %v5090
      %5379 = vmatpush1.bf16.msra.mxu0 %v5089
      %5380 = vmatprep.mubr.bf16.mxu0 %v3441
      %5381 = vmatmul.mubr.bf16.gmra.mrb[0].mxu0 %v3440
      %v5382 = vpop.f32.mrb[0].mxu0
      %v5383 = vadd.f32 %v5340, %v5382
      %v5384 = vpop.f32.mrb[0].mxu0
      %v5385 = vadd.f32 %v5342, %v5384
      %v5386 = vpop.f32.mrb[0].mxu0
      %v5387 = vadd.f32 %v5344, %v5386
      %v5388 = vpop.f32.mrb[0].mxu0
      %v5389 = vadd.f32 %v5346, %v5388
      %5390 = vdwg.mxu0
      %v5391 = vld [vmem:[#allocation2] sm:$0xfc]
      %v5392 = vld [vmem:[#allocation2 + $0x8] sm:$0xfc]
      %v5393 = vld [vmem:[#allocation2 + $0x10] sm:$0xfc]
      %v5394 = vld [vmem:[#allocation2 + $0x18] sm:$0xfc]
      %v5395 = vld [vmem:[#allocation2 + $0x40] sm:$0x3]
      %v5396 = vld [vmem:[#allocation2 + $0x48] sm:$0x3]
      %v5397 = vld [vmem:[#allocation2 + $0x50] sm:$0x3]
      %v5398 = vld [vmem:[#allocation2 + $0x58] sm:$0x3]
      %v5399 = vpack.c.bf16 %v3434, %v5391
      %v5400 = vpack.c.bf16 %v3435, %v5392
      %v5401 = vpack.c.bf16 %v3436, %v5393
      %v5402 = vpack.c.bf16 %v3437, %v5394
      %v5403 = vpack.c.bf16 %v5395, %v5395
      %v5404 = vpack.c.bf16 %v5396, %v5396
      %v5405 = vpack.c.bf16 %v5397, %v5397
      %v5406 = vpack.c.bf16 %v5398, %v5398
      %s5407 = scalar_lea.vmem %s3, 2048
      %v5408 = vld [vmem:[%s5407] sm:$0xff]
      %v5409 = vld [vmem:[%s5407 + $0x8] sm:$0xff]
      %v5410 = vld [vmem:[%s5407 + $0x10] sm:$0xff]
      %v5411 = vld [vmem:[%s5407 + $0x18] sm:$0xff]
      %v5412 = vld [vmem:[%s5407 + $0x20] sm:$0xff]
      %v5413 = vld [vmem:[%s5407 + $0x28] sm:$0xff]
      %v5414 = vld [vmem:[%s5407 + $0x30] sm:$0xff]
      %v5415 = vld [vmem:[%s5407 + $0x38] sm:$0xff]
      %v5416 = vld [vmem:[%s5407 + $0x40] sm:$0xff]
      %v5417 = vld [vmem:[%s5407 + $0x48] sm:$0xff]
      %v5418 = vld [vmem:[%s5407 + $0x50] sm:$0xff]
      %v5419 = vld [vmem:[%s5407 + $0x58] sm:$0xff]
      %v5420 = vld [vmem:[%s5407 + $0x60] sm:$0xff]
      %v5421 = vld [vmem:[%s5407 + $0x68] sm:$0xff]
      %v5422 = vld [vmem:[%s5407 + $0x70] sm:$0xff]
      %v5423 = vld [vmem:[%s5407 + $0x78] sm:$0xff]
      %v5424 = vld [vmem:[%s5407 + $0x80] sm:$0xff]
      %v5425 = vld [vmem:[%s5407 + $0x88] sm:$0xff]
      %v5426 = vld [vmem:[%s5407 + $0x90] sm:$0xff]
      %v5427 = vld [vmem:[%s5407 + $0x98] sm:$0xff]
      %v5428 = vld [vmem:[%s5407 + $0xa0] sm:$0xff]
      %v5429 = vld [vmem:[%s5407 + $0xa8] sm:$0xff]
      %v5430 = vld [vmem:[%s5407 + $0xb0] sm:$0xff]
      %v5431 = vld [vmem:[%s5407 + $0xb8] sm:$0xff]
      %v5432 = vld [vmem:[%s5407 + $0xc0] sm:$0xff]
      %v5433 = vld [vmem:[%s5407 + $0xc8] sm:$0xff]
      %v5434 = vld [vmem:[%s5407 + $0xd0] sm:$0xff]
      %v5435 = vld [vmem:[%s5407 + $0xd8] sm:$0xff]
      %v5436 = vld [vmem:[%s5407 + $0xe0] sm:$0xff]
      %v5437 = vld [vmem:[%s5407 + $0xe8] sm:$0xff]
      %v5438 = vld [vmem:[%s5407 + $0xf0] sm:$0xff]
      %v5439 = vld [vmem:[%s5407 + $0xf8] sm:$0xff]
      %v5440 = vld [vmem:[%s5407 + $0x100] sm:$0xff]
      %v5441 = vld [vmem:[%s5407 + $0x108] sm:$0xff]
      %v5442 = vld [vmem:[%s5407 + $0x110] sm:$0xff]
      %v5443 = vld [vmem:[%s5407 + $0x118] sm:$0xff]
      %v5444 = vld [vmem:[%s5407 + $0x120] sm:$0xff]
      %v5445 = vld [vmem:[%s5407 + $0x128] sm:$0xff]
      %v5446 = vld [vmem:[%s5407 + $0x130] sm:$0xff]
      %v5447 = vld [vmem:[%s5407 + $0x138] sm:$0xff]
      %v5448 = vld [vmem:[%s5407 + $0x140] sm:$0xff]
      %v5449 = vld [vmem:[%s5407 + $0x148] sm:$0xff]
      %v5450 = vld [vmem:[%s5407 + $0x150] sm:$0xff]
      %v5451 = vld [vmem:[%s5407 + $0x158] sm:$0xff]
      %v5452 = vld [vmem:[%s5407 + $0x160] sm:$0xff]
      %v5453 = vld [vmem:[%s5407 + $0x168] sm:$0xff]
      %v5454 = vld [vmem:[%s5407 + $0x170] sm:$0xff]
      %v5455 = vld [vmem:[%s5407 + $0x178] sm:$0xff]
      %v5456 = vld [vmem:[%s5407 + $0x180] sm:$0xff]
      %v5457 = vld [vmem:[%s5407 + $0x188] sm:$0xff]
      %v5458 = vld [vmem:[%s5407 + $0x190] sm:$0xff]
      %v5459 = vld [vmem:[%s5407 + $0x198] sm:$0xff]
      %v5460 = vld [vmem:[%s5407 + $0x1a0] sm:$0xff]
      %v5461 = vld [vmem:[%s5407 + $0x1a8] sm:$0xff]
      %v5462 = vld [vmem:[%s5407 + $0x1b0] sm:$0xff]
      %v5463 = vld [vmem:[%s5407 + $0x1b8] sm:$0xff]
      %v5464 = vld [vmem:[%s5407 + $0x1c0] sm:$0xff]
      %v5465 = vld [vmem:[%s5407 + $0x1c8] sm:$0xff]
      %v5466 = vld [vmem:[%s5407 + $0x1d0] sm:$0xff]
      %v5467 = vld [vmem:[%s5407 + $0x1d8] sm:$0xff]
      %v5468 = vld [vmem:[%s5407 + $0x1e0] sm:$0xff]
      %v5469 = vld [vmem:[%s5407 + $0x1e8] sm:$0xff]
      %v5470 = vld [vmem:[%s5407 + $0x1f0] sm:$0xff]
      %v5471 = vld [vmem:[%s5407 + $0x1f8] sm:$0xff]
      %v5472 = vld [vmem:[%s5407 + $0x200] sm:$0xff]
      %v5473 = vld [vmem:[%s5407 + $0x208] sm:$0xff]
      %v5474 = vld [vmem:[%s5407 + $0x210] sm:$0xff]
      %v5475 = vld [vmem:[%s5407 + $0x218] sm:$0xff]
      %v5476 = vld [vmem:[%s5407 + $0x220] sm:$0xff]
      %v5477 = vld [vmem:[%s5407 + $0x228] sm:$0xff]
      %v5478 = vld [vmem:[%s5407 + $0x230] sm:$0xff]
      %v5479 = vld [vmem:[%s5407 + $0x238] sm:$0xff]
      %v5480 = vld [vmem:[%s5407 + $0x240] sm:$0xff]
      %v5481 = vld [vmem:[%s5407 + $0x248] sm:$0xff]
      %v5482 = vld [vmem:[%s5407 + $0x250] sm:$0xff]
      %v5483 = vld [vmem:[%s5407 + $0x258] sm:$0xff]
      %v5484 = vld [vmem:[%s5407 + $0x260] sm:$0xff]
      %v5485 = vld [vmem:[%s5407 + $0x268] sm:$0xff]
      %v5486 = vld [vmem:[%s5407 + $0x270] sm:$0xff]
      %v5487 = vld [vmem:[%s5407 + $0x278] sm:$0xff]
      %v5488 = vld [vmem:[%s5407 + $0x280] sm:$0xff]
      %v5489 = vld [vmem:[%s5407 + $0x288] sm:$0xff]
      %v5490 = vld [vmem:[%s5407 + $0x290] sm:$0xff]
      %v5491 = vld [vmem:[%s5407 + $0x298] sm:$0xff]
      %v5492 = vld [vmem:[%s5407 + $0x2a0] sm:$0xff]
      %v5493 = vld [vmem:[%s5407 + $0x2a8] sm:$0xff]
      %v5494 = vld [vmem:[%s5407 + $0x2b0] sm:$0xff]
      %v5495 = vld [vmem:[%s5407 + $0x2b8] sm:$0xff]
      %v5496 = vld [vmem:[%s5407 + $0x2c0] sm:$0xff]
      %v5497 = vld [vmem:[%s5407 + $0x2c8] sm:$0xff]
      %v5498 = vld [vmem:[%s5407 + $0x2d0] sm:$0xff]
      %v5499 = vld [vmem:[%s5407 + $0x2d8] sm:$0xff]
      %v5500 = vld [vmem:[%s5407 + $0x2e0] sm:$0xff]
      %v5501 = vld [vmem:[%s5407 + $0x2e8] sm:$0xff]
      %v5502 = vld [vmem:[%s5407 + $0x2f0] sm:$0xff]
      %v5503 = vld [vmem:[%s5407 + $0x2f8] sm:$0xff]
      %v5504 = vld [vmem:[%s5407 + $0x300] sm:$0xff]
      %v5505 = vld [vmem:[%s5407 + $0x308] sm:$0xff]
      %v5506 = vld [vmem:[%s5407 + $0x310] sm:$0xff]
      %v5507 = vld [vmem:[%s5407 + $0x318] sm:$0xff]
      %v5508 = vld [vmem:[%s5407 + $0x320] sm:$0xff]
      %v5509 = vld [vmem:[%s5407 + $0x328] sm:$0xff]
      %v5510 = vld [vmem:[%s5407 + $0x330] sm:$0xff]
      %v5511 = vld [vmem:[%s5407 + $0x338] sm:$0xff]
      %v5512 = vld [vmem:[%s5407 + $0x340] sm:$0xff]
      %v5513 = vld [vmem:[%s5407 + $0x348] sm:$0xff]
      %v5514 = vld [vmem:[%s5407 + $0x350] sm:$0xff]
      %v5515 = vld [vmem:[%s5407 + $0x358] sm:$0xff]
      %v5516 = vld [vmem:[%s5407 + $0x360] sm:$0xff]
      %v5517 = vld [vmem:[%s5407 + $0x368] sm:$0xff]
      %v5518 = vld [vmem:[%s5407 + $0x370] sm:$0xff]
      %v5519 = vld [vmem:[%s5407 + $0x378] sm:$0xff]
      %v5520 = vld [vmem:[%s5407 + $0x380] sm:$0xff]
      %v5521 = vld [vmem:[%s5407 + $0x388] sm:$0xff]
      %v5522 = vld [vmem:[%s5407 + $0x390] sm:$0xff]
      %v5523 = vld [vmem:[%s5407 + $0x398] sm:$0xff]
      %v5524 = vld [vmem:[%s5407 + $0x3a0] sm:$0xff]
      %v5525 = vld [vmem:[%s5407 + $0x3a8] sm:$0xff]
      %v5526 = vld [vmem:[%s5407 + $0x3b0] sm:$0xff]
      %v5527 = vld [vmem:[%s5407 + $0x3b8] sm:$0xff]
      %v5528 = vld [vmem:[%s5407 + $0x3c0] sm:$0xff]
      %v5529 = vld [vmem:[%s5407 + $0x3c8] sm:$0xff]
      %v5530 = vld [vmem:[%s5407 + $0x3d0] sm:$0xff]
      %v5531 = vld [vmem:[%s5407 + $0x3d8] sm:$0xff]
      %v5532 = vld [vmem:[%s5407 + $0x3e0] sm:$0xff]
      %v5533 = vld [vmem:[%s5407 + $0x3e8] sm:$0xff]
      %v5534 = vld [vmem:[%s5407 + $0x3f0] sm:$0xff]
      %v5535 = vld [vmem:[%s5407 + $0x3f8] sm:$0xff]
      %v5544 = vrot.slane %v5399, 1
      %v5545 = vrot.slane %v5403, 1
      %v5546 = vsel %vm2512, %v5544, %v5545
      %v5547 = vrot.slane %v5400, 1
      %v5548 = vrot.slane %v5404, 1
      %v5549 = vsel %vm2512, %v5547, %v5548
      %v5550 = vrot.slane %v5401, 1
      %v5551 = vrot.slane %v5405, 1
      %v5552 = vsel %vm2512, %v5550, %v5551
      %v5553 = vrot.slane %v5402, 1
      %v5554 = vrot.slane %v5406, 1
      %v5555 = vsel %vm2512, %v5553, %v5554
      %v5688 = vunpack.c.l.b16 %v5408
      %v5689 = vunpack.c.h.b16 %v5408
      %v5690 = vunpack.c.l.b16 %v5409
      %v5691 = vunpack.c.h.b16 %v5409
      %v5692 = vunpack.c.l.b16 %v5410
      %v5693 = vunpack.c.h.b16 %v5410
      %v5694 = vunpack.c.l.b16 %v5411
      %v5695 = vunpack.c.h.b16 %v5411
      %v5696 = vunpack.c.l.b16 %v5412
      %v5697 = vunpack.c.h.b16 %v5412
      %v5698 = vunpack.c.l.b16 %v5413
      %v5699 = vunpack.c.h.b16 %v5413
      %v5700 = vunpack.c.l.b16 %v5414
      %v5701 = vunpack.c.h.b16 %v5414
      %v5702 = vunpack.c.l.b16 %v5415
      %v5703 = vunpack.c.h.b16 %v5415
      %v5704 = vunpack.c.l.b16 %v5416
      %v5705 = vunpack.c.h.b16 %v5416
      %v5706 = vunpack.c.l.b16 %v5417
      %v5707 = vunpack.c.h.b16 %v5417
      %v5708 = vunpack.c.l.b16 %v5418
      %v5709 = vunpack.c.h.b16 %v5418
      %v5710 = vunpack.c.l.b16 %v5419
      %v5711 = vunpack.c.h.b16 %v5419
      %v5712 = vunpack.c.l.b16 %v5420
      %v5713 = vunpack.c.h.b16 %v5420
      %v5714 = vunpack.c.l.b16 %v5421
      %v5715 = vunpack.c.h.b16 %v5421
      %v5716 = vunpack.c.l.b16 %v5422
      %v5717 = vunpack.c.h.b16 %v5422
      %v5718 = vunpack.c.l.b16 %v5423
      %v5719 = vunpack.c.h.b16 %v5423
      %v5720 = vunpack.c.l.b16 %v5424
      %v5721 = vunpack.c.h.b16 %v5424
      %v5722 = vunpack.c.l.b16 %v5425
      %v5723 = vunpack.c.h.b16 %v5425
      %v5724 = vunpack.c.l.b16 %v5426
      %v5725 = vunpack.c.h.b16 %v5426
      %v5726 = vunpack.c.l.b16 %v5427
      %v5727 = vunpack.c.h.b16 %v5427
      %v5728 = vunpack.c.l.b16 %v5428
      %v5729 = vunpack.c.h.b16 %v5428
      %v5730 = vunpack.c.l.b16 %v5429
      %v5731 = vunpack.c.h.b16 %v5429
      %v5732 = vunpack.c.l.b16 %v5430
      %v5733 = vunpack.c.h.b16 %v5430
      %v5734 = vunpack.c.l.b16 %v5431
      %v5735 = vunpack.c.h.b16 %v5431
      %v5736 = vunpack.c.l.b16 %v5432
      %v5737 = vunpack.c.h.b16 %v5432
      %v5738 = vunpack.c.l.b16 %v5433
      %v5739 = vunpack.c.h.b16 %v5433
      %v5740 = vunpack.c.l.b16 %v5434
      %v5741 = vunpack.c.h.b16 %v5434
      %v5742 = vunpack.c.l.b16 %v5435
      %v5743 = vunpack.c.h.b16 %v5435
      %v5744 = vunpack.c.l.b16 %v5436
      %v5745 = vunpack.c.h.b16 %v5436
      %v5746 = vunpack.c.l.b16 %v5437
      %v5747 = vunpack.c.h.b16 %v5437
      %v5748 = vunpack.c.l.b16 %v5438
      %v5749 = vunpack.c.h.b16 %v5438
      %v5750 = vunpack.c.l.b16 %v5439
      %v5751 = vunpack.c.h.b16 %v5439
      %v5752 = vunpack.c.l.b16 %v5440
      %v5753 = vunpack.c.h.b16 %v5440
      %v5754 = vunpack.c.l.b16 %v5441
      %v5755 = vunpack.c.h.b16 %v5441
      %v5756 = vunpack.c.l.b16 %v5442
      %v5757 = vunpack.c.h.b16 %v5442
      %v5758 = vunpack.c.l.b16 %v5443
      %v5759 = vunpack.c.h.b16 %v5443
      %v5760 = vunpack.c.l.b16 %v5444
      %v5761 = vunpack.c.h.b16 %v5444
      %v5762 = vunpack.c.l.b16 %v5445
      %v5763 = vunpack.c.h.b16 %v5445
      %v5764 = vunpack.c.l.b16 %v5446
      %v5765 = vunpack.c.h.b16 %v5446
      %v5766 = vunpack.c.l.b16 %v5447
      %v5767 = vunpack.c.h.b16 %v5447
      %v5768 = vunpack.c.l.b16 %v5448
      %v5769 = vunpack.c.h.b16 %v5448
      %v5770 = vunpack.c.l.b16 %v5449
      %v5771 = vunpack.c.h.b16 %v5449
      %v5772 = vunpack.c.l.b16 %v5450
      %v5773 = vunpack.c.h.b16 %v5450
      %v5774 = vunpack.c.l.b16 %v5451
      %v5775 = vunpack.c.h.b16 %v5451
      %v5776 = vunpack.c.l.b16 %v5452
      %v5777 = vunpack.c.h.b16 %v5452
      %v5778 = vunpack.c.l.b16 %v5453
      %v5779 = vunpack.c.h.b16 %v5453
      %v5780 = vunpack.c.l.b16 %v5454
      %v5781 = vunpack.c.h.b16 %v5454
      %v5782 = vunpack.c.l.b16 %v5455
      %v5783 = vunpack.c.h.b16 %v5455
      %v5784 = vunpack.c.l.b16 %v5456
      %v5785 = vunpack.c.h.b16 %v5456
      %v5786 = vunpack.c.l.b16 %v5457
      %v5787 = vunpack.c.h.b16 %v5457
      %v5788 = vunpack.c.l.b16 %v5458
      %v5789 = vunpack.c.h.b16 %v5458
      %v5790 = vunpack.c.l.b16 %v5459
      %v5791 = vunpack.c.h.b16 %v5459
      %v5792 = vunpack.c.l.b16 %v5460
      %v5793 = vunpack.c.h.b16 %v5460
      %v5794 = vunpack.c.l.b16 %v5461
      %v5795 = vunpack.c.h.b16 %v5461
      %v5796 = vunpack.c.l.b16 %v5462
      %v5797 = vunpack.c.h.b16 %v5462
      %v5798 = vunpack.c.l.b16 %v5463
      %v5799 = vunpack.c.h.b16 %v5463
      %v5800 = vunpack.c.l.b16 %v5464
      %v5801 = vunpack.c.h.b16 %v5464
      %v5802 = vunpack.c.l.b16 %v5465
      %v5803 = vunpack.c.h.b16 %v5465
      %v5804 = vunpack.c.l.b16 %v5466
      %v5805 = vunpack.c.h.b16 %v5466
      %v5806 = vunpack.c.l.b16 %v5467
      %v5807 = vunpack.c.h.b16 %v5467
      %v5808 = vunpack.c.l.b16 %v5468
      %v5809 = vunpack.c.h.b16 %v5468
      %v5810 = vunpack.c.l.b16 %v5469
      %v5811 = vunpack.c.h.b16 %v5469
      %v5812 = vunpack.c.l.b16 %v5470
      %v5813 = vunpack.c.h.b16 %v5470
      %v5814 = vunpack.c.l.b16 %v5471
      %v5815 = vunpack.c.h.b16 %v5471
      %v5816 = vunpack.c.l.b16 %v5472
      %v5817 = vunpack.c.h.b16 %v5472
      %v5818 = vunpack.c.l.b16 %v5473
      %v5819 = vunpack.c.h.b16 %v5473
      %v5820 = vunpack.c.l.b16 %v5474
      %v5821 = vunpack.c.h.b16 %v5474
      %v5822 = vunpack.c.l.b16 %v5475
      %v5823 = vunpack.c.h.b16 %v5475
      %v5824 = vunpack.c.l.b16 %v5476
      %v5825 = vunpack.c.h.b16 %v5476
      %v5826 = vunpack.c.l.b16 %v5477
      %v5827 = vunpack.c.h.b16 %v5477
      %v5828 = vunpack.c.l.b16 %v5478
      %v5829 = vunpack.c.h.b16 %v5478
      %v5830 = vunpack.c.l.b16 %v5479
      %v5831 = vunpack.c.h.b16 %v5479
      %v5832 = vunpack.c.l.b16 %v5480
      %v5833 = vunpack.c.h.b16 %v5480
      %v5834 = vunpack.c.l.b16 %v5481
      %v5835 = vunpack.c.h.b16 %v5481
      %v5836 = vunpack.c.l.b16 %v5482
      %v5837 = vunpack.c.h.b16 %v5482
      %v5838 = vunpack.c.l.b16 %v5483
      %v5839 = vunpack.c.h.b16 %v5483
      %v5840 = vunpack.c.l.b16 %v5484
      %v5841 = vunpack.c.h.b16 %v5484
      %v5842 = vunpack.c.l.b16 %v5485
      %v5843 = vunpack.c.h.b16 %v5485
      %v5844 = vunpack.c.l.b16 %v5486
      %v5845 = vunpack.c.h.b16 %v5486
      %v5846 = vunpack.c.l.b16 %v5487
      %v5847 = vunpack.c.h.b16 %v5487
      %v5848 = vunpack.c.l.b16 %v5488
      %v5849 = vunpack.c.h.b16 %v5488
      %v5850 = vunpack.c.l.b16 %v5489
      %v5851 = vunpack.c.h.b16 %v5489
      %v5852 = vunpack.c.l.b16 %v5490
      %v5853 = vunpack.c.h.b16 %v5490
      %v5854 = vunpack.c.l.b16 %v5491
      %v5855 = vunpack.c.h.b16 %v5491
      %v5856 = vunpack.c.l.b16 %v5492
      %v5857 = vunpack.c.h.b16 %v5492
      %v5858 = vunpack.c.l.b16 %v5493
      %v5859 = vunpack.c.h.b16 %v5493
      %v5860 = vunpack.c.l.b16 %v5494
      %v5861 = vunpack.c.h.b16 %v5494
      %v5862 = vunpack.c.l.b16 %v5495
      %v5863 = vunpack.c.h.b16 %v5495
      %v5864 = vunpack.c.l.b16 %v5496
      %v5865 = vunpack.c.h.b16 %v5496
      %v5866 = vunpack.c.l.b16 %v5497
      %v5867 = vunpack.c.h.b16 %v5497
      %v5868 = vunpack.c.l.b16 %v5498
      %v5869 = vunpack.c.h.b16 %v5498
      %v5870 = vunpack.c.l.b16 %v5499
      %v5871 = vunpack.c.h.b16 %v5499
      %v5872 = vunpack.c.l.b16 %v5500
      %v5873 = vunpack.c.h.b16 %v5500
      %v5874 = vunpack.c.l.b16 %v5501
      %v5875 = vunpack.c.h.b16 %v5501
      %v5876 = vunpack.c.l.b16 %v5502
      %v5877 = vunpack.c.h.b16 %v5502
      %v5878 = vunpack.c.l.b16 %v5503
      %v5879 = vunpack.c.h.b16 %v5503
      %v5880 = vunpack.c.l.b16 %v5504
      %v5881 = vunpack.c.h.b16 %v5504
      %v5882 = vunpack.c.l.b16 %v5505
      %v5883 = vunpack.c.h.b16 %v5505
      %v5884 = vunpack.c.l.b16 %v5506
      %v5885 = vunpack.c.h.b16 %v5506
      %v5886 = vunpack.c.l.b16 %v5507
      %v5887 = vunpack.c.h.b16 %v5507
      %v5888 = vunpack.c.l.b16 %v5508
      %v5889 = vunpack.c.h.b16 %v5508
      %v5890 = vunpack.c.l.b16 %v5509
      %v5891 = vunpack.c.h.b16 %v5509
      %v5892 = vunpack.c.l.b16 %v5510
      %v5893 = vunpack.c.h.b16 %v5510
      %v5894 = vunpack.c.l.b16 %v5511
      %v5895 = vunpack.c.h.b16 %v5511
      %v5896 = vunpack.c.l.b16 %v5512
      %v5897 = vunpack.c.h.b16 %v5512
      %v5898 = vunpack.c.l.b16 %v5513
      %v5899 = vunpack.c.h.b16 %v5513
      %v5900 = vunpack.c.l.b16 %v5514
      %v5901 = vunpack.c.h.b16 %v5514
      %v5902 = vunpack.c.l.b16 %v5515
      %v5903 = vunpack.c.h.b16 %v5515
      %v5904 = vunpack.c.l.b16 %v5516
      %v5905 = vunpack.c.h.b16 %v5516
      %v5906 = vunpack.c.l.b16 %v5517
      %v5907 = vunpack.c.h.b16 %v5517
      %v5908 = vunpack.c.l.b16 %v5518
      %v5909 = vunpack.c.h.b16 %v5518
      %v5910 = vunpack.c.l.b16 %v5519
      %v5911 = vunpack.c.h.b16 %v5519
      %v5912 = vunpack.c.l.b16 %v5520
      %v5913 = vunpack.c.h.b16 %v5520
      %v5914 = vunpack.c.l.b16 %v5521
      %v5915 = vunpack.c.h.b16 %v5521
      %v5916 = vunpack.c.l.b16 %v5522
      %v5917 = vunpack.c.h.b16 %v5522
      %v5918 = vunpack.c.l.b16 %v5523
      %v5919 = vunpack.c.h.b16 %v5523
      %v5920 = vunpack.c.l.b16 %v5524
      %v5921 = vunpack.c.h.b16 %v5524
      %v5922 = vunpack.c.l.b16 %v5525
      %v5923 = vunpack.c.h.b16 %v5525
      %v5924 = vunpack.c.l.b16 %v5526
      %v5925 = vunpack.c.h.b16 %v5526
      %v5926 = vunpack.c.l.b16 %v5527
      %v5927 = vunpack.c.h.b16 %v5527
      %v5928 = vunpack.c.l.b16 %v5528
      %v5929 = vunpack.c.h.b16 %v5528
      %v5930 = vunpack.c.l.b16 %v5529
      %v5931 = vunpack.c.h.b16 %v5529
      %v5932 = vunpack.c.l.b16 %v5530
      %v5933 = vunpack.c.h.b16 %v5530
      %v5934 = vunpack.c.l.b16 %v5531
      %v5935 = vunpack.c.h.b16 %v5531
      %v5936 = vunpack.c.l.b16 %v5532
      %v5937 = vunpack.c.h.b16 %v5532
      %v5938 = vunpack.c.l.b16 %v5533
      %v5939 = vunpack.c.h.b16 %v5533
      %v5940 = vunpack.c.l.b16 %v5534
      %v5941 = vunpack.c.h.b16 %v5534
      %v5942 = vunpack.c.l.b16 %v5535
      %v5943 = vunpack.c.h.b16 %v5535
      %v5944 = vpack.c.b16 %v5692, %v5688
      %v5945 = vpack.c.b16 %v5693, %v5689
      %v5946 = vpack.c.b16 %v5694, %v5690
      %v5947 = vpack.c.b16 %v5695, %v5691
      %v5948 = vpack.c.b16 %v5700, %v5696
      %v5949 = vpack.c.b16 %v5701, %v5697
      %v5950 = vpack.c.b16 %v5702, %v5698
      %v5951 = vpack.c.b16 %v5703, %v5699
      %v5952 = vpack.c.b16 %v5708, %v5704
      %v5953 = vpack.c.b16 %v5709, %v5705
      %v5954 = vpack.c.b16 %v5710, %v5706
      %v5955 = vpack.c.b16 %v5711, %v5707
      %v5956 = vpack.c.b16 %v5716, %v5712
      %v5957 = vpack.c.b16 %v5717, %v5713
      %v5958 = vpack.c.b16 %v5718, %v5714
      %v5959 = vpack.c.b16 %v5719, %v5715
      %v5960 = vpack.c.b16 %v5724, %v5720
      %v5961 = vpack.c.b16 %v5725, %v5721
      %v5962 = vpack.c.b16 %v5726, %v5722
      %v5963 = vpack.c.b16 %v5727, %v5723
      %v5964 = vpack.c.b16 %v5732, %v5728
      %v5965 = vpack.c.b16 %v5733, %v5729
      %v5966 = vpack.c.b16 %v5734, %v5730
      %v5967 = vpack.c.b16 %v5735, %v5731
      %v5968 = vpack.c.b16 %v5740, %v5736
      %v5969 = vpack.c.b16 %v5741, %v5737
      %v5970 = vpack.c.b16 %v5742, %v5738
      %v5971 = vpack.c.b16 %v5743, %v5739
      %v5972 = vpack.c.b16 %v5748, %v5744
      %v5973 = vpack.c.b16 %v5749, %v5745
      %v5974 = vpack.c.b16 %v5750, %v5746
      %v5975 = vpack.c.b16 %v5751, %v5747
      %v5976 = vpack.c.b16 %v5756, %v5752
      %v5977 = vpack.c.b16 %v5757, %v5753
      %v5978 = vpack.c.b16 %v5758, %v5754
      %v5979 = vpack.c.b16 %v5759, %v5755
      %v5980 = vpack.c.b16 %v5764, %v5760
      %v5981 = vpack.c.b16 %v5765, %v5761
      %v5982 = vpack.c.b16 %v5766, %v5762
      %v5983 = vpack.c.b16 %v5767, %v5763
      %v5984 = vpack.c.b16 %v5772, %v5768
      %v5985 = vpack.c.b16 %v5773, %v5769
      %v5986 = vpack.c.b16 %v5774, %v5770
      %v5987 = vpack.c.b16 %v5775, %v5771
      %v5988 = vpack.c.b16 %v5780, %v5776
      %v5989 = vpack.c.b16 %v5781, %v5777
      %v5990 = vpack.c.b16 %v5782, %v5778
      %v5991 = vpack.c.b16 %v5783, %v5779
      %v5992 = vpack.c.b16 %v5788, %v5784
      %v5993 = vpack.c.b16 %v5789, %v5785
      %v5994 = vpack.c.b16 %v5790, %v5786
      %v5995 = vpack.c.b16 %v5791, %v5787
      %v5996 = vpack.c.b16 %v5796, %v5792
      %v5997 = vpack.c.b16 %v5797, %v5793
      %v5998 = vpack.c.b16 %v5798, %v5794
      %v5999 = vpack.c.b16 %v5799, %v5795
      %v6000 = vpack.c.b16 %v5804, %v5800
      %v6001 = vpack.c.b16 %v5805, %v5801
      %v6002 = vpack.c.b16 %v5806, %v5802
      %v6003 = vpack.c.b16 %v5807, %v5803
      %v6004 = vpack.c.b16 %v5812, %v5808
      %v6005 = vpack.c.b16 %v5813, %v5809
      %v6006 = vpack.c.b16 %v5814, %v5810
      %v6007 = vpack.c.b16 %v5815, %v5811
      %v6008 = vpack.c.b16 %v5820, %v5816
      %v6009 = vpack.c.b16 %v5821, %v5817
      %v6010 = vpack.c.b16 %v5822, %v5818
      %v6011 = vpack.c.b16 %v5823, %v5819
      %v6012 = vpack.c.b16 %v5828, %v5824
      %v6013 = vpack.c.b16 %v5829, %v5825
      %v6014 = vpack.c.b16 %v5830, %v5826
      %v6015 = vpack.c.b16 %v5831, %v5827
      %v6016 = vpack.c.b16 %v5836, %v5832
      %v6017 = vpack.c.b16 %v5837, %v5833
      %v6018 = vpack.c.b16 %v5838, %v5834
      %v6019 = vpack.c.b16 %v5839, %v5835
      %v6020 = vpack.c.b16 %v5844, %v5840
      %v6021 = vpack.c.b16 %v5845, %v5841
      %v6022 = vpack.c.b16 %v5846, %v5842
      %v6023 = vpack.c.b16 %v5847, %v5843
      %v6024 = vpack.c.b16 %v5852, %v5848
      %v6025 = vpack.c.b16 %v5853, %v5849
      %v6026 = vpack.c.b16 %v5854, %v5850
      %v6027 = vpack.c.b16 %v5855, %v5851
      %v6028 = vpack.c.b16 %v5860, %v5856
      %v6029 = vpack.c.b16 %v5861, %v5857
      %v6030 = vpack.c.b16 %v5862, %v5858
      %v6031 = vpack.c.b16 %v5863, %v5859
      %v6032 = vpack.c.b16 %v5868, %v5864
      %v6033 = vpack.c.b16 %v5869, %v5865
      %v6034 = vpack.c.b16 %v5870, %v5866
      %v6035 = vpack.c.b16 %v5871, %v5867
      %v6036 = vpack.c.b16 %v5876, %v5872
      %v6037 = vpack.c.b16 %v5877, %v5873
      %v6038 = vpack.c.b16 %v5878, %v5874
      %v6039 = vpack.c.b16 %v5879, %v5875
      %v6040 = vpack.c.b16 %v5884, %v5880
      %v6041 = vpack.c.b16 %v5885, %v5881
      %v6042 = vpack.c.b16 %v5886, %v5882
      %v6043 = vpack.c.b16 %v5887, %v5883
      %v6044 = vpack.c.b16 %v5892, %v5888
      %v6045 = vpack.c.b16 %v5893, %v5889
      %v6046 = vpack.c.b16 %v5894, %v5890
      %v6047 = vpack.c.b16 %v5895, %v5891
      %v6048 = vpack.c.b16 %v5900, %v5896
      %v6049 = vpack.c.b16 %v5901, %v5897
      %v6050 = vpack.c.b16 %v5902, %v5898
      %v6051 = vpack.c.b16 %v5903, %v5899
      %v6052 = vpack.c.b16 %v5908, %v5904
      %v6053 = vpack.c.b16 %v5909, %v5905
      %v6054 = vpack.c.b16 %v5910, %v5906
      %v6055 = vpack.c.b16 %v5911, %v5907
      %v6056 = vpack.c.b16 %v5916, %v5912
      %v6057 = vpack.c.b16 %v5917, %v5913
      %v6058 = vpack.c.b16 %v5918, %v5914
      %v6059 = vpack.c.b16 %v5919, %v5915
      %v6060 = vpack.c.b16 %v5924, %v5920
      %v6061 = vpack.c.b16 %v5925, %v5921
      %v6062 = vpack.c.b16 %v5926, %v5922
      %v6063 = vpack.c.b16 %v5927, %v5923
      %v6064 = vpack.c.b16 %v5932, %v5928
      %v6065 = vpack.c.b16 %v5933, %v5929
      %v6066 = vpack.c.b16 %v5934, %v5930
      %v6067 = vpack.c.b16 %v5935, %v5931
      %v6068 = vpack.c.b16 %v5940, %v5936
      %v6069 = vpack.c.b16 %v5941, %v5937
      %v6070 = vpack.c.b16 %v5942, %v5938
      %v6071 = vpack.c.b16 %v5943, %v5939
      %6200 = vmatprep.subr.bf16.mxu0 %v5945
      %6201 = vmatpush1.bf16.msra.mxu0 %v5944
      %6202 = vmatprep.subr.bf16.mxu0 %v5949
      %6203 = vmatpush1.bf16.msra.mxu0 %v5948
      %6204 = vmatprep.subr.bf16.mxu0 %v5953
      %6205 = vmatpush1.bf16.msra.mxu0 %v5952
      %6206 = vmatprep.subr.bf16.mxu0 %v5957
      %6207 = vmatpush1.bf16.msra.mxu0 %v5956
      %6208 = vmatprep.subr.bf16.mxu0 %v5961
      %6209 = vmatpush1.bf16.msra.mxu0 %v5960
      %6210 = vmatprep.subr.bf16.mxu0 %v5965
      %6211 = vmatpush1.bf16.msra.mxu0 %v5964
      %6212 = vmatprep.subr.bf16.mxu0 %v5969
      %6213 = vmatpush1.bf16.msra.mxu0 %v5968
      %6214 = vmatprep.subr.bf16.mxu0 %v5973
      %6215 = vmatpush1.bf16.msra.mxu0 %v5972
      %6216 = vmatprep.subr.bf16.mxu0 %v5977
      %6217 = vmatpush1.bf16.msra.mxu0 %v5976
      %6218 = vmatprep.subr.bf16.mxu0 %v5981
      %6219 = vmatpush1.bf16.msra.mxu0 %v5980
      %6220 = vmatprep.subr.bf16.mxu0 %v5985
      %6221 = vmatpush1.bf16.msra.mxu0 %v5984
      %6222 = vmatprep.subr.bf16.mxu0 %v5989
      %6223 = vmatpush1.bf16.msra.mxu0 %v5988
      %6224 = vmatprep.subr.bf16.mxu0 %v5993
      %6225 = vmatpush1.bf16.msra.mxu0 %v5992
      %6226 = vmatprep.subr.bf16.mxu0 %v5997
      %6227 = vmatpush1.bf16.msra.mxu0 %v5996
      %6228 = vmatprep.subr.bf16.mxu0 %v6001
      %6229 = vmatpush1.bf16.msra.mxu0 %v6000
      %6230 = vmatprep.subr.bf16.mxu0 %v6005
      %6231 = vmatpush1.bf16.msra.mxu0 %v6004
      %6232 = vmatprep.mubr.bf16.mxu0 %v5549
      %6233 = vmatmul.mubr.bf16.gmra.mrb[0].mxu0 %v5546
      %v6234 = vpop.f32.mrb[0].mxu0
      %v6235 = vadd.f32 0.0, %v6234
      %v6236 = vpop.f32.mrb[0].mxu0
      %v6237 = vadd.f32 0.0, %v6236
      %v6238 = vpop.f32.mrb[0].mxu0
      %v6239 = vadd.f32 0.0, %v6238
      %v6240 = vpop.f32.mrb[0].mxu0
      %v6241 = vadd.f32 0.0, %v6240
      %6242 = vdwg.mxu0
      %6243 = vmatprep.subr.bf16.mxu0 %v6009
      %6244 = vmatpush1.bf16.msra.mxu0 %v6008
      %6245 = vmatprep.subr.bf16.mxu0 %v6013
      %6246 = vmatpush1.bf16.msra.mxu0 %v6012
      %6247 = vmatprep.subr.bf16.mxu0 %v6017
      %6248 = vmatpush1.bf16.msra.mxu0 %v6016
      %6249 = vmatprep.subr.bf16.mxu0 %v6021
      %6250 = vmatpush1.bf16.msra.mxu0 %v6020
      %6251 = vmatprep.subr.bf16.mxu0 %v6025
      %6252 = vmatpush1.bf16.msra.mxu0 %v6024
      %6253 = vmatprep.subr.bf16.mxu0 %v6029
      %6254 = vmatpush1.bf16.msra.mxu0 %v6028
      %6255 = vmatprep.subr.bf16.mxu0 %v6033
      %6256 = vmatpush1.bf16.msra.mxu0 %v6032
      %6257 = vmatprep.subr.bf16.mxu0 %v6037
      %6258 = vmatpush1.bf16.msra.mxu0 %v6036
      %6259 = vmatprep.subr.bf16.mxu0 %v6041
      %6260 = vmatpush1.bf16.msra.mxu0 %v6040
      %6261 = vmatprep.subr.bf16.mxu0 %v6045
      %6262 = vmatpush1.bf16.msra.mxu0 %v6044
      %6263 = vmatprep.subr.bf16.mxu0 %v6049
      %6264 = vmatpush1.bf16.msra.mxu0 %v6048
      %6265 = vmatprep.subr.bf16.mxu0 %v6053
      %6266 = vmatpush1.bf16.msra.mxu0 %v6052
      %6267 = vmatprep.subr.bf16.mxu0 %v6057
      %6268 = vmatpush1.bf16.msra.mxu0 %v6056
      %6269 = vmatprep.subr.bf16.mxu0 %v6061
      %6270 = vmatpush1.bf16.msra.mxu0 %v6060
      %6271 = vmatprep.subr.bf16.mxu0 %v6065
      %6272 = vmatpush1.bf16.msra.mxu0 %v6064
      %6273 = vmatprep.subr.bf16.mxu0 %v6069
      %6274 = vmatpush1.bf16.msra.mxu0 %v6068
      %6275 = vmatprep.mubr.bf16.mxu0 %v5555
      %6276 = vmatmul.mubr.bf16.gmra.mrb[0].mxu0 %v5552
      %v6277 = vpop.f32.mrb[0].mxu0
      %v6278 = vadd.f32 %v6235, %v6277
      %v6279 = vpop.f32.mrb[0].mxu0
      %v6280 = vadd.f32 %v6237, %v6279
      %v6281 = vpop.f32.mrb[0].mxu0
      %v6282 = vadd.f32 %v6239, %v6281
      %v6283 = vpop.f32.mrb[0].mxu0
      %v6284 = vadd.f32 %v6241, %v6283
      %6285 = vdwg.mxu0
      %6286 = vmatprep.subr.bf16.mxu0 %v5947
      %6287 = vmatpush1.bf16.msra.mxu0 %v5946
      %6288 = vmatprep.subr.bf16.mxu0 %v5951
      %6289 = vmatpush1.bf16.msra.mxu0 %v5950
      %6290 = vmatprep.subr.bf16.mxu0 %v5955
      %6291 = vmatpush1.bf16.msra.mxu0 %v5954
      %6292 = vmatprep.subr.bf16.mxu0 %v5959
      %6293 = vmatpush1.bf16.msra.mxu0 %v5958
      %6294 = vmatprep.subr.bf16.mxu0 %v5963
      %6295 = vmatpush1.bf16.msra.mxu0 %v5962
      %6296 = vmatprep.subr.bf16.mxu0 %v5967
      %6297 = vmatpush1.bf16.msra.mxu0 %v5966
      %6298 = vmatprep.subr.bf16.mxu0 %v5971
      %6299 = vmatpush1.bf16.msra.mxu0 %v5970
      %6300 = vmatprep.subr.bf16.mxu0 %v5975
      %6301 = vmatpush1.bf16.msra.mxu0 %v5974
      %6302 = vmatprep.subr.bf16.mxu0 %v5979
      %6303 = vmatpush1.bf16.msra.mxu0 %v5978
      %6304 = vmatprep.subr.bf16.mxu0 %v5983
      %6305 = vmatpush1.bf16.msra.mxu0 %v5982
      %6306 = vmatprep.subr.bf16.mxu0 %v5987
      %6307 = vmatpush1.bf16.msra.mxu0 %v5986
      %6308 = vmatprep.subr.bf16.mxu0 %v5991
      %6309 = vmatpush1.bf16.msra.mxu0 %v5990
      %6310 = vmatprep.subr.bf16.mxu0 %v5995
      %6311 = vmatpush1.bf16.msra.mxu0 %v5994
      %6312 = vmatprep.subr.bf16.mxu0 %v5999
      %6313 = vmatpush1.bf16.msra.mxu0 %v5998
      %6314 = vmatprep.subr.bf16.mxu0 %v6003
      %6315 = vmatpush1.bf16.msra.mxu0 %v6002
      %6316 = vmatprep.subr.bf16.mxu0 %v6007
      %6317 = vmatpush1.bf16.msra.mxu0 %v6006
      %6318 = vmatprep.mubr.bf16.mxu0 %v5549
      %6319 = vmatmul.mubr.bf16.gmra.mrb[0].mxu0 %v5546
      %v6320 = vpop.f32.mrb[0].mxu0
      %v6321 = vadd.f32 0.0, %v6320
      %v6322 = vpop.f32.mrb[0].mxu0
      %v6323 = vadd.f32 0.0, %v6322
      %v6324 = vpop.f32.mrb[0].mxu0
      %v6325 = vadd.f32 0.0, %v6324
      %v6326 = vpop.f32.mrb[0].mxu0
      %v6327 = vadd.f32 0.0, %v6326
      %6328 = vdwg.mxu0
      %6329 = vmatprep.subr.bf16.mxu0 %v6011
      %6330 = vmatpush1.bf16.msra.mxu0 %v6010
      %6331 = vmatprep.subr.bf16.mxu0 %v6015
      %6332 = vmatpush1.bf16.msra.mxu0 %v6014
      %6333 = vmatprep.subr.bf16.mxu0 %v6019
      %6334 = vmatpush1.bf16.msra.mxu0 %v6018
      %6335 = vmatprep.subr.bf16.mxu0 %v6023
      %6336 = vmatpush1.bf16.msra.mxu0 %v6022
      %6337 = vmatprep.subr.bf16.mxu0 %v6027
      %6338 = vmatpush1.bf16.msra.mxu0 %v6026
      %6339 = vmatprep.subr.bf16.mxu0 %v6031
      %6340 = vmatpush1.bf16.msra.mxu0 %v6030
      %6341 = vmatprep.subr.bf16.mxu0 %v6035
      %6342 = vmatpush1.bf16.msra.mxu0 %v6034
      %6343 = vmatprep.subr.bf16.mxu0 %v6039
      %6344 = vmatpush1.bf16.msra.mxu0 %v6038
      %6345 = vmatprep.subr.bf16.mxu0 %v6043
      %6346 = vmatpush1.bf16.msra.mxu0 %v6042
      %6347 = vmatprep.subr.bf16.mxu0 %v6047
      %6348 = vmatpush1.bf16.msra.mxu0 %v6046
      %6349 = vmatprep.subr.bf16.mxu0 %v6051
      %6350 = vmatpush1.bf16.msra.mxu0 %v6050
      %6351 = vmatprep.subr.bf16.mxu0 %v6055
      %6352 = vmatpush1.bf16.msra.mxu0 %v6054
      %6353 = vmatprep.subr.bf16.mxu0 %v6059
      %6354 = vmatpush1.bf16.msra.mxu0 %v6058
      %6355 = vmatprep.subr.bf16.mxu0 %v6063
      %6356 = vmatpush1.bf16.msra.mxu0 %v6062
      %6357 = vmatprep.subr.bf16.mxu0 %v6067
      %6358 = vmatpush1.bf16.msra.mxu0 %v6066
      %6359 = vmatprep.subr.bf16.mxu0 %v6071
      %6360 = vmatpush1.bf16.msra.mxu0 %v6070
      %6361 = vmatprep.mubr.bf16.mxu0 %v5555
      %6362 = vmatmul.mubr.bf16.gmra.mrb[0].mxu0 %v5552
      %v6363 = vpop.f32.mrb[0].mxu0
      %v6364 = vadd.f32 %v6321, %v6363
      %v6365 = vpop.f32.mrb[0].mxu0
      %v6366 = vadd.f32 %v6323, %v6365
      %v6367 = vpop.f32.mrb[0].mxu0
      %v6368 = vadd.f32 %v6325, %v6367
      %v6369 = vpop.f32.mrb[0].mxu0
      %v6370 = vadd.f32 %v6327, %v6369
      %6371 = vdwg.mxu0
      %v6372 = vadd.f32 %v5297, %v6278
      %v6373 = vadd.f32 %v5299, %v6280
      %v6374 = vadd.f32 %v5383, %v6364
      %v6375 = vadd.f32 %v5385, %v6366
      %v6376 = vadd.f32 %v5301, %v6282
      %v6377 = vadd.f32 %v5303, %v6284
      %v6378 = vadd.f32 %v5387, %v6368
      %v6379 = vadd.f32 %v5389, %v6370
      %v6381 = vlaneseq
      %v6382 = vshrl.u32 %v6381, 7
      %v6383 = vsub.s32 0, %v6382
      %v6384 = vrot.slane %v343, %v6383
      %v6385 = vlaneseq
      %v6386 = vshrl.u32 %v6385, 7
      %v6387 = vsub.s32 1, %v6386
      %v6388 = vrot.slane %v343, %v6387
      %v6389 = vlaneseq
      %v6390 = vshrl.u32 %v6389, 7
      %v6391 = vsub.s32 2, %v6390
      %v6392 = vrot.slane %v343, %v6391
      %v6393 = vlaneseq
      %v6394 = vshrl.u32 %v6393, 7
      %v6395 = vsub.s32 3, %v6394
      %v6396 = vrot.slane %v343, %v6395
      %v6401 = vadd.f32 %v6372, %v6384
      %v6402 = vadd.f32 %v6373, %v6388
      %v6403 = vadd.f32 %v6374, %v6392
      %v6404 = vadd.f32 %v6375, %v6396
      %v6405 = vadd.f32 %v6376, %v6384
      %v6406 = vadd.f32 %v6377, %v6388
      %v6407 = vadd.f32 %v6378, %v6392
      %v6408 = vadd.f32 %v6379, %v6396
      %v6409 = vadd.f32 %v6401, %v6405
      %v6410 = vrot.slane %v6409, 4
      %v6411 = vadd.f32 %v6409, %v6410
      %v6412 = vrot.slane %v6411, 2
      %v6413 = vadd.f32 %v6411, %v6412
      %v6414 = vrot.slane %v6413, 1
      %v6415 = vadd.f32 %v6413, %v6414
      %v6416 = vadd.f32 %v6402, %v6406
      %v6417 = vrot.slane %v6416, 4
      %v6418 = vadd.f32 %v6416, %v6417
      %v6419 = vrot.slane %v6418, 2
      %v6420 = vadd.f32 %v6418, %v6419
      %v6421 = vrot.slane %v6420, 1
      %v6422 = vadd.f32 %v6420, %v6421
      %v6423 = vadd.f32 %v6403, %v6407
      %v6424 = vrot.slane %v6423, 4
      %v6425 = vadd.f32 %v6423, %v6424
      %v6426 = vrot.slane %v6425, 2
      %v6427 = vadd.f32 %v6425, %v6426
      %v6428 = vrot.slane %v6427, 1
      %v6429 = vadd.f32 %v6427, %v6428
      %v6430 = vadd.f32 %v6404, %v6408
      %v6431 = vrot.slane %v6430, 4
      %v6432 = vadd.f32 %v6430, %v6431
      %v6433 = vrot.slane %v6432, 2
      %v6434 = vadd.f32 %v6432, %v6433
      %v6435 = vrot.slane %v6434, 1
      %v6436 = vadd.f32 %v6434, %v6435
      %v6437 = vld [vmem:[%s5] sm:$0xff]
      %v6439 = vcombine.high %v6437, %v6437
      %v6441 = vunpack.c.l.s4 1983009808
      %v6442 = vunpack.c.0.s8 %v6441
      %v6443 = vlaneseq
      %v6444 = vshrl.u32 %v6443, 7
      %v6445 = vsub.s32 %v6442, %v6444
      %v6446 = vrot.slane %v6437, %v6445
      %v6448 = vunpack.c.l.s4 1983009808
      %v6449 = vunpack.c.0.s8 %v6448
      %v6450 = vlaneseq
      %v6451 = vshrl.u32 %v6450, 7
      %v6452 = vsub.s32 %v6449, %v6451
      %v6453 = vrot.slane %v6439, %v6452
      %v6454 = vcombine.high %v6446, %v6446
      %v6455 = vcombine.high %v6453, %v6453
      %v6460 = vmul.f32 %v6415, %v6446
      %v6461 = vmul.f32 %v6422, %v6454
      %v6462 = vmul.f32 %v6429, %v6453
      %v6463 = vmul.f32 %v6436, %v6455
      %vm6464 = vcmask 1041408
      %v6465 = vsel %vm6464, %v6460, 0.0
      %v6466 = vsel %vm6464, %v6461, 0.0
      %v6467 = vadd.f32 %v6465, %v6466
      %v6468 = vsel %vm6464, %v6462, 0.0
      %v6469 = vadd.f32 %v6467, %v6468
      %v6470 = vsel %vm6464, %v6463, 0.0
      %v6471 = vadd.f32 %v6469, %v6470
      %6472 = vadd.xlane.f32.xlu0 %v6471
      %v6473 = vpop.xlane.xlu0 %6472
      %v6474 = vld [vmem:[%s6] sm:$0x3]
      %v6475 = vadd.f32 %v6473, %v6474
      %v6476 = vmax.f32 %v6475, 0.0
      %v6477 = vld [vmem:[%s7] sm:$0xff]
      %6479 = vset.pattern.permute.xlu0 0
      %6480 = vperm.xlu0 %6479, %v6476
      %v6481 = vpop.permute.xlu0 %6480
      %v6484 = vcombine.high %v6477, %v6477
      %v6486 = vunpack.c.l.s4 1983009808
      %v6487 = vunpack.c.0.s8 %v6486
      %v6488 = vlaneseq
      %v6489 = vshrl.u32 %v6488, 7
      %v6490 = vsub.s32 %v6487, %v6489
      %v6491 = vrot.slane %v6477, %v6490
      %v6493 = vunpack.c.l.s4 1983009808
      %v6494 = vunpack.c.0.s8 %v6493
      %v6495 = vlaneseq
      %v6496 = vshrl.u32 %v6495, 7
      %v6497 = vsub.s32 %v6494, %v6496
      %v6498 = vrot.slane %v6484, %v6497
      %v6499 = vcombine.high %v6491, %v6491
      %v6500 = vcombine.high %v6498, %v6498
      %v6505 = vmul.f32 %v6481, %v6491
      %v6506 = vmul.f32 %v6481, %v6499
      %v6507 = vmul.f32 %v6481, %v6498
      %v6508 = vmul.f32 %v6481, %v6500
      %v6509 = vsel %vm6464, %v6505, 0.0
      %v6510 = vrot.slane %v6509, 4
      %v6511 = vadd.f32 %v6509, %v6510
      %v6512 = vrot.slane %v6511, 2
      %v6513 = vadd.f32 %v6511, %v6512
      %v6514 = vrot.slane %v6513, 1
      %v6515 = vadd.f32 %v6513, %v6514
      %v6516 = vsel %vm6464, %v6506, 0.0
      %v6517 = vrot.slane %v6516, 4
      %v6518 = vadd.f32 %v6516, %v6517
      %v6519 = vrot.slane %v6518, 2
      %v6520 = vadd.f32 %v6518, %v6519
      %v6521 = vrot.slane %v6520, 1
      %v6522 = vadd.f32 %v6520, %v6521
      %v6523 = vsel %vm6464, %v6507, 0.0
      %v6524 = vrot.slane %v6523, 4
      %v6525 = vadd.f32 %v6523, %v6524
      %v6526 = vrot.slane %v6525, 2
      %v6527 = vadd.f32 %v6525, %v6526
      %v6528 = vrot.slane %v6527, 1
      %v6529 = vadd.f32 %v6527, %v6528
      %v6530 = vsel %vm6464, %v6508, 0.0
      %v6531 = vrot.slane %v6530, 4
      %v6532 = vadd.f32 %v6530, %v6531
      %v6533 = vrot.slane %v6532, 2
      %v6534 = vadd.f32 %v6532, %v6533
      %v6535 = vrot.slane %v6534, 1
      %v6536 = vadd.f32 %v6534, %v6535
      %v6537 = vld [vmem:[%s8] sm:$0xf]
      %v6539 = vlaneseq
      %v6540 = vshrl.u32 %v6539, 7
      %v6541 = vsub.s32 0, %v6540
      %v6542 = vrot.slane %v6537, %v6541
      %v6543 = vlaneseq
      %v6544 = vshrl.u32 %v6543, 7
      %v6545 = vsub.s32 1, %v6544
      %v6546 = vrot.slane %v6537, %v6545
      %v6547 = vlaneseq
      %v6548 = vshrl.u32 %v6547, 7
      %v6549 = vsub.s32 2, %v6548
      %v6550 = vrot.slane %v6537, %v6549
      %v6551 = vlaneseq
      %v6552 = vshrl.u32 %v6551, 7
      %v6553 = vsub.s32 3, %v6552
      %v6554 = vrot.slane %v6537, %v6553
      %v6559 = vadd.f32 %v6515, %v6542
      %v6560 = vadd.f32 %v6522, %v6546
      %v6561 = vadd.f32 %v6529, %v6550
      %v6562 = vadd.f32 %v6536, %v6554
      %v6563 = vxor.u32 %v6559, 2147483648
      %v6564 = vxor.u32 %v6560, 2147483648
      %v6565 = vxor.u32 %v6561, 2147483648
      %v6566 = vxor.u32 %v6562, 2147483648
      %v6567 = vmul.f32 %v6563, 1.442695
      %v6568 = vpow.pop %v6567
      %v6569 = vmul.f32 %v6564, 1.442695
      %v6570 = vpow.pop %v6569
      %v6571 = vmul.f32 %v6565, 1.442695
      %v6572 = vpow.pop %v6571
      %v6573 = vmul.f32 %v6566, 1.442695
      %v6574 = vpow.pop %v6573
      %v6575 = vadd.f32 %v6568, 1.0
      %v6576 = vadd.f32 %v6570, 1.0
      %v6577 = vadd.f32 %v6572, 1.0
      %v6578 = vadd.f32 %v6574, 1.0
      %v6579 = vrcp.pop %v6575
      %v6580 = vmul.f32 1.0, %v6579
      %v6581 = vrcp.pop %v6576
      %v6582 = vmul.f32 1.0, %v6581
      %v6583 = vrcp.pop %v6577
      %v6584 = vmul.f32 1.0, %v6583
      %v6585 = vrcp.pop %v6578
      %v6586 = vmul.f32 1.0, %v6585
      %v6587 = vlaneseq
      %v6588 = vshrl.u32 %v6587, 7
      %v6589 = vsub.s32 0, %v6588
      %v6590 = vrot.slane %v6580, %v6589
      %v6591 = vlaneseq
      %v6592 = vshrl.u32 %v6591, 7
      %v6593 = vsub.s32 0, %v6592
      %v6594 = vrot.slane %v6582, %v6593
      %v6595 = vlaneseq
      %v6596 = vshrl.u32 %v6595, 7
      %v6597 = vsub.s32 0, %v6596
      %v6598 = vrot.slane %v6584, %v6597
      %v6599 = vlaneseq
      %v6600 = vshrl.u32 %v6599, 7
      %v6601 = vsub.s32 0, %v6600
      %v6602 = vrot.slane %v6586, %v6601
      %v6603 = vmul.f32 %v6401, %v6590
      %v6604 = vmul.f32 %v6402, %v6594
      %v6605 = vmul.f32 %v6403, %v6598
      %v6606 = vmul.f32 %v6404, %v6602
      %v6607 = vmul.f32 %v6405, %v6590
      %v6608 = vmul.f32 %v6406, %v6594
      %v6609 = vmul.f32 %v6407, %v6598
      %v6610 = vmul.f32 %v6408, %v6602
      %v6611 = vadd.f32 %v6603, %v344
      %v6612 = vadd.f32 %v6604, %v345
      %v6613 = vadd.f32 %v6605, %v346
      %v6614 = vadd.f32 %v6606, %v347
      %v6615 = vadd.f32 %v6607, %v348
      %v6616 = vadd.f32 %v6608, %v349
      %v6617 = vadd.f32 %v6609, %v350
      %v6618 = vadd.f32 %v6610, %v351
      %6619 = vst [vmem:[%s332] sm:$0xff] %v6611
      %6620 = vst [vmem:[%s332 + $0x8] sm:$0xff] %v6612
      %6621 = vst [vmem:[%s332 + $0x10] sm:$0xff] %v6613
      %6622 = vst [vmem:[%s332 + $0x18] sm:$0xff] %v6614
      %6623 = vst [vmem:[%s332 + $0x20] sm:$0xff] %v6615
      %6624 = vst [vmem:[%s332 + $0x28] sm:$0xff] %v6616
      %6625 = vst [vmem:[%s332 + $0x30] sm:$0xff] %v6617
      %6626 = vst [vmem:[%s332 + $0x38] sm:$0xff] %v6618
      %p6627 = scmp.lt.s32.totalorder %s20, 1
      %s6628 = scalar_select %p6627, %s20, 1
      %s6629 = smul.addr %s6628, 8
      %s6630 = smul.addr %s6629, 8
      %s6631 = scalar_lea.vmem %s9, %s6630
      // Predicated region
      $region57: #{res_attention_block.1} parent=55 // pred_check
        %p6632 = pneg %p232
      $region58: #{res_attention_block.1} parent=55 // pred_check_branch
        %6634 = sbr.rel (%p6632) target = $region60
      $region59: #{res_attention_block.1} parent=55 // pred_region
        _
      $region60: #{res_attention_block.1} parent=55 // pred_fallthru
        _
    $region56: #{res_attention_block.1} parent=5 // pred_fallthru
      _
    %p6635 = scmp.le.s32.totalorder 2, %s15
    // Predicated region
    $region61: #{res_attention_block.1} parent=5 // pred_check
      %p6636 = pneg %p6635
    $region62: #{res_attention_block.1} parent=5 // pred_check_branch
      %6638 = sbr.rel (%p6636) target = $region64
    $region63: #{res_attention_block.1} parent=5 // pred_region
      %s6639 = ssub.s32 %s15, 2
      // Predicated region
      $region65: #{res_attention_block.1} parent=63 // pred_check
        %p6640 = pneg %p238
      $region66: #{res_attention_block.1} parent=63 // pred_check_branch
        %6642 = sbr.rel (%p6640) target = $region68
      $region67: #{res_attention_block.1} parent=63 // pred_region
        %p6643 = scmp.lt.s32.totalorder %s21, 1
        %s6644 = scalar_select %p6643, %s21, 1
        %s6645 = smul.addr %s6644, 8
        %s6646 = smul.addr %s6645, 8
        %s6647 = scalar_lea.vmem %s9, %s6646
      $region68: #{res_attention_block.1} parent=63 // pred_fallthru
        _
    $region64: #{res_attention_block.1} parent=5 // pred_fallthru
      _
  $region6: #{res_attention_block.1} parent=0 // loop_footer
    %s19 = sadd.s32 1, %s15
  $region7: #{res_attention_block.1} parent=0 // loop_footer_branch
    %14 = sbr.rel target = $region3
  $region8: #{res_attention_block.1} parent=0 // loop_exit
    _

</llo_original>
